<compile_context>
chip_gen: v7x
topology: tpu7x:2x2x1
jax: 0.10.0
libtpu: 0.0.40
codegen_flags: <defaults>
</compile_context>

<pallas_src>
import functools

import jax
import jax.numpy as jnp
import numpy as np
from jax.experimental import pallas as pl
from jax.experimental.pallas import tpu as pltpu

K = 5          # conv kernel size
PAD = 2        # conv padding
S1 = 28        # input spatial size (fc1_input_dim = conv2_width*7*7 forces 28x28 inputs)
W1P = S1 + 2 * PAD                   # 32   padded row stride, stage 1
F1W = S1 * W1P                       # 896  flat conv1 output width (valid cols: x < 28)
FLAT1 = (S1 + 2 * PAD + 1) * W1P     # 1056 flat padded conv1 input (+1 zero row for deep taps)

S2 = S1 // 2                         # 14
W2P = S2 + 2 * PAD                   # 18
F2W = S2 * W2P                       # 252  flat conv2 output width (valid cols: x < 14)
F2WP = 256                           # conv2 output width padded to a 128-lane multiple
FLAT2 = (S2 + 2 * PAD + 1) * W2P     # 342  flat padded conv2 input

S3 = S2 // 2                         # 7
NFEAT = S3 * S3                      # 49
B_TILE = 8                           # images per grid step

# --- static invariants the flat-layout / selection-matrix construction relies on -------------
assert F1W % 128 == 0 and F2WP % 128 == 0                      # roll widths are lane aligned
assert (K - 1) * W1P + (K - 1) + F1W <= FLAT1                  # conv1 im2col taps in bounds
assert (K - 1) * W2P + (K - 1) + F2WP <= FLAT2                 # conv2 im2col taps in bounds
assert 2 * (S2 - 1) * W1P + 2 * (S2 - 1) + W1P + 1 < F1W       # pool1 taps valid + unwrapped
assert 2 * (S3 - 1) * W2P + 2 * (S3 - 1) + W2P + 1 < F2W       # pool2 taps valid
assert 2 * (S3 - 1) * W2P + 2 * (S3 - 1) < F2WP - (W2P + 1)    # pool2 taps unwrapped at F2WP
assert (S2 - 1 + PAD) * W2P + (S2 - 1 + PAD) < FLAT2           # sel1 scatter in bounds


def _round_up(v, m):
    return ((v + m - 1) // m) * m


def _make_sel1():
    """(F1W, FLAT2) 0/1 gather: pooled conv1 pixels -> zero-padded flat conv2 input."""
    sel = np.zeros((F1W, FLAT2), np.float32)
    for y in range(S2):
        for x in range(S2):
            p = (2 * y) * W1P + 2 * x
            q = (y + PAD) * W2P + (x + PAD)
            sel[p, q] = 1.0
    return sel


# ------------------------------------ fused kernel ------------------------------------
def _make_kernel(b_tile):
    B = b_tile

    def shift(v, k):
        # y[:, p] = v[:, (p + k) % W] via the XLU rotate slot (off the VALU/store path).
        return pltpu.roll(v, v.shape[-1] - k, axis=1)

    def pool4max(a, wstride):
        # 2x2 window max; wrapped tails only land in columns that are never gathered.
        return jnp.maximum(jnp.maximum(a, shift(a, 1)),
                           jnp.maximum(shift(a, wstride), shift(a, wstride + 1)))

    def im2col(pf, wstride, fwidth):
        # every 5x5 tap of the flat padded plane is a contiguous lane slice
        cols = [pf[:, kh * wstride + kw: kh * wstride + kw + fwidth]
                for kh in range(K) for kw in range(K)]
        return jnp.concatenate(cols, axis=0)

    def kernel(xp_ref, w1_ref, b1_ref, sel1_ref, w2_ref, b2_ref,
               g_ref, bfc1_ref, wfc2_ref, bfc2_ref, out_ref):
        # xp_ref:  (B*Cin, 1056) f32  pre-padded flat images, rows (b, ci)
        # w1_ref:  (B*C1, 25*B*Cin)  bf16 block-diagonal conv1 weight, output rows (c1, b)
        # sel1_ref:(896, 342)        bf16 pool1 gather + re-pad
        # w2_ref:  (B*C2, 25*B*C1)   bf16 block-diagonal conv2 weight, output rows (c2, b)
        # g_ref:   (C2*256, 128)     bf16 fused pool2-gather + flatten + fc1 weight
        # wfc2_ref:(128, 128)        bf16 fc_logits weight (padded, transposed)
        # out_ref: (B, 128)          f32 logits (lane-dense)
        pf1 = xp_ref[...]                                             # (B*Cin, 1056) f32

        # conv1 -> relu -> 2x2 window max
        col1 = im2col(pf1, W1P, F1W).astype(jnp.bfloat16)             # (25*B*Cin, 896)
        a1 = jnp.dot(w1_ref[...], col1, preferred_element_type=jnp.float32)
        a1 = jnp.maximum(a1 + b1_ref[...], 0.0)                       # (B*C1, 896) f32
        m1 = pool4max(a1, W1P)

        # pool1 gather + zero re-pad for conv2 (one MXU op)
        pf2 = jnp.dot(m1.astype(jnp.bfloat16), sel1_ref[...],
                      preferred_element_type=jnp.float32)             # (B*C1, 342) f32

        # conv2 -> relu -> 2x2 window max (width padded to 256 lanes)
        col2 = im2col(pf2, W2P, F2WP).astype(jnp.bfloat16)            # (25*B*C1, 256)
        a2 = jnp.dot(w2_ref[...], col2, preferred_element_type=jnp.float32)
        a2 = jnp.maximum(a2 + b2_ref[...], 0.0)                       # (B*C2, 256) f32
        m2 = pool4max(a2, W2P)

        # (B*C2, 256) channel-major rows -> (B, C2*256) lane-dense (vreg-aligned blocks),
        # then pool2-gather + NCHW flatten + fc1 as a single matmul against G.
        c2 = m2.shape[0] // B
        m2w = jnp.concatenate([m2[c * B:(c + 1) * B, :] for c in range(c2)], axis=1)
        h1 = jnp.dot(m2w.astype(jnp.bfloat16), g_ref[...],
                     preferred_element_type=jnp.float32)
        h1 = jnp.maximum(h1 + bfc1_ref[...], 0.0)                     # (B, 128) f32

        logits = jnp.dot(h1.astype(jnp.bfloat16), wfc2_ref[...],
                         preferred_element_type=jnp.float32) + bfc2_ref[...]
        out_ref[...] = logits                                         # lane-dense (B, 128) store

    return kernel


# --------------------------------- model plumbing ---------------------------------
def init_params(key, in_channels, conv1_width, conv2_width, fc1_width, class_count):
    ks = jax.random.split(key, 5)

    def kaiming_normal(k, shape, fan_in):
        return jax.random.normal(k, shape, jnp.float32) * jnp.sqrt(2.0 / fan_in)

    fc1_in = conv2_width * S3 * S3
    bound = 1.0 / np.sqrt(fc1_width)  # PyTorch default Linear reset for fc_logits
    return {
        "w_conv1": kaiming_normal(ks[0], (conv1_width, in_channels, K, K), in_channels * K * K),
        "b_conv1": jnp.zeros((conv1_width,), jnp.float32),
        "w_conv2": kaiming_normal(ks[1], (conv2_width, conv1_width, K, K), conv1_width * K * K),
        "b_conv2": jnp.zeros((conv2_width,), jnp.float32),
        "w_fc1": kaiming_normal(ks[2], (fc1_width, fc1_in), fc1_in),
        "b_fc1": jnp.zeros((fc1_width,), jnp.float32),
        "w_fc2": jax.random.uniform(ks[3], (class_count, fc1_width), jnp.float32, -bound, bound),
        "b_fc2": jax.random.uniform(ks[4], (class_count,), jnp.float32, -bound, bound),
    }


def prepare_kernel_params(params, b_tile=B_TILE):
    """One-time re-layout of the PyTorch-style parameters into kernel-friendly form."""
    w1 = np.asarray(params["w_conv1"], np.float32)     # (C1, Cin, 5, 5)
    b1 = np.asarray(params["b_conv1"], np.float32)
    w2 = np.asarray(params["w_conv2"], np.float32)     # (C2, C1, 5, 5)
    b2 = np.asarray(params["b_conv2"], np.float32)
    wfc1 = np.asarray(params["w_fc1"], np.float32)     # (F1, C2*49)
    bfc1 = np.asarray(params["b_fc1"], np.float32)
    wfc2 = np.asarray(params["w_fc2"], np.float32)     # (NC, F1)
    bfc2 = np.asarray(params["b_fc2"], np.float32)

    c1, cin = w1.shape[0], w1.shape[1]
    c2 = w2.shape[0]
    f1 = wfc1.shape[0]
    nc = wfc2.shape[0]
    f1p = _round_up(f1, 128)
    ncp = _round_up(nc, 128)
    B = b_tile
    bidx = np.arange(B)

    # block-diagonal conv1 weight: col1 rows (tap, b, ci) -> output rows (c1, b)
    w1b = np.zeros((B * c1, K * K * B * cin), np.float32)
    for co in range(c1):
        for ci in range(cin):
            for kh in range(K):
                for kw in range(K):
                    t = kh * K + kw
                    w1b[co * B + bidx, t * B * cin + bidx * cin + ci] = w1[co, ci, kh, kw]
    b1b = np.repeat(b1, B).reshape(B * c1, 1)

    # block-diagonal conv2 weight: col2 rows (tap, c1, b) -> output rows (c2, b)
    w2b = np.zeros((B * c2, K * K * B * c1), np.float32)
    for co in range(c2):
        for ci in range(c1):
            for kh in range(K):
                for kw in range(K):
                    t = kh * K + kw
                    w2b[co * B + bidx, t * B * c1 + ci * B + bidx] = w2[co, ci, kh, kw]
    b2b = np.repeat(b2, B).reshape(B * c2, 1)

    # fused pool2-gather + flatten + fc1 weight: G[c*256 + pool_base(y,x), f] = Wfc1[f, c*49+y*7+x]
    g = np.zeros((c2 * F2WP, f1p), np.float32)
    for c in range(c2):
        for y in range(S3):
            for x in range(S3):
                p = (2 * y) * W2P + 2 * x
                s = y * S3 + x
                g[c * F2WP + p, :f1] = wfc1[:, c * NFEAT + s]

    bfc1k = np.zeros((1, f1p), np.float32)
    bfc1k[0, :f1] = bfc1
    wfc2k = np.zeros((f1p, ncp), np.float32)
    wfc2k[:f1, :nc] = wfc2.T
    bfc2k = np.zeros((1, ncp), np.float32)
    bfc2k[0, :nc] = bfc2

    return {
        "w1b": jnp.asarray(w1b, jnp.bfloat16),
        "b1b": jnp.asarray(b1b, jnp.float32),
        "sel1": jnp.asarray(_make_sel1(), jnp.bfloat16),
        "w2b": jnp.asarray(w2b, jnp.bfloat16),
        "b2b": jnp.asarray(b2b, jnp.float32),
        "g": jnp.asarray(g, jnp.bfloat16),
        "bfc1": jnp.asarray(bfc1k, jnp.float32),
        "wfc2": jnp.asarray(wfc2k, jnp.bfloat16),
        "bfc2": jnp.asarray(bfc2k, jnp.float32),
    }


@functools.partial(jax.jit, static_argnames=("class_count",))
def forward(kparams, x, *, class_count):
    n, cin, hh, ww = x.shape
    assert hh == S1 and ww == S1, "model requires 28x28 inputs (fc1_input_dim = conv2_width*7*7)"

    # one-time, lane-dense padding in the wrapper (no in-kernel scatter):
    #   pad batch to a multiple of B_TILE; pad spatial to the flat (33, 32) plane; flatten.
    npad = _round_up(max(n, B_TILE), B_TILE)
    xp = jnp.pad(x, ((0, npad - n), (0, 0), (PAD, PAD + 1), (PAD, PAD)))
    xflat = xp.reshape(npad * cin, FLAT1)

    ncp = kparams["wfc2"].shape[1]
    ntiles = npad // B_TILE

    out = pl.pallas_call(
        _make_kernel(B_TILE),
        out_shape=jax.ShapeDtypeStruct((npad, ncp), jnp.float32),
        grid=(ntiles,),
        in_specs=[
            pl.BlockSpec((B_TILE * cin, FLAT1), lambda i: (i, 0)),
            # constant (grid-invariant) operand blocks; small enough that default
            # double-buffering is harmless -- use pipeline_mode=pl.Buffered(1) if widths grow.
            pl.BlockSpec(kparams["w1b"].shape, lambda i: (0, 0)),
            pl.BlockSpec(kparams["b1b"].shape, lambda i: (0, 0)),
            pl.BlockSpec(kparams["sel1"].shape, lambda i: (0, 0)),
            pl.BlockSpec(kparams["w2b"].shape, lambda i: (0, 0)),
            pl.BlockSpec(kparams["b2b"].shape, lambda i: (0, 0)),
            pl.BlockSpec(kparams["g"].shape, lambda i: (0, 0)),
            pl.BlockSpec(kparams["bfc1"].shape, lambda i: (0, 0)),
            pl.BlockSpec(kparams["wfc2"].shape, lambda i: (0, 0)),
            pl.BlockSpec(kparams["bfc2"].shape, lambda i: (0, 0)),
        ],
        out_specs=pl.BlockSpec((B_TILE, ncp), lambda i: (i, 0)),
        compiler_params=pltpu.CompilerParams(dimension_semantics=("parallel",)),
    )(xflat, kparams["w1b"], kparams["b1b"], kparams["sel1"], kparams["w2b"],
      kparams["b2b"], kparams["g"], kparams["bfc1"], kparams["wfc2"], kparams["bfc2"])

    return out[:n, :class_count]


def ref_forward(params, x):
    def conv(x, w, b):
        y = jax.lax.conv_general_dilated(
            x, w, (1, 1), ((PAD, PAD), (PAD, PAD)),
            dimension_numbers=("NCHW", "OIHW", "NCHW"))
        return jax.nn.relu(y + b[None, :, None, None])

    def pool(x):
        return jax.lax.reduce_window(x, -jnp.inf, jax.lax.max,
                                     (1, 1, 2, 2), (1, 1, 2, 2), "VALID")

    h = pool(conv(x, params["w_conv1"], params["b_conv1"]))
    h = pool(conv(h, params["w_conv2"], params["b_conv2"]))
    h = h.reshape(h.shape[0], -1)
    h = jax.nn.relu(h @ params["w_fc1"].T + params["b_fc1"])
    return h @ params["w_fc2"].T + params["b_fc2"]


if __name__ == "__main__":
    # MNIST-style config: spatial must be 28x28 (fc1_input_dim = conv2_width * 7 * 7).
    batch, in_channels = 12, 1                       # 12 also exercises the batch-padding path
    conv1_width, conv2_width, fc1_width, class_count = 4, 8, 32, 10

    key = jax.random.PRNGKey(0)
    kx, kp = jax.random.split(key)
    x = jax.random.normal(kx, (batch, in_channels, S1, S1), jnp.float32)
    params = init_params(kp, in_channels, conv1_width, conv2_width, fc1_width, class_count)
    kparams = prepare_kernel_params(params)

    logits = forward(kparams, x, class_count=class_count)
    logits = jax.block_until_ready(logits)

    ref = ref_forward(params, x)
    # bf16 MXU operands (vs. the f32 reference) leave ~1e-2-scale absolute error on the logits.
    np.testing.assert_allclose(np.asarray(logits), np.asarray(ref), rtol=5e-2, atol=1e-1)
    print("KERNEL_OK")
</pallas_src>

<mosaic_0001>
module attributes {stable_mosaic.version = 11 : i64} {
  func.func @kernel(%arg0: i32, %arg1: memref<8x1056xf32, #tpu.memory_space<vmem>>, %arg2: memref<32x200xbf16, #tpu.memory_space<vmem>>, %arg3: memref<32x1xf32, #tpu.memory_space<vmem>>, %arg4: memref<896x342xbf16, #tpu.memory_space<vmem>>, %arg5: memref<64x800xbf16, #tpu.memory_space<vmem>>, %arg6: memref<64x1xf32, #tpu.memory_space<vmem>>, %arg7: memref<2048x128xbf16, #tpu.memory_space<vmem>>, %arg8: memref<1x128xf32, #tpu.memory_space<vmem>>, %arg9: memref<128x128xbf16, #tpu.memory_space<vmem>>, %arg10: memref<1x128xf32, #tpu.memory_space<vmem>>, %arg11: memref<8x128xf32, #tpu.memory_space<vmem>>) attributes {dimension_semantics = [#tpu.dimension_semantics<parallel>], iteration_bounds = array<i64: 2>, scalar_prefetch = 0 : i64, scratch_operands = 0 : i64, tpu.core_type = #tpu.core_type<tc>, window_params = [{transform_indices = @transform_0, window_bounds = array<i64: 8, 1056>}, {pipeline_mode = #tpu.pipeline_mode<synchronous>, transform_indices = @transform_1, window_bounds = array<i64: 32, 200>}, {pipeline_mode = #tpu.pipeline_mode<synchronous>, transform_indices = @transform_2, window_bounds = array<i64: 32, 1>}, {pipeline_mode = #tpu.pipeline_mode<synchronous>, transform_indices = @transform_3, window_bounds = array<i64: 896, 342>}, {pipeline_mode = #tpu.pipeline_mode<synchronous>, transform_indices = @transform_4, window_bounds = array<i64: 64, 800>}, {pipeline_mode = #tpu.pipeline_mode<synchronous>, transform_indices = @transform_5, window_bounds = array<i64: 64, 1>}, {pipeline_mode = #tpu.pipeline_mode<synchronous>, transform_indices = @transform_6, window_bounds = array<i64: 2048, 128>}, {pipeline_mode = #tpu.pipeline_mode<synchronous>, transform_indices = @transform_7, window_bounds = array<i64: 1, 128>}, {pipeline_mode = #tpu.pipeline_mode<synchronous>, transform_indices = @transform_8, window_bounds = array<i64: 128, 128>}, {pipeline_mode = #tpu.pipeline_mode<synchronous>, transform_indices = @transform_9, window_bounds = array<i64: 1, 128>}, {transform_indices = @transform_10, window_bounds = array<i64: 8, 128>}]} {
    %c0 = arith.constant 0 : index
    %c0_0 = arith.constant 0 : index
    %0 = vector.load %arg1[%c0, %c0_0] : memref<8x1056xf32, #tpu.memory_space<vmem>>, vector<8x1056xf32>
    %1 = vector.extract_strided_slice %0 {offsets = [0, 0], sizes = [8, 896], strides = [1, 1]} : vector<8x1056xf32> to vector<8x896xf32>
    %2 = vector.extract_strided_slice %0 {offsets = [0, 1], sizes = [8, 896], strides = [1, 1]} : vector<8x1056xf32> to vector<8x896xf32>
    %3 = vector.extract_strided_slice %0 {offsets = [0, 2], sizes = [8, 896], strides = [1, 1]} : vector<8x1056xf32> to vector<8x896xf32>
    %4 = vector.extract_strided_slice %0 {offsets = [0, 3], sizes = [8, 896], strides = [1, 1]} : vector<8x1056xf32> to vector<8x896xf32>
    %5 = vector.extract_strided_slice %0 {offsets = [0, 4], sizes = [8, 896], strides = [1, 1]} : vector<8x1056xf32> to vector<8x896xf32>
    %6 = vector.extract_strided_slice %0 {offsets = [0, 32], sizes = [8, 896], strides = [1, 1]} : vector<8x1056xf32> to vector<8x896xf32>
    %7 = vector.extract_strided_slice %0 {offsets = [0, 33], sizes = [8, 896], strides = [1, 1]} : vector<8x1056xf32> to vector<8x896xf32>
    %8 = vector.extract_strided_slice %0 {offsets = [0, 34], sizes = [8, 896], strides = [1, 1]} : vector<8x1056xf32> to vector<8x896xf32>
    %9 = vector.extract_strided_slice %0 {offsets = [0, 35], sizes = [8, 896], strides = [1, 1]} : vector<8x1056xf32> to vector<8x896xf32>
    %10 = vector.extract_strided_slice %0 {offsets = [0, 36], sizes = [8, 896], strides = [1, 1]} : vector<8x1056xf32> to vector<8x896xf32>
    %11 = vector.extract_strided_slice %0 {offsets = [0, 64], sizes = [8, 896], strides = [1, 1]} : vector<8x1056xf32> to vector<8x896xf32>
    %12 = vector.extract_strided_slice %0 {offsets = [0, 65], sizes = [8, 896], strides = [1, 1]} : vector<8x1056xf32> to vector<8x896xf32>
    %13 = vector.extract_strided_slice %0 {offsets = [0, 66], sizes = [8, 896], strides = [1, 1]} : vector<8x1056xf32> to vector<8x896xf32>
    %14 = vector.extract_strided_slice %0 {offsets = [0, 67], sizes = [8, 896], strides = [1, 1]} : vector<8x1056xf32> to vector<8x896xf32>
    %15 = vector.extract_strided_slice %0 {offsets = [0, 68], sizes = [8, 896], strides = [1, 1]} : vector<8x1056xf32> to vector<8x896xf32>
    %16 = vector.extract_strided_slice %0 {offsets = [0, 96], sizes = [8, 896], strides = [1, 1]} : vector<8x1056xf32> to vector<8x896xf32>
    %17 = vector.extract_strided_slice %0 {offsets = [0, 97], sizes = [8, 896], strides = [1, 1]} : vector<8x1056xf32> to vector<8x896xf32>
    %18 = vector.extract_strided_slice %0 {offsets = [0, 98], sizes = [8, 896], strides = [1, 1]} : vector<8x1056xf32> to vector<8x896xf32>
    %19 = vector.extract_strided_slice %0 {offsets = [0, 99], sizes = [8, 896], strides = [1, 1]} : vector<8x1056xf32> to vector<8x896xf32>
    %20 = vector.extract_strided_slice %0 {offsets = [0, 100], sizes = [8, 896], strides = [1, 1]} : vector<8x1056xf32> to vector<8x896xf32>
    %21 = vector.extract_strided_slice %0 {offsets = [0, 128], sizes = [8, 896], strides = [1, 1]} : vector<8x1056xf32> to vector<8x896xf32>
    %22 = vector.extract_strided_slice %0 {offsets = [0, 129], sizes = [8, 896], strides = [1, 1]} : vector<8x1056xf32> to vector<8x896xf32>
    %23 = vector.extract_strided_slice %0 {offsets = [0, 130], sizes = [8, 896], strides = [1, 1]} : vector<8x1056xf32> to vector<8x896xf32>
    %24 = vector.extract_strided_slice %0 {offsets = [0, 131], sizes = [8, 896], strides = [1, 1]} : vector<8x1056xf32> to vector<8x896xf32>
    %25 = vector.extract_strided_slice %0 {offsets = [0, 132], sizes = [8, 896], strides = [1, 1]} : vector<8x1056xf32> to vector<8x896xf32>
    %26 = tpu.concatenate %1, %2, %3, %4, %5, %6, %7, %8, %9, %10, %11, %12, %13, %14, %15, %16 in 0 : vector<8x896xf32>, vector<8x896xf32>, vector<8x896xf32>, vector<8x896xf32>, vector<8x896xf32>, vector<8x896xf32>, vector<8x896xf32>, vector<8x896xf32>, vector<8x896xf32>, vector<8x896xf32>, vector<8x896xf32>, vector<8x896xf32>, vector<8x896xf32>, vector<8x896xf32>, vector<8x896xf32>, vector<8x896xf32> -> vector<128x896xf32>
    %27 = tpu.concatenate %17, %18, %19, %20, %21, %22, %23, %24, %25 in 0 : vector<8x896xf32>, vector<8x896xf32>, vector<8x896xf32>, vector<8x896xf32>, vector<8x896xf32>, vector<8x896xf32>, vector<8x896xf32>, vector<8x896xf32>, vector<8x896xf32> -> vector<72x896xf32>
    %28 = tpu.concatenate %26, %27 in 0 : vector<128x896xf32>, vector<72x896xf32> -> vector<200x896xf32>
    %29 = arith.truncf %28 : vector<200x896xf32> to vector<200x896xbf16>
    %c0_1 = arith.constant 0 : index
    %c0_2 = arith.constant 0 : index
    %30 = vector.load %arg2[%c0_1, %c0_2] : memref<32x200xbf16, #tpu.memory_space<vmem>>, vector<32x200xbf16>
    %cst = arith.constant dense<0.000000e+00> : vector<32x896xf32>
    %31 = tpu.matmul %30, %29, %cst {dimension_numbers = #tpu.dot_dimension_numbers<[1], [0], [0], [1], [0, 0, 1, 1], [], []>} : vector<32x200xbf16>, vector<200x896xbf16>, vector<32x896xf32> -> vector<32x896xf32>
    %c0_3 = arith.constant 0 : index
    %c0_4 = arith.constant 0 : index
    %32 = vector.load %arg3[%c0_3, %c0_4] : memref<32x1xf32, #tpu.memory_space<vmem>>, vector<32x1xf32>
    %33 = vector.broadcast %32 : vector<32x1xf32> to vector<32x896xf32>
    %34 = arith.addf %31, %33 : vector<32x896xf32>
    %cst_5 = arith.constant 0.000000e+00 : f32
    %35 = vector.broadcast %cst_5 : f32 to vector<32x896xf32>
    %36 = arith.maximumf %34, %35 : vector<32x896xf32>
    %c895_i32 = arith.constant 895 : i32
    %37 = tpu.dynamic_rotate %36 by %c895_i32 dim 1 : vector<32x896xf32>, i32 -> vector<32x896xf32>
    %38 = arith.maximumf %36, %37 : vector<32x896xf32>
    %c864_i32 = arith.constant 864 : i32
    %39 = tpu.dynamic_rotate %36 by %c864_i32 dim 1 : vector<32x896xf32>, i32 -> vector<32x896xf32>
    %c863_i32 = arith.constant 863 : i32
    %40 = tpu.dynamic_rotate %36 by %c863_i32 dim 1 : vector<32x896xf32>, i32 -> vector<32x896xf32>
    %41 = arith.maximumf %39, %40 : vector<32x896xf32>
    %42 = arith.maximumf %38, %41 : vector<32x896xf32>
    %43 = arith.truncf %42 : vector<32x896xf32> to vector<32x896xbf16>
    %c0_6 = arith.constant 0 : index
    %c0_7 = arith.constant 0 : index
    %44 = vector.load %arg4[%c0_6, %c0_7] : memref<896x342xbf16, #tpu.memory_space<vmem>>, vector<896x342xbf16>
    %cst_8 = arith.constant dense<0.000000e+00> : vector<32x342xf32>
    %45 = tpu.matmul %43, %44, %cst_8 {dimension_numbers = #tpu.dot_dimension_numbers<[1], [0], [0], [1], [0, 0, 1, 1], [], []>} : vector<32x896xbf16>, vector<896x342xbf16>, vector<32x342xf32> -> vector<32x342xf32>
    %46 = vector.extract_strided_slice %45 {offsets = [0, 0], sizes = [32, 256], strides = [1, 1]} : vector<32x342xf32> to vector<32x256xf32>
    %47 = vector.extract_strided_slice %45 {offsets = [0, 1], sizes = [32, 256], strides = [1, 1]} : vector<32x342xf32> to vector<32x256xf32>
    %48 = vector.extract_strided_slice %45 {offsets = [0, 2], sizes = [32, 256], strides = [1, 1]} : vector<32x342xf32> to vector<32x256xf32>
    %49 = vector.extract_strided_slice %45 {offsets = [0, 3], sizes = [32, 256], strides = [1, 1]} : vector<32x342xf32> to vector<32x256xf32>
    %50 = vector.extract_strided_slice %45 {offsets = [0, 4], sizes = [32, 256], strides = [1, 1]} : vector<32x342xf32> to vector<32x256xf32>
    %51 = vector.extract_strided_slice %45 {offsets = [0, 18], sizes = [32, 256], strides = [1, 1]} : vector<32x342xf32> to vector<32x256xf32>
    %52 = vector.extract_strided_slice %45 {offsets = [0, 19], sizes = [32, 256], strides = [1, 1]} : vector<32x342xf32> to vector<32x256xf32>
    %53 = vector.extract_strided_slice %45 {offsets = [0, 20], sizes = [32, 256], strides = [1, 1]} : vector<32x342xf32> to vector<32x256xf32>
    %54 = vector.extract_strided_slice %45 {offsets = [0, 21], sizes = [32, 256], strides = [1, 1]} : vector<32x342xf32> to vector<32x256xf32>
    %55 = vector.extract_strided_slice %45 {offsets = [0, 22], sizes = [32, 256], strides = [1, 1]} : vector<32x342xf32> to vector<32x256xf32>
    %56 = vector.extract_strided_slice %45 {offsets = [0, 36], sizes = [32, 256], strides = [1, 1]} : vector<32x342xf32> to vector<32x256xf32>
    %57 = vector.extract_strided_slice %45 {offsets = [0, 37], sizes = [32, 256], strides = [1, 1]} : vector<32x342xf32> to vector<32x256xf32>
    %58 = vector.extract_strided_slice %45 {offsets = [0, 38], sizes = [32, 256], strides = [1, 1]} : vector<32x342xf32> to vector<32x256xf32>
    %59 = vector.extract_strided_slice %45 {offsets = [0, 39], sizes = [32, 256], strides = [1, 1]} : vector<32x342xf32> to vector<32x256xf32>
    %60 = vector.extract_strided_slice %45 {offsets = [0, 40], sizes = [32, 256], strides = [1, 1]} : vector<32x342xf32> to vector<32x256xf32>
    %61 = vector.extract_strided_slice %45 {offsets = [0, 54], sizes = [32, 256], strides = [1, 1]} : vector<32x342xf32> to vector<32x256xf32>
    %62 = vector.extract_strided_slice %45 {offsets = [0, 55], sizes = [32, 256], strides = [1, 1]} : vector<32x342xf32> to vector<32x256xf32>
    %63 = vector.extract_strided_slice %45 {offsets = [0, 56], sizes = [32, 256], strides = [1, 1]} : vector<32x342xf32> to vector<32x256xf32>
    %64 = vector.extract_strided_slice %45 {offsets = [0, 57], sizes = [32, 256], strides = [1, 1]} : vector<32x342xf32> to vector<32x256xf32>
    %65 = vector.extract_strided_slice %45 {offsets = [0, 58], sizes = [32, 256], strides = [1, 1]} : vector<32x342xf32> to vector<32x256xf32>
    %66 = vector.extract_strided_slice %45 {offsets = [0, 72], sizes = [32, 256], strides = [1, 1]} : vector<32x342xf32> to vector<32x256xf32>
    %67 = vector.extract_strided_slice %45 {offsets = [0, 73], sizes = [32, 256], strides = [1, 1]} : vector<32x342xf32> to vector<32x256xf32>
    %68 = vector.extract_strided_slice %45 {offsets = [0, 74], sizes = [32, 256], strides = [1, 1]} : vector<32x342xf32> to vector<32x256xf32>
    %69 = vector.extract_strided_slice %45 {offsets = [0, 75], sizes = [32, 256], strides = [1, 1]} : vector<32x342xf32> to vector<32x256xf32>
    %70 = vector.extract_strided_slice %45 {offsets = [0, 76], sizes = [32, 256], strides = [1, 1]} : vector<32x342xf32> to vector<32x256xf32>
    %71 = tpu.concatenate %46, %47, %48, %49, %50, %51, %52, %53, %54, %55, %56, %57, %58, %59, %60, %61 in 0 : vector<32x256xf32>, vector<32x256xf32>, vector<32x256xf32>, vector<32x256xf32>, vector<32x256xf32>, vector<32x256xf32>, vector<32x256xf32>, vector<32x256xf32>, vector<32x256xf32>, vector<32x256xf32>, vector<32x256xf32>, vector<32x256xf32>, vector<32x256xf32>, vector<32x256xf32>, vector<32x256xf32>, vector<32x256xf32> -> vector<512x256xf32>
    %72 = tpu.concatenate %62, %63, %64, %65, %66, %67, %68, %69, %70 in 0 : vector<32x256xf32>, vector<32x256xf32>, vector<32x256xf32>, vector<32x256xf32>, vector<32x256xf32>, vector<32x256xf32>, vector<32x256xf32>, vector<32x256xf32>, vector<32x256xf32> -> vector<288x256xf32>
    %73 = tpu.concatenate %71, %72 in 0 : vector<512x256xf32>, vector<288x256xf32> -> vector<800x256xf32>
    %74 = arith.truncf %73 : vector<800x256xf32> to vector<800x256xbf16>
    %c0_9 = arith.constant 0 : index
    %c0_10 = arith.constant 0 : index
    %75 = vector.load %arg5[%c0_9, %c0_10] : memref<64x800xbf16, #tpu.memory_space<vmem>>, vector<64x800xbf16>
    %cst_11 = arith.constant dense<0.000000e+00> : vector<64x256xf32>
    %76 = tpu.matmul %75, %74, %cst_11 {dimension_numbers = #tpu.dot_dimension_numbers<[1], [0], [0], [1], [0, 0, 1, 1], [], []>} : vector<64x800xbf16>, vector<800x256xbf16>, vector<64x256xf32> -> vector<64x256xf32>
    %c0_12 = arith.constant 0 : index
    %c0_13 = arith.constant 0 : index
    %77 = vector.load %arg6[%c0_12, %c0_13] : memref<64x1xf32, #tpu.memory_space<vmem>>, vector<64x1xf32>
    %78 = vector.broadcast %77 : vector<64x1xf32> to vector<64x256xf32>
    %79 = arith.addf %76, %78 : vector<64x256xf32>
    %cst_14 = arith.constant 0.000000e+00 : f32
    %80 = vector.broadcast %cst_14 : f32 to vector<64x256xf32>
    %81 = arith.maximumf %79, %80 : vector<64x256xf32>
    %c255_i32 = arith.constant 255 : i32
    %82 = tpu.dynamic_rotate %81 by %c255_i32 dim 1 : vector<64x256xf32>, i32 -> vector<64x256xf32>
    %83 = arith.maximumf %81, %82 : vector<64x256xf32>
    %c238_i32 = arith.constant 238 : i32
    %84 = tpu.dynamic_rotate %81 by %c238_i32 dim 1 : vector<64x256xf32>, i32 -> vector<64x256xf32>
    %c237_i32 = arith.constant 237 : i32
    %85 = tpu.dynamic_rotate %81 by %c237_i32 dim 1 : vector<64x256xf32>, i32 -> vector<64x256xf32>
    %86 = arith.maximumf %84, %85 : vector<64x256xf32>
    %87 = arith.maximumf %83, %86 : vector<64x256xf32>
    %88 = vector.extract_strided_slice %87 {offsets = [0, 0], sizes = [8, 256], strides = [1, 1]} : vector<64x256xf32> to vector<8x256xf32>
    %89 = vector.extract_strided_slice %87 {offsets = [8, 0], sizes = [8, 256], strides = [1, 1]} : vector<64x256xf32> to vector<8x256xf32>
    %90 = vector.extract_strided_slice %87 {offsets = [16, 0], sizes = [8, 256], strides = [1, 1]} : vector<64x256xf32> to vector<8x256xf32>
    %91 = vector.extract_strided_slice %87 {offsets = [24, 0], sizes = [8, 256], strides = [1, 1]} : vector<64x256xf32> to vector<8x256xf32>
    %92 = vector.extract_strided_slice %87 {offsets = [32, 0], sizes = [8, 256], strides = [1, 1]} : vector<64x256xf32> to vector<8x256xf32>
    %93 = vector.extract_strided_slice %87 {offsets = [40, 0], sizes = [8, 256], strides = [1, 1]} : vector<64x256xf32> to vector<8x256xf32>
    %94 = vector.extract_strided_slice %87 {offsets = [48, 0], sizes = [8, 256], strides = [1, 1]} : vector<64x256xf32> to vector<8x256xf32>
    %95 = vector.extract_strided_slice %87 {offsets = [56, 0], sizes = [8, 256], strides = [1, 1]} : vector<64x256xf32> to vector<8x256xf32>
    %96 = tpu.concatenate %88, %89, %90, %91, %92, %93, %94, %95 in 1 : vector<8x256xf32>, vector<8x256xf32>, vector<8x256xf32>, vector<8x256xf32>, vector<8x256xf32>, vector<8x256xf32>, vector<8x256xf32>, vector<8x256xf32> -> vector<8x2048xf32>
    %97 = arith.truncf %96 : vector<8x2048xf32> to vector<8x2048xbf16>
    %c0_15 = arith.constant 0 : index
    %c0_16 = arith.constant 0 : index
    %98 = vector.load %arg7[%c0_15, %c0_16] : memref<2048x128xbf16, #tpu.memory_space<vmem>>, vector<2048x128xbf16>
    %cst_17 = arith.constant dense<0.000000e+00> : vector<8x128xf32>
    %99 = tpu.matmul %97, %98, %cst_17 {dimension_numbers = #tpu.dot_dimension_numbers<[1], [0], [0], [1], [0, 0, 1, 1], [], []>} : vector<8x2048xbf16>, vector<2048x128xbf16>, vector<8x128xf32> -> vector<8x128xf32>
    %c0_18 = arith.constant 0 : index
    %c0_19 = arith.constant 0 : index
    %100 = vector.load %arg8[%c0_18, %c0_19] : memref<1x128xf32, #tpu.memory_space<vmem>>, vector<1x128xf32>
    %101 = vector.broadcast %100 : vector<1x128xf32> to vector<8x128xf32>
    %102 = arith.addf %99, %101 : vector<8x128xf32>
    %cst_20 = arith.constant 0.000000e+00 : f32
    %103 = vector.broadcast %cst_20 : f32 to vector<8x128xf32>
    %104 = arith.maximumf %102, %103 : vector<8x128xf32>
    %105 = arith.truncf %104 : vector<8x128xf32> to vector<8x128xbf16>
    %c0_21 = arith.constant 0 : index
    %c0_22 = arith.constant 0 : index
    %106 = vector.load %arg9[%c0_21, %c0_22] : memref<128x128xbf16, #tpu.memory_space<vmem>>, vector<128x128xbf16>
    %cst_23 = arith.constant dense<0.000000e+00> : vector<8x128xf32>
    %107 = tpu.matmul %105, %106, %cst_23 {dimension_numbers = #tpu.dot_dimension_numbers<[1], [0], [0], [1], [0, 0, 1, 1], [], []>} : vector<8x128xbf16>, vector<128x128xbf16>, vector<8x128xf32> -> vector<8x128xf32>
    %c0_24 = arith.constant 0 : index
    %c0_25 = arith.constant 0 : index
    %108 = vector.load %arg10[%c0_24, %c0_25] : memref<1x128xf32, #tpu.memory_space<vmem>>, vector<1x128xf32>
    %109 = vector.broadcast %108 : vector<1x128xf32> to vector<8x128xf32>
    %110 = arith.addf %107, %109 : vector<8x128xf32>
    %c0_26 = arith.constant 0 : index
    %c0_27 = arith.constant 0 : index
    %111 = vector.load %arg11[%c0_26, %c0_27] : memref<8x128xf32, #tpu.memory_space<vmem>>, vector<8x128xf32>
    tpu.vector_store %arg11[%c0_26, %c0_27], %110 {strides = array<i32>} : memref<8x128xf32, #tpu.memory_space<vmem>>, vector<8x128xf32>,
    return
  }
  func.func @transform_0(%arg0: i32) -> (i32, i32) {
    %c0_i32 = arith.constant 0 : i32
    %c0_i32_0 = arith.constant 0 : i32
    return %arg0, %c0_i32 : i32, i32
  }
  func.func @transform_1(%arg0: i32) -> (i32, i32) {
    %c0_i32 = arith.constant 0 : i32
    %c0_i32_0 = arith.constant 0 : i32
    %c0_i32_1 = arith.constant 0 : i32
    return %c0_i32, %c0_i32_0 : i32, i32
  }
  func.func @transform_2(%arg0: i32) -> (i32, i32) {
    %c0_i32 = arith.constant 0 : i32
    %c0_i32_0 = arith.constant 0 : i32
    %c0_i32_1 = arith.constant 0 : i32
    return %c0_i32, %c0_i32_0 : i32, i32
  }
  func.func @transform_3(%arg0: i32) -> (i32, i32) {
    %c0_i32 = arith.constant 0 : i32
    %c0_i32_0 = arith.constant 0 : i32
    %c0_i32_1 = arith.constant 0 : i32
    return %c0_i32, %c0_i32_0 : i32, i32
  }
  func.func @transform_4(%arg0: i32) -> (i32, i32) {
    %c0_i32 = arith.constant 0 : i32
    %c0_i32_0 = arith.constant 0 : i32
    %c0_i32_1 = arith.constant 0 : i32
    return %c0_i32, %c0_i32_0 : i32, i32
  }
  func.func @transform_5(%arg0: i32) -> (i32, i32) {
    %c0_i32 = arith.constant 0 : i32
    %c0_i32_0 = arith.constant 0 : i32
    %c0_i32_1 = arith.constant 0 : i32
    return %c0_i32, %c0_i32_0 : i32, i32
  }
  func.func @transform_6(%arg0: i32) -> (i32, i32) {
    %c0_i32 = arith.constant 0 : i32
    %c0_i32_0 = arith.constant 0 : i32
    %c0_i32_1 = arith.constant 0 : i32
    return %c0_i32, %c0_i32_0 : i32, i32
  }
  func.func @transform_7(%arg0: i32) -> (i32, i32) {
    %c0_i32 = arith.constant 0 : i32
    %c0_i32_0 = arith.constant 0 : i32
    %c0_i32_1 = arith.constant 0 : i32
    return %c0_i32, %c0_i32_0 : i32, i32
  }
  func.func @transform_8(%arg0: i32) -> (i32, i32) {
    %c0_i32 = arith.constant 0 : i32
    %c0_i32_0 = arith.constant 0 : i32
    %c0_i32_1 = arith.constant 0 : i32
    return %c0_i32, %c0_i32_0 : i32, i32
  }
  func.func @transform_9(%arg0: i32) -> (i32, i32) {
    %c0_i32 = arith.constant 0 : i32
    %c0_i32_0 = arith.constant 0 : i32
    %c0_i32_1 = arith.constant 0 : i32
    return %c0_i32, %c0_i32_0 : i32, i32
  }
  func.func @transform_10(%arg0: i32) -> (i32, i32) {
    %c0_i32 = arith.constant 0 : i32
    %c0_i32_0 = arith.constant 0 : i32
    return %arg0, %c0_i32 : i32, i32
  }
}

</mosaic_0001>

<llo_original>
// kernel: forward.1
$region0: #{forward.1}
  #allocation0 [shape = 'u32[]', space=smem, size = 0x4, offset = 0x4, fixed_abs, tag = 'smem constant byte address 0x4 - core index']
  #allocation1 [shape = 'u32[144,128]{1,0:T(1,128)}', space=vmem, size = 0x12000, scoped, tag = 'internal scratch']
  %s0 = inlined_call_operand.vmem [shape: f32[16,1056], index: 0, kind: input, shape index: {}]
  %s1 = inlined_call_operand.vmem [shape: bf16[32,200], index: 1, kind: input, shape index: {}]
  %s2 = inlined_call_operand.vmem [shape: f32[32,1], index: 2, kind: input, shape index: {}]
  %s3 = inlined_call_operand.vmem [shape: bf16[896,342], index: 3, kind: input, shape index: {}]
  %s4 = inlined_call_operand.vmem [shape: bf16[64,800], index: 4, kind: input, shape index: {}]
  %s5 = inlined_call_operand.vmem [shape: f32[64,1], index: 5, kind: input, shape index: {}]
  %s6 = inlined_call_operand.vmem [shape: bf16[2048,128], index: 6, kind: input, shape index: {}]
  %s7 = inlined_call_operand.vmem [shape: f32[1,128], index: 7, kind: input, shape index: {}]
  %s8 = inlined_call_operand.vmem [shape: bf16[128,128], index: 8, kind: input, shape index: {}]
  %s9 = inlined_call_operand.vmem [shape: f32[1,128], index: 9, kind: input, shape index: {}]
  %s10 = inlined_call_operand.hbm [shape: f32[16,128], index: 10, kind: output, shape index: {}]
  %s11 = sld [smem:[#allocation0]]
  $region73: #{forward.1} parent=0
    _
  %s13 = ssub.s32 1, %s11
  %s14 = scalar_select 0, %s13, %s11
  $region1: #{forward.1} parent=0
    #allocation2 [shape = 'u8[8192]{0}', space=vmem, size = 0x2000, scoped, tag = 'output window, operand 0']
    #allocation3 [shape = 's32[2]{0}', space=sflag, size = 0x8, scoped, tag = 'scoped memory for forward.1']
    %15 = vsyncpa [#allocation3], 0
    %s16 = scalar_lea.sflag [#allocation3], 1
    %17 = vsyncpa %s16, 0
    loop: start=0, step=1, limit=4
    $region2: #{forward.1} parent=1 // loop_pre_header
      _
    $region3: #{forward.1} parent=1 // loop_header
      %s19 = sphi 0, %s23
      %p20 = scmp.ge.s32.totalorder %s19, 4
      %s29 = sphi 0, %s31
      %s32 = sphi 0, %s29
      %s33 = sphi 0, %s32
      %s49 = sphi 0, %s33
      %s53 = sphi 0, %s53
      %s55 = sphi 0, %s53
      %s56 = sphi 0, %s55
      %s70 = sphi 0, %s56
      %s74 = sphi 0, %s74
      %s76 = sphi 0, %s74
      %s77 = sphi 0, %s76
      %s91 = sphi 0, %s77
      %s95 = sphi 0, %s95
      %s97 = sphi 0, %s95
      %s98 = sphi 0, %s97
      %s112 = sphi 0, %s98
      %s116 = sphi 0, %s116
      %s118 = sphi 0, %s116
      %s119 = sphi 0, %s118
      %s133 = sphi 0, %s119
      %s137 = sphi 0, %s137
      %s139 = sphi 0, %s137
      %s140 = sphi 0, %s139
      %s154 = sphi 0, %s140
      %s158 = sphi 0, %s158
      %s160 = sphi 0, %s158
      %s161 = sphi 0, %s160
      %s175 = sphi 0, %s161
      %s179 = sphi 0, %s179
      %s181 = sphi 0, %s179
      %s182 = sphi 0, %s181
      %s196 = sphi 0, %s182
      %s200 = sphi 0, %s200
      %s202 = sphi 0, %s200
      %s203 = sphi 0, %s202
      %s217 = sphi 0, %s203
      %s221 = sphi 0, %s221
      %s223 = sphi 0, %s221
      %s224 = sphi 0, %s223
      %s238 = sphi 0, %s224
      %s244 = sphi 0, %s246
      %s247 = sphi 0, %s244
      %s248 = sphi 0, %s247
      %s264 = sphi 0, %s248
    $region4: #{forward.1} parent=1 // loop_header_branch
      %22 = sbr.rel (%p20) target = $region8
    $region5: #{forward.1} parent=1 // loop_body
      %s24 = ssub.s32 %s19, 1
      %s25 = ssub.s32 %s19, 2
      %s26 = sadd.s32 %s19, 1
      %s27 = ssub.s32 %s19, %s26
      %p28 = scmp.eq.s32.totalorder %s27, 0
      %s30 = sadd.s32 %s29, 1
      %s31 = scalar_select %p28, %s29, %s30
      %p34 = pneg %p28
      %p35 = scmp.eq.s32.totalorder %s19, 1
      %p36 = por %p34, %p35
      %p37 = scmp.ne.s32.totalorder %s29, %s32
      %p38 = scmp.eq.s32.totalorder %s19, 0
      %p39 = por %p37, %p38
      %p40 = scmp.ne.s32.totalorder %s29, %s32
      %p41 = scmp.eq.s32.totalorder %s24, 1
      %p42 = por %p40, %p41
      %p43 = scmp.ne.s32.totalorder %s32, %s33
      %p44 = scmp.eq.s32.totalorder %s24, 0
      %p45 = por %p43, %p44
      %p46 = scmp.ne.s32.totalorder %s32, %s33
      %p47 = scmp.eq.s32.totalorder %s25, 1
      %p48 = por %p46, %p47
      %p50 = scmp.ne.s32.totalorder %s33, %s49
      %p51 = scmp.eq.s32.totalorder %s25, 0
      %p52 = por %p50, %p51
      %s54 = sadd.s32 %s53, 1
      %p57 = scmp.eq.s32.totalorder %s19, 1
      %p58 = scmp.ne.s32.totalorder %s53, %s55
      %p59 = scmp.eq.s32.totalorder %s19, 0
      %p60 = por %p58, %p59
      %p61 = scmp.ne.s32.totalorder %s53, %s55
      %p62 = scmp.eq.s32.totalorder %s24, 1
      %p63 = por %p61, %p62
      %p64 = scmp.ne.s32.totalorder %s55, %s56
      %p65 = scmp.eq.s32.totalorder %s24, 0
      %p66 = por %p64, %p65
      %p67 = scmp.ne.s32.totalorder %s55, %s56
      %p68 = scmp.eq.s32.totalorder %s25, 1
      %p69 = por %p67, %p68
      %p71 = scmp.ne.s32.totalorder %s56, %s70
      %p72 = scmp.eq.s32.totalorder %s25, 0
      %p73 = por %p71, %p72
      %s75 = sadd.s32 %s74, 1
      %p78 = scmp.eq.s32.totalorder %s19, 1
      %p79 = scmp.ne.s32.totalorder %s74, %s76
      %p80 = scmp.eq.s32.totalorder %s19, 0
      %p81 = por %p79, %p80
      %p82 = scmp.ne.s32.totalorder %s74, %s76
      %p83 = scmp.eq.s32.totalorder %s24, 1
      %p84 = por %p82, %p83
      %p85 = scmp.ne.s32.totalorder %s76, %s77
      %p86 = scmp.eq.s32.totalorder %s24, 0
      %p87 = por %p85, %p86
      %p88 = scmp.ne.s32.totalorder %s76, %s77
      %p89 = scmp.eq.s32.totalorder %s25, 1
      %p90 = por %p88, %p89
      %p92 = scmp.ne.s32.totalorder %s77, %s91
      %p93 = scmp.eq.s32.totalorder %s25, 0
      %p94 = por %p92, %p93
      %s96 = sadd.s32 %s95, 1
      %p99 = scmp.eq.s32.totalorder %s19, 1
      %p100 = scmp.ne.s32.totalorder %s95, %s97
      %p101 = scmp.eq.s32.totalorder %s19, 0
      %p102 = por %p100, %p101
      %p103 = scmp.ne.s32.totalorder %s95, %s97
      %p104 = scmp.eq.s32.totalorder %s24, 1
      %p105 = por %p103, %p104
      %p106 = scmp.ne.s32.totalorder %s97, %s98
      %p107 = scmp.eq.s32.totalorder %s24, 0
      %p108 = por %p106, %p107
      %p109 = scmp.ne.s32.totalorder %s97, %s98
      %p110 = scmp.eq.s32.totalorder %s25, 1
      %p111 = por %p109, %p110
      %p113 = scmp.ne.s32.totalorder %s98, %s112
      %p114 = scmp.eq.s32.totalorder %s25, 0
      %p115 = por %p113, %p114
      %s117 = sadd.s32 %s116, 1
      %p120 = scmp.eq.s32.totalorder %s19, 1
      %p121 = scmp.ne.s32.totalorder %s116, %s118
      %p122 = scmp.eq.s32.totalorder %s19, 0
      %p123 = por %p121, %p122
      %p124 = scmp.ne.s32.totalorder %s116, %s118
      %p125 = scmp.eq.s32.totalorder %s24, 1
      %p126 = por %p124, %p125
      %p127 = scmp.ne.s32.totalorder %s118, %s119
      %p128 = scmp.eq.s32.totalorder %s24, 0
      %p129 = por %p127, %p128
      %p130 = scmp.ne.s32.totalorder %s118, %s119
      %p131 = scmp.eq.s32.totalorder %s25, 1
      %p132 = por %p130, %p131
      %p134 = scmp.ne.s32.totalorder %s119, %s133
      %p135 = scmp.eq.s32.totalorder %s25, 0
      %p136 = por %p134, %p135
      %s138 = sadd.s32 %s137, 1
      %p141 = scmp.eq.s32.totalorder %s19, 1
      %p142 = scmp.ne.s32.totalorder %s137, %s139
      %p143 = scmp.eq.s32.totalorder %s19, 0
      %p144 = por %p142, %p143
      %p145 = scmp.ne.s32.totalorder %s137, %s139
      %p146 = scmp.eq.s32.totalorder %s24, 1
      %p147 = por %p145, %p146
      %p148 = scmp.ne.s32.totalorder %s139, %s140
      %p149 = scmp.eq.s32.totalorder %s24, 0
      %p150 = por %p148, %p149
      %p151 = scmp.ne.s32.totalorder %s139, %s140
      %p152 = scmp.eq.s32.totalorder %s25, 1
      %p153 = por %p151, %p152
      %p155 = scmp.ne.s32.totalorder %s140, %s154
      %p156 = scmp.eq.s32.totalorder %s25, 0
      %p157 = por %p155, %p156
      %s159 = sadd.s32 %s158, 1
      %p162 = scmp.eq.s32.totalorder %s19, 1
      %p163 = scmp.ne.s32.totalorder %s158, %s160
      %p164 = scmp.eq.s32.totalorder %s19, 0
      %p165 = por %p163, %p164
      %p166 = scmp.ne.s32.totalorder %s158, %s160
      %p167 = scmp.eq.s32.totalorder %s24, 1
      %p168 = por %p166, %p167
      %p169 = scmp.ne.s32.totalorder %s160, %s161
      %p170 = scmp.eq.s32.totalorder %s24, 0
      %p171 = por %p169, %p170
      %p172 = scmp.ne.s32.totalorder %s160, %s161
      %p173 = scmp.eq.s32.totalorder %s25, 1
      %p174 = por %p172, %p173
      %p176 = scmp.ne.s32.totalorder %s161, %s175
      %p177 = scmp.eq.s32.totalorder %s25, 0
      %p178 = por %p176, %p177
      %s180 = sadd.s32 %s179, 1
      %p183 = scmp.eq.s32.totalorder %s19, 1
      %p184 = scmp.ne.s32.totalorder %s179, %s181
      %p185 = scmp.eq.s32.totalorder %s19, 0
      %p186 = por %p184, %p185
      %p187 = scmp.ne.s32.totalorder %s179, %s181
      %p188 = scmp.eq.s32.totalorder %s24, 1
      %p189 = por %p187, %p188
      %p190 = scmp.ne.s32.totalorder %s181, %s182
      %p191 = scmp.eq.s32.totalorder %s24, 0
      %p192 = por %p190, %p191
      %p193 = scmp.ne.s32.totalorder %s181, %s182
      %p194 = scmp.eq.s32.totalorder %s25, 1
      %p195 = por %p193, %p194
      %p197 = scmp.ne.s32.totalorder %s182, %s196
      %p198 = scmp.eq.s32.totalorder %s25, 0
      %p199 = por %p197, %p198
      %s201 = sadd.s32 %s200, 1
      %p204 = scmp.eq.s32.totalorder %s19, 1
      %p205 = scmp.ne.s32.totalorder %s200, %s202
      %p206 = scmp.eq.s32.totalorder %s19, 0
      %p207 = por %p205, %p206
      %p208 = scmp.ne.s32.totalorder %s200, %s202
      %p209 = scmp.eq.s32.totalorder %s24, 1
      %p210 = por %p208, %p209
      %p211 = scmp.ne.s32.totalorder %s202, %s203
      %p212 = scmp.eq.s32.totalorder %s24, 0
      %p213 = por %p211, %p212
      %p214 = scmp.ne.s32.totalorder %s202, %s203
      %p215 = scmp.eq.s32.totalorder %s25, 1
      %p216 = por %p214, %p215
      %p218 = scmp.ne.s32.totalorder %s203, %s217
      %p219 = scmp.eq.s32.totalorder %s25, 0
      %p220 = por %p218, %p219
      %s222 = sadd.s32 %s221, 1
      %p225 = scmp.eq.s32.totalorder %s19, 1
      %p226 = scmp.ne.s32.totalorder %s221, %s223
      %p227 = scmp.eq.s32.totalorder %s19, 0
      %p228 = por %p226, %p227
      %p229 = scmp.ne.s32.totalorder %s221, %s223
      %p230 = scmp.eq.s32.totalorder %s24, 1
      %p231 = por %p229, %p230
      %p232 = scmp.ne.s32.totalorder %s223, %s224
      %p233 = scmp.eq.s32.totalorder %s24, 0
      %p234 = por %p232, %p233
      %p235 = scmp.ne.s32.totalorder %s223, %s224
      %p236 = scmp.eq.s32.totalorder %s25, 1
      %p237 = por %p235, %p236
      %p239 = scmp.ne.s32.totalorder %s224, %s238
      %p240 = scmp.eq.s32.totalorder %s25, 0
      %p241 = por %p239, %p240
      %s242 = ssub.s32 %s19, %s26
      %p243 = scmp.eq.s32.totalorder %s242, 0
      %s245 = sadd.s32 %s244, 1
      %s246 = scalar_select %p243, %s244, %s245
      %p249 = pneg %p243
      %p250 = scmp.eq.s32.totalorder %s19, 1
      %p251 = por %p249, %p250
      %p252 = scmp.ne.s32.totalorder %s244, %s247
      %p253 = scmp.eq.s32.totalorder %s19, 0
      %p254 = por %p252, %p253
      %p255 = scmp.ne.s32.totalorder %s244, %s247
      %p256 = scmp.eq.s32.totalorder %s24, 1
      %p257 = por %p255, %p256
      %p258 = scmp.ne.s32.totalorder %s247, %s248
      %p259 = scmp.eq.s32.totalorder %s24, 0
      %p260 = por %p258, %p259
      %p261 = scmp.ne.s32.totalorder %s247, %s248
      %p262 = scmp.eq.s32.totalorder %s25, 1
      %p263 = por %p261, %p262
      %p265 = scmp.ne.s32.totalorder %s248, %s264
      %p266 = scmp.eq.s32.totalorder %s25, 0
      %p267 = por %p265, %p266
      %p268 = scmp.le.s32.totalorder 1, %s19
      %p269 = scmp.lt.s32.totalorder %s19, 3
      %p270 = pnand %p268, %p269
      %p271 = pneg %p270
      // Predicated region
      $region9: #{forward.1} parent=5 // pred_check
        _
      $region10: #{forward.1} parent=5 // pred_check_branch
        %273 = sbr.rel (%p270) target = $region12
      $region11: #{forward.1} parent=5 // pred_region
        %s274 = ssub.s32 %s19, 1
        // Predicated region
        $region13: #{forward.1} parent=11 // pred_check
          %p275 = pneg %p66
        $region14: #{forward.1} parent=11 // pred_check_branch
          %277 = sbr.rel (%p275) target = $region16
        $region15: #{forward.1} parent=11 // pred_region
          _
        $region16: #{forward.1} parent=11 // pred_fallthru
          _
        // Predicated region
        $region17: #{forward.1} parent=11 // pred_check
          %p278 = pneg %p87
        $region18: #{forward.1} parent=11 // pred_check_branch
          %280 = sbr.rel (%p278) target = $region20
        $region19: #{forward.1} parent=11 // pred_region
          _
        $region20: #{forward.1} parent=11 // pred_fallthru
          _
        // Predicated region
        $region21: #{forward.1} parent=11 // pred_check
          %p281 = pneg %p108
        $region22: #{forward.1} parent=11 // pred_check_branch
          %283 = sbr.rel (%p281) target = $region24
        $region23: #{forward.1} parent=11 // pred_region
          _
        $region24: #{forward.1} parent=11 // pred_fallthru
          _
        // Predicated region
        $region25: #{forward.1} parent=11 // pred_check
          %p284 = pneg %p129
        $region26: #{forward.1} parent=11 // pred_check_branch
          %286 = sbr.rel (%p284) target = $region28
        $region27: #{forward.1} parent=11 // pred_region
          _
        $region28: #{forward.1} parent=11 // pred_fallthru
          _
        // Predicated region
        $region29: #{forward.1} parent=11 // pred_check
          %p287 = pneg %p150
        $region30: #{forward.1} parent=11 // pred_check_branch
          %289 = sbr.rel (%p287) target = $region32
        $region31: #{forward.1} parent=11 // pred_region
          _
        $region32: #{forward.1} parent=11 // pred_fallthru
          _
        // Predicated region
        $region33: #{forward.1} parent=11 // pred_check
          %p290 = pneg %p171
        $region34: #{forward.1} parent=11 // pred_check_branch
          %292 = sbr.rel (%p290) target = $region36
        $region35: #{forward.1} parent=11 // pred_region
          _
        $region36: #{forward.1} parent=11 // pred_fallthru
          _
        // Predicated region
        $region37: #{forward.1} parent=11 // pred_check
          %p293 = pneg %p192
        $region38: #{forward.1} parent=11 // pred_check_branch
          %295 = sbr.rel (%p293) target = $region40
        $region39: #{forward.1} parent=11 // pred_region
          _
        $region40: #{forward.1} parent=11 // pred_fallthru
          _
        // Predicated region
        $region41: #{forward.1} parent=11 // pred_check
          %p296 = pneg %p213
        $region42: #{forward.1} parent=11 // pred_check_branch
          %298 = sbr.rel (%p296) target = $region44
        $region43: #{forward.1} parent=11 // pred_region
          _
        $region44: #{forward.1} parent=11 // pred_fallthru
          _
        // Predicated region
        $region45: #{forward.1} parent=11 // pred_check
          %p299 = pneg %p234
        $region46: #{forward.1} parent=11 // pred_check_branch
          %301 = sbr.rel (%p299) target = $region48
        $region47: #{forward.1} parent=11 // pred_region
          _
        $region48: #{forward.1} parent=11 // pred_fallthru
          _
      $region12: #{forward.1} parent=5 // pred_fallthru
        _
      %p302 = scmp.lt.s32.totalorder %s19, 2
      // Predicated region
      $region49: #{forward.1} parent=5 // pred_check
        %p303 = pneg %p302
      $region50: #{forward.1} parent=5 // pred_check_branch
        %305 = sbr.rel (%p303) target = $region52
      $region51: #{forward.1} parent=5 // pred_region
        // Predicated region
        $region53: #{forward.1} parent=51 // pred_check
          %p306 = pneg %p39
        $region54: #{forward.1} parent=51 // pred_check_branch
          %308 = sbr.rel (%p306) target = $region56
        $region55: #{forward.1} parent=51 // pred_region
          %p309 = scmp.lt.s32.totalorder %s19, 1
          %s310 = scalar_select %p309, %s19, 1
          %s311 = smul.addr %s310, 9
          %s312 = smul.addr %s311, 8
          %s313 = scalar_lea.vmem %s0, %s312
        $region56: #{forward.1} parent=51 // pred_fallthru
          _
      $region52: #{forward.1} parent=5 // pred_fallthru
        _
      %p314 = scmp.le.s32.totalorder 1, %s19
      %p315 = scmp.lt.s32.totalorder %s19, 3
      %p316 = pnand %p314, %p315
      %p317 = pneg %p316
      // Predicated region
      $region57: #{forward.1} parent=5 // pred_check
        _
      $region58: #{forward.1} parent=5 // pred_check_branch
        %319 = sbr.rel (%p316) target = $region60
      $region59: #{forward.1} parent=5 // pred_region
        %s320 = ssub.s32 %s19, 1
        %p321 = scmp.lt.s32.totalorder %s24, 1
        %s322 = scalar_select %p321, %s24, 1
        %s323 = smul.addr %s322, 9
        %s324 = smul.addr %s323, 8
        %s325 = scalar_lea.vmem %s0, %s324
        %p326 = pneg %p45
        %p327 = pneg %p42
        %p328 = pneg %p66
        %p329 = pneg %p63
        %p330 = pneg %p87
        %p331 = pneg %p84
        %p332 = pneg %p108
        %p333 = pneg %p105
        %p334 = pneg %p129
        %p335 = pneg %p126
        %p336 = pneg %p150
        %p337 = pneg %p147
        %p338 = pneg %p171
        %p339 = pneg %p168
        %p340 = pneg %p192
        %p341 = pneg %p189
        %p342 = pneg %p213
        %p343 = pneg %p210
        %p344 = pneg %p234
        %p345 = pneg %p231
        %p346 = pneg %p260
        %p347 = pneg %p257
        %s348 = sand.u32 %s247, 1
        %s349 = scalar_lea.sflag [#allocation3], %s348
        %s350 = sand.u32 %s247, 1
        %s351 = smul.addr %s350, 8
        %s352 = scalar_lea.vmem [#allocation2], %s351
        %p353 = scmp.lt.s32.totalorder %s24, 1
        %s354 = scalar_select %p353, %s24, 1
        %s355 = smul.addr %s354, 9
        %s356 = smul.addr %s355, 8
        %s357 = scalar_lea.vmem %s0, %s356
        %v359 = vld [vmem:[%s357] sm:$0xff]
        %v360 = vld [vmem:[%s357 + $0x8] sm:$0xff]
        %v361 = vld [vmem:[%s357 + $0x10] sm:$0xff]
        %v362 = vld [vmem:[%s357 + $0x18] sm:$0xff]
        %v363 = vld [vmem:[%s357 + $0x20] sm:$0xff]
        %v364 = vld [vmem:[%s357 + $0x28] sm:$0xff]
        %v365 = vld [vmem:[%s357 + $0x30] sm:$0xff]
        %v366 = vld [vmem:[%s357 + $0x38] sm:$0xff]
        %v367 = vld [vmem:[%s357 + $0x40] sm:$0xff]
        %376 = vrot.lane.b32.xlu0 %v359, 127
        %v377 = vpop.permute.xlu0 %376
        %378 = vrot.lane.b32.xlu0 %v360, 127
        %v379 = vpop.permute.xlu0 %378
        %380 = vrot.lane.b32.xlu0 %v361, 127
        %v381 = vpop.permute.xlu0 %380
        %382 = vrot.lane.b32.xlu0 %v362, 127
        %v383 = vpop.permute.xlu0 %382
        %384 = vrot.lane.b32.xlu0 %v363, 127
        %v385 = vpop.permute.xlu0 %384
        %386 = vrot.lane.b32.xlu0 %v364, 127
        %v387 = vpop.permute.xlu0 %386
        %388 = vrot.lane.b32.xlu0 %v365, 127
        %v389 = vpop.permute.xlu0 %388
        %390 = vrot.lane.b32.xlu0 %v366, 127
        %v391 = vpop.permute.xlu0 %390
        %vm392 = vcmask 1039360
        %v393 = vsel %vm392, %v377, %v379
        %v394 = vsel %vm392, %v379, %v381
        %v395 = vsel %vm392, %v381, %v383
        %v396 = vsel %vm392, %v383, %v385
        %v397 = vsel %vm392, %v385, %v387
        %v398 = vsel %vm392, %v387, %v389
        %v399 = vsel %vm392, %v389, %v391
        %407 = vrot.lane.b32.xlu0 %v359, 126
        %v408 = vpop.permute.xlu0 %407
        %409 = vrot.lane.b32.xlu0 %v360, 126
        %v410 = vpop.permute.xlu0 %409
        %411 = vrot.lane.b32.xlu0 %v361, 126
        %v412 = vpop.permute.xlu0 %411
        %413 = vrot.lane.b32.xlu0 %v362, 126
        %v414 = vpop.permute.xlu0 %413
        %415 = vrot.lane.b32.xlu0 %v363, 126
        %v416 = vpop.permute.xlu0 %415
        %417 = vrot.lane.b32.xlu0 %v364, 126
        %v418 = vpop.permute.xlu0 %417
        %419 = vrot.lane.b32.xlu0 %v365, 126
        %v420 = vpop.permute.xlu0 %419
        %421 = vrot.lane.b32.xlu0 %v366, 126
        %v422 = vpop.permute.xlu0 %421
        %vm423 = vcmask 1031168
        %v424 = vsel %vm423, %v408, %v410
        %v425 = vsel %vm423, %v410, %v412
        %v426 = vsel %vm423, %v412, %v414
        %v427 = vsel %vm423, %v414, %v416
        %v428 = vsel %vm423, %v416, %v418
        %v429 = vsel %vm423, %v418, %v420
        %v430 = vsel %vm423, %v420, %v422
        %438 = vrot.lane.b32.xlu0 %v359, 125
        %v439 = vpop.permute.xlu0 %438
        %440 = vrot.lane.b32.xlu0 %v360, 125
        %v441 = vpop.permute.xlu0 %440
        %442 = vrot.lane.b32.xlu0 %v361, 125
        %v443 = vpop.permute.xlu0 %442
        %444 = vrot.lane.b32.xlu0 %v362, 125
        %v445 = vpop.permute.xlu0 %444
        %446 = vrot.lane.b32.xlu0 %v363, 125
        %v447 = vpop.permute.xlu0 %446
        %448 = vrot.lane.b32.xlu0 %v364, 125
        %v449 = vpop.permute.xlu0 %448
        %450 = vrot.lane.b32.xlu0 %v365, 125
        %v451 = vpop.permute.xlu0 %450
        %452 = vrot.lane.b32.xlu0 %v366, 125
        %v453 = vpop.permute.xlu0 %452
        %vm454 = vcmask 1022976
        %v455 = vsel %vm454, %v439, %v441
        %v456 = vsel %vm454, %v441, %v443
        %v457 = vsel %vm454, %v443, %v445
        %v458 = vsel %vm454, %v445, %v447
        %v459 = vsel %vm454, %v447, %v449
        %v460 = vsel %vm454, %v449, %v451
        %v461 = vsel %vm454, %v451, %v453
        %469 = vrot.lane.b32.xlu0 %v359, 124
        %v470 = vpop.permute.xlu0 %469
        %471 = vrot.lane.b32.xlu0 %v360, 124
        %v472 = vpop.permute.xlu0 %471
        %473 = vrot.lane.b32.xlu0 %v361, 124
        %v474 = vpop.permute.xlu0 %473
        %475 = vrot.lane.b32.xlu0 %v362, 124
        %v476 = vpop.permute.xlu0 %475
        %477 = vrot.lane.b32.xlu0 %v363, 124
        %v478 = vpop.permute.xlu0 %477
        %479 = vrot.lane.b32.xlu0 %v364, 124
        %v480 = vpop.permute.xlu0 %479
        %481 = vrot.lane.b32.xlu0 %v365, 124
        %v482 = vpop.permute.xlu0 %481
        %483 = vrot.lane.b32.xlu0 %v366, 124
        %v484 = vpop.permute.xlu0 %483
        %vm485 = vcmask 1014784
        %v486 = vsel %vm485, %v470, %v472
        %v487 = vsel %vm485, %v472, %v474
        %v488 = vsel %vm485, %v474, %v476
        %v489 = vsel %vm485, %v476, %v478
        %v490 = vsel %vm485, %v478, %v480
        %v491 = vsel %vm485, %v480, %v482
        %v492 = vsel %vm485, %v482, %v484
        %500 = vrot.lane.b32.xlu0 %v359, 96
        %v501 = vpop.permute.xlu0 %500
        %502 = vrot.lane.b32.xlu0 %v360, 96
        %v503 = vpop.permute.xlu0 %502
        %504 = vrot.lane.b32.xlu0 %v361, 96
        %v505 = vpop.permute.xlu0 %504
        %506 = vrot.lane.b32.xlu0 %v362, 96
        %v507 = vpop.permute.xlu0 %506
        %508 = vrot.lane.b32.xlu0 %v363, 96
        %v509 = vpop.permute.xlu0 %508
        %510 = vrot.lane.b32.xlu0 %v364, 96
        %v511 = vpop.permute.xlu0 %510
        %512 = vrot.lane.b32.xlu0 %v365, 96
        %v513 = vpop.permute.xlu0 %512
        %514 = vrot.lane.b32.xlu0 %v366, 96
        %v515 = vpop.permute.xlu0 %514
        %vm516 = vcmask 785408
        %v517 = vsel %vm516, %v501, %v503
        %v518 = vsel %vm516, %v503, %v505
        %v519 = vsel %vm516, %v505, %v507
        %v520 = vsel %vm516, %v507, %v509
        %v521 = vsel %vm516, %v509, %v511
        %v522 = vsel %vm516, %v511, %v513
        %v523 = vsel %vm516, %v513, %v515
        %531 = vrot.lane.b32.xlu0 %v359, 95
        %v532 = vpop.permute.xlu0 %531
        %533 = vrot.lane.b32.xlu0 %v360, 95
        %v534 = vpop.permute.xlu0 %533
        %535 = vrot.lane.b32.xlu0 %v361, 95
        %v536 = vpop.permute.xlu0 %535
        %537 = vrot.lane.b32.xlu0 %v362, 95
        %v538 = vpop.permute.xlu0 %537
        %539 = vrot.lane.b32.xlu0 %v363, 95
        %v540 = vpop.permute.xlu0 %539
        %541 = vrot.lane.b32.xlu0 %v364, 95
        %v542 = vpop.permute.xlu0 %541
        %543 = vrot.lane.b32.xlu0 %v365, 95
        %v544 = vpop.permute.xlu0 %543
        %545 = vrot.lane.b32.xlu0 %v366, 95
        %v546 = vpop.permute.xlu0 %545
        %vm547 = vcmask 777216
        %v548 = vsel %vm547, %v532, %v534
        %v549 = vsel %vm547, %v534, %v536
        %v550 = vsel %vm547, %v536, %v538
        %v551 = vsel %vm547, %v538, %v540
        %v552 = vsel %vm547, %v540, %v542
        %v553 = vsel %vm547, %v542, %v544
        %v554 = vsel %vm547, %v544, %v546
        %562 = vrot.lane.b32.xlu0 %v359, 94
        %v563 = vpop.permute.xlu0 %562
        %564 = vrot.lane.b32.xlu0 %v360, 94
        %v565 = vpop.permute.xlu0 %564
        %566 = vrot.lane.b32.xlu0 %v361, 94
        %v567 = vpop.permute.xlu0 %566
        %568 = vrot.lane.b32.xlu0 %v362, 94
        %v569 = vpop.permute.xlu0 %568
        %570 = vrot.lane.b32.xlu0 %v363, 94
        %v571 = vpop.permute.xlu0 %570
        %572 = vrot.lane.b32.xlu0 %v364, 94
        %v573 = vpop.permute.xlu0 %572
        %574 = vrot.lane.b32.xlu0 %v365, 94
        %v575 = vpop.permute.xlu0 %574
        %576 = vrot.lane.b32.xlu0 %v366, 94
        %v577 = vpop.permute.xlu0 %576
        %vm578 = vcmask 769024
        %v579 = vsel %vm578, %v563, %v565
        %v580 = vsel %vm578, %v565, %v567
        %v581 = vsel %vm578, %v567, %v569
        %v582 = vsel %vm578, %v569, %v571
        %v583 = vsel %vm578, %v571, %v573
        %v584 = vsel %vm578, %v573, %v575
        %v585 = vsel %vm578, %v575, %v577
        %593 = vrot.lane.b32.xlu0 %v359, 93
        %v594 = vpop.permute.xlu0 %593
        %595 = vrot.lane.b32.xlu0 %v360, 93
        %v596 = vpop.permute.xlu0 %595
        %597 = vrot.lane.b32.xlu0 %v361, 93
        %v598 = vpop.permute.xlu0 %597
        %599 = vrot.lane.b32.xlu0 %v362, 93
        %v600 = vpop.permute.xlu0 %599
        %601 = vrot.lane.b32.xlu0 %v363, 93
        %v602 = vpop.permute.xlu0 %601
        %603 = vrot.lane.b32.xlu0 %v364, 93
        %v604 = vpop.permute.xlu0 %603
        %605 = vrot.lane.b32.xlu0 %v365, 93
        %v606 = vpop.permute.xlu0 %605
        %607 = vrot.lane.b32.xlu0 %v366, 93
        %v608 = vpop.permute.xlu0 %607
        %vm609 = vcmask 760832
        %v610 = vsel %vm609, %v594, %v596
        %v611 = vsel %vm609, %v596, %v598
        %v612 = vsel %vm609, %v598, %v600
        %v613 = vsel %vm609, %v600, %v602
        %v614 = vsel %vm609, %v602, %v604
        %v615 = vsel %vm609, %v604, %v606
        %v616 = vsel %vm609, %v606, %v608
        %624 = vrot.lane.b32.xlu0 %v359, 92
        %v625 = vpop.permute.xlu0 %624
        %626 = vrot.lane.b32.xlu0 %v360, 92
        %v627 = vpop.permute.xlu0 %626
        %628 = vrot.lane.b32.xlu0 %v361, 92
        %v629 = vpop.permute.xlu0 %628
        %630 = vrot.lane.b32.xlu0 %v362, 92
        %v631 = vpop.permute.xlu0 %630
        %632 = vrot.lane.b32.xlu0 %v363, 92
        %v633 = vpop.permute.xlu0 %632
        %634 = vrot.lane.b32.xlu0 %v364, 92
        %v635 = vpop.permute.xlu0 %634
        %636 = vrot.lane.b32.xlu0 %v365, 92
        %v637 = vpop.permute.xlu0 %636
        %638 = vrot.lane.b32.xlu0 %v366, 92
        %v639 = vpop.permute.xlu0 %638
        %vm640 = vcmask 752640
        %v641 = vsel %vm640, %v625, %v627
        %v642 = vsel %vm640, %v627, %v629
        %v643 = vsel %vm640, %v629, %v631
        %v644 = vsel %vm640, %v631, %v633
        %v645 = vsel %vm640, %v633, %v635
        %v646 = vsel %vm640, %v635, %v637
        %v647 = vsel %vm640, %v637, %v639
        %655 = vrot.lane.b32.xlu0 %v359, 64
        %v656 = vpop.permute.xlu0 %655
        %657 = vrot.lane.b32.xlu0 %v360, 64
        %v658 = vpop.permute.xlu0 %657
        %659 = vrot.lane.b32.xlu0 %v361, 64
        %v660 = vpop.permute.xlu0 %659
        %661 = vrot.lane.b32.xlu0 %v362, 64
        %v662 = vpop.permute.xlu0 %661
        %663 = vrot.lane.b32.xlu0 %v363, 64
        %v664 = vpop.permute.xlu0 %663
        %665 = vrot.lane.b32.xlu0 %v364, 64
        %v666 = vpop.permute.xlu0 %665
        %667 = vrot.lane.b32.xlu0 %v365, 64
        %v668 = vpop.permute.xlu0 %667
        %669 = vrot.lane.b32.xlu0 %v366, 64
        %v670 = vpop.permute.xlu0 %669
        %vm671 = vcmask 523264
        %v672 = vsel %vm671, %v656, %v658
        %v673 = vsel %vm671, %v658, %v660
        %v674 = vsel %vm671, %v660, %v662
        %v675 = vsel %vm671, %v662, %v664
        %v676 = vsel %vm671, %v664, %v666
        %v677 = vsel %vm671, %v666, %v668
        %v678 = vsel %vm671, %v668, %v670
        %686 = vrot.lane.b32.xlu0 %v359, 63
        %v687 = vpop.permute.xlu0 %686
        %688 = vrot.lane.b32.xlu0 %v360, 63
        %v689 = vpop.permute.xlu0 %688
        %690 = vrot.lane.b32.xlu0 %v361, 63
        %v691 = vpop.permute.xlu0 %690
        %692 = vrot.lane.b32.xlu0 %v362, 63
        %v693 = vpop.permute.xlu0 %692
        %694 = vrot.lane.b32.xlu0 %v363, 63
        %v695 = vpop.permute.xlu0 %694
        %696 = vrot.lane.b32.xlu0 %v364, 63
        %v697 = vpop.permute.xlu0 %696
        %698 = vrot.lane.b32.xlu0 %v365, 63
        %v699 = vpop.permute.xlu0 %698
        %700 = vrot.lane.b32.xlu0 %v366, 63
        %v701 = vpop.permute.xlu0 %700
        %vm702 = vcmask 515072
        %v703 = vsel %vm702, %v687, %v689
        %v704 = vsel %vm702, %v689, %v691
        %v705 = vsel %vm702, %v691, %v693
        %v706 = vsel %vm702, %v693, %v695
        %v707 = vsel %vm702, %v695, %v697
        %v708 = vsel %vm702, %v697, %v699
        %v709 = vsel %vm702, %v699, %v701
        %717 = vrot.lane.b32.xlu0 %v359, 62
        %v718 = vpop.permute.xlu0 %717
        %719 = vrot.lane.b32.xlu0 %v360, 62
        %v720 = vpop.permute.xlu0 %719
        %721 = vrot.lane.b32.xlu0 %v361, 62
        %v722 = vpop.permute.xlu0 %721
        %723 = vrot.lane.b32.xlu0 %v362, 62
        %v724 = vpop.permute.xlu0 %723
        %725 = vrot.lane.b32.xlu0 %v363, 62
        %v726 = vpop.permute.xlu0 %725
        %727 = vrot.lane.b32.xlu0 %v364, 62
        %v728 = vpop.permute.xlu0 %727
        %729 = vrot.lane.b32.xlu0 %v365, 62
        %v730 = vpop.permute.xlu0 %729
        %731 = vrot.lane.b32.xlu0 %v366, 62
        %v732 = vpop.permute.xlu0 %731
        %vm733 = vcmask 506880
        %v734 = vsel %vm733, %v718, %v720
        %v735 = vsel %vm733, %v720, %v722
        %v736 = vsel %vm733, %v722, %v724
        %v737 = vsel %vm733, %v724, %v726
        %v738 = vsel %vm733, %v726, %v728
        %v739 = vsel %vm733, %v728, %v730
        %v740 = vsel %vm733, %v730, %v732
        %748 = vrot.lane.b32.xlu0 %v359, 61
        %v749 = vpop.permute.xlu0 %748
        %750 = vrot.lane.b32.xlu0 %v360, 61
        %v751 = vpop.permute.xlu0 %750
        %752 = vrot.lane.b32.xlu0 %v361, 61
        %v753 = vpop.permute.xlu0 %752
        %754 = vrot.lane.b32.xlu0 %v362, 61
        %v755 = vpop.permute.xlu0 %754
        %756 = vrot.lane.b32.xlu0 %v363, 61
        %v757 = vpop.permute.xlu0 %756
        %758 = vrot.lane.b32.xlu0 %v364, 61
        %v759 = vpop.permute.xlu0 %758
        %760 = vrot.lane.b32.xlu0 %v365, 61
        %v761 = vpop.permute.xlu0 %760
        %762 = vrot.lane.b32.xlu0 %v366, 61
        %v763 = vpop.permute.xlu0 %762
        %vm764 = vcmask 498688
        %v765 = vsel %vm764, %v749, %v751
        %v766 = vsel %vm764, %v751, %v753
        %v767 = vsel %vm764, %v753, %v755
        %v768 = vsel %vm764, %v755, %v757
        %v769 = vsel %vm764, %v757, %v759
        %v770 = vsel %vm764, %v759, %v761
        %v771 = vsel %vm764, %v761, %v763
        %779 = vrot.lane.b32.xlu0 %v359, 60
        %v780 = vpop.permute.xlu0 %779
        %781 = vrot.lane.b32.xlu0 %v360, 60
        %v782 = vpop.permute.xlu0 %781
        %783 = vrot.lane.b32.xlu0 %v361, 60
        %v784 = vpop.permute.xlu0 %783
        %785 = vrot.lane.b32.xlu0 %v362, 60
        %v786 = vpop.permute.xlu0 %785
        %787 = vrot.lane.b32.xlu0 %v363, 60
        %v788 = vpop.permute.xlu0 %787
        %789 = vrot.lane.b32.xlu0 %v364, 60
        %v790 = vpop.permute.xlu0 %789
        %791 = vrot.lane.b32.xlu0 %v365, 60
        %v792 = vpop.permute.xlu0 %791
        %793 = vrot.lane.b32.xlu0 %v366, 60
        %v794 = vpop.permute.xlu0 %793
        %vm795 = vcmask 490496
        %v796 = vsel %vm795, %v780, %v782
        %v797 = vsel %vm795, %v782, %v784
        %v798 = vsel %vm795, %v784, %v786
        %v799 = vsel %vm795, %v786, %v788
        %v800 = vsel %vm795, %v788, %v790
        %v801 = vsel %vm795, %v790, %v792
        %v802 = vsel %vm795, %v792, %v794
        %810 = vrot.lane.b32.xlu0 %v359, 32
        %v811 = vpop.permute.xlu0 %810
        %812 = vrot.lane.b32.xlu0 %v360, 32
        %v813 = vpop.permute.xlu0 %812
        %814 = vrot.lane.b32.xlu0 %v361, 32
        %v815 = vpop.permute.xlu0 %814
        %816 = vrot.lane.b32.xlu0 %v362, 32
        %v817 = vpop.permute.xlu0 %816
        %818 = vrot.lane.b32.xlu0 %v363, 32
        %v819 = vpop.permute.xlu0 %818
        %820 = vrot.lane.b32.xlu0 %v364, 32
        %v821 = vpop.permute.xlu0 %820
        %822 = vrot.lane.b32.xlu0 %v365, 32
        %v823 = vpop.permute.xlu0 %822
        %824 = vrot.lane.b32.xlu0 %v366, 32
        %v825 = vpop.permute.xlu0 %824
        %vm826 = vcmask 261120
        %v827 = vsel %vm826, %v811, %v813
        %v828 = vsel %vm826, %v813, %v815
        %v829 = vsel %vm826, %v815, %v817
        %v830 = vsel %vm826, %v817, %v819
        %v831 = vsel %vm826, %v819, %v821
        %v832 = vsel %vm826, %v821, %v823
        %v833 = vsel %vm826, %v823, %v825
        %841 = vrot.lane.b32.xlu0 %v360, 97
        %v842 = vpop.permute.xlu0 %841
        %843 = vrot.lane.b32.xlu0 %v361, 97
        %v844 = vpop.permute.xlu0 %843
        %845 = vrot.lane.b32.xlu0 %v362, 97
        %v846 = vpop.permute.xlu0 %845
        %847 = vrot.lane.b32.xlu0 %v363, 97
        %v848 = vpop.permute.xlu0 %847
        %849 = vrot.lane.b32.xlu0 %v364, 97
        %v850 = vpop.permute.xlu0 %849
        %851 = vrot.lane.b32.xlu0 %v365, 97
        %v852 = vpop.permute.xlu0 %851
        %853 = vrot.lane.b32.xlu0 %v366, 97
        %v854 = vpop.permute.xlu0 %853
        %vm855 = vcmask 793600
        %v856 = vsel %vm855, %v842, %v844
        %v857 = vsel %vm855, %v844, %v846
        %v858 = vsel %vm855, %v846, %v848
        %v859 = vsel %vm855, %v848, %v850
        %v860 = vsel %vm855, %v850, %v852
        %v861 = vsel %vm855, %v852, %v854
        %863 = vrot.lane.b32.xlu0 %v367, 96
        %v864 = vpop.permute.xlu0 %863
        %v865 = vsel %vm516, %v515, %v864
        %866 = vrot.lane.b32.xlu0 %v367, 95
        %v867 = vpop.permute.xlu0 %866
        %v868 = vsel %vm547, %v546, %v867
        %869 = vrot.lane.b32.xlu0 %v367, 94
        %v870 = vpop.permute.xlu0 %869
        %v871 = vsel %vm578, %v577, %v870
        %872 = vrot.lane.b32.xlu0 %v367, 93
        %v873 = vpop.permute.xlu0 %872
        %v874 = vsel %vm609, %v608, %v873
        %875 = vrot.lane.b32.xlu0 %v359, 31
        %v876 = vpop.permute.xlu0 %875
        %877 = vrot.lane.b32.xlu0 %v360, 31
        %v878 = vpop.permute.xlu0 %877
        %879 = vrot.lane.b32.xlu0 %v361, 31
        %v880 = vpop.permute.xlu0 %879
        %881 = vrot.lane.b32.xlu0 %v362, 31
        %v882 = vpop.permute.xlu0 %881
        %883 = vrot.lane.b32.xlu0 %v363, 31
        %v884 = vpop.permute.xlu0 %883
        %885 = vrot.lane.b32.xlu0 %v364, 31
        %v886 = vpop.permute.xlu0 %885
        %887 = vrot.lane.b32.xlu0 %v365, 31
        %v888 = vpop.permute.xlu0 %887
        %889 = vrot.lane.b32.xlu0 %v366, 31
        %v890 = vpop.permute.xlu0 %889
        %891 = vrot.lane.b32.xlu0 %v393, 31
        %v892 = vpop.permute.xlu0 %891
        %893 = vrot.lane.b32.xlu0 %v394, 31
        %v894 = vpop.permute.xlu0 %893
        %895 = vrot.lane.b32.xlu0 %v395, 31
        %v896 = vpop.permute.xlu0 %895
        %897 = vrot.lane.b32.xlu0 %v396, 31
        %v898 = vpop.permute.xlu0 %897
        %899 = vrot.lane.b32.xlu0 %v397, 31
        %v900 = vpop.permute.xlu0 %899
        %901 = vrot.lane.b32.xlu0 %v398, 31
        %v902 = vpop.permute.xlu0 %901
        %903 = vrot.lane.b32.xlu0 %v399, 31
        %v904 = vpop.permute.xlu0 %903
        %905 = vrot.lane.b32.xlu0 %v391, 31
        %v906 = vpop.permute.xlu0 %905
        %907 = vrot.lane.b32.xlu0 %v424, 31
        %v908 = vpop.permute.xlu0 %907
        %909 = vrot.lane.b32.xlu0 %v425, 31
        %v910 = vpop.permute.xlu0 %909
        %911 = vrot.lane.b32.xlu0 %v426, 31
        %v912 = vpop.permute.xlu0 %911
        %913 = vrot.lane.b32.xlu0 %v427, 31
        %v914 = vpop.permute.xlu0 %913
        %915 = vrot.lane.b32.xlu0 %v428, 31
        %v916 = vpop.permute.xlu0 %915
        %917 = vrot.lane.b32.xlu0 %v429, 31
        %v918 = vpop.permute.xlu0 %917
        %919 = vrot.lane.b32.xlu0 %v430, 31
        %v920 = vpop.permute.xlu0 %919
        %921 = vrot.lane.b32.xlu0 %v422, 31
        %v922 = vpop.permute.xlu0 %921
        %923 = vrot.lane.b32.xlu0 %v455, 31
        %v924 = vpop.permute.xlu0 %923
        %925 = vrot.lane.b32.xlu0 %v456, 31
        %v926 = vpop.permute.xlu0 %925
        %927 = vrot.lane.b32.xlu0 %v457, 31
        %v928 = vpop.permute.xlu0 %927
        %929 = vrot.lane.b32.xlu0 %v458, 31
        %v930 = vpop.permute.xlu0 %929
        %931 = vrot.lane.b32.xlu0 %v459, 31
        %v932 = vpop.permute.xlu0 %931
        %933 = vrot.lane.b32.xlu0 %v460, 31
        %v934 = vpop.permute.xlu0 %933
        %935 = vrot.lane.b32.xlu0 %v461, 31
        %v936 = vpop.permute.xlu0 %935
        %937 = vrot.lane.b32.xlu0 %v453, 31
        %v938 = vpop.permute.xlu0 %937
        %939 = vrot.lane.b32.xlu0 %v842, 31
        %v940 = vpop.permute.xlu0 %939
        %941 = vrot.lane.b32.xlu0 %v856, 31
        %v942 = vpop.permute.xlu0 %941
        %943 = vrot.lane.b32.xlu0 %v857, 31
        %v944 = vpop.permute.xlu0 %943
        %945 = vrot.lane.b32.xlu0 %v858, 31
        %v946 = vpop.permute.xlu0 %945
        %947 = vrot.lane.b32.xlu0 %v859, 31
        %v948 = vpop.permute.xlu0 %947
        %949 = vrot.lane.b32.xlu0 %v860, 31
        %v950 = vpop.permute.xlu0 %949
        %951 = vrot.lane.b32.xlu0 %v861, 31
        %v952 = vpop.permute.xlu0 %951
        %953 = vrot.lane.b32.xlu0 %v854, 31
        %v954 = vpop.permute.xlu0 %953
        %955 = vrot.lane.b32.xlu0 %v503, 31
        %v956 = vpop.permute.xlu0 %955
        %957 = vrot.lane.b32.xlu0 %v518, 31
        %v958 = vpop.permute.xlu0 %957
        %959 = vrot.lane.b32.xlu0 %v519, 31
        %v960 = vpop.permute.xlu0 %959
        %961 = vrot.lane.b32.xlu0 %v520, 31
        %v962 = vpop.permute.xlu0 %961
        %963 = vrot.lane.b32.xlu0 %v521, 31
        %v964 = vpop.permute.xlu0 %963
        %965 = vrot.lane.b32.xlu0 %v522, 31
        %v966 = vpop.permute.xlu0 %965
        %967 = vrot.lane.b32.xlu0 %v523, 31
        %v968 = vpop.permute.xlu0 %967
        %969 = vrot.lane.b32.xlu0 %v865, 31
        %v970 = vpop.permute.xlu0 %969
        %971 = vrot.lane.b32.xlu0 %v534, 31
        %v972 = vpop.permute.xlu0 %971
        %973 = vrot.lane.b32.xlu0 %v549, 31
        %v974 = vpop.permute.xlu0 %973
        %975 = vrot.lane.b32.xlu0 %v550, 31
        %v976 = vpop.permute.xlu0 %975
        %977 = vrot.lane.b32.xlu0 %v551, 31
        %v978 = vpop.permute.xlu0 %977
        %979 = vrot.lane.b32.xlu0 %v552, 31
        %v980 = vpop.permute.xlu0 %979
        %981 = vrot.lane.b32.xlu0 %v553, 31
        %v982 = vpop.permute.xlu0 %981
        %983 = vrot.lane.b32.xlu0 %v554, 31
        %v984 = vpop.permute.xlu0 %983
        %985 = vrot.lane.b32.xlu0 %v868, 31
        %v986 = vpop.permute.xlu0 %985
        %987 = vrot.lane.b32.xlu0 %v565, 31
        %v988 = vpop.permute.xlu0 %987
        %989 = vrot.lane.b32.xlu0 %v580, 31
        %v990 = vpop.permute.xlu0 %989
        %991 = vrot.lane.b32.xlu0 %v581, 31
        %v992 = vpop.permute.xlu0 %991
        %993 = vrot.lane.b32.xlu0 %v582, 31
        %v994 = vpop.permute.xlu0 %993
        %995 = vrot.lane.b32.xlu0 %v583, 31
        %v996 = vpop.permute.xlu0 %995
        %997 = vrot.lane.b32.xlu0 %v584, 31
        %v998 = vpop.permute.xlu0 %997
        %999 = vrot.lane.b32.xlu0 %v585, 31
        %v1000 = vpop.permute.xlu0 %999
        %1001 = vrot.lane.b32.xlu0 %v871, 31
        %v1002 = vpop.permute.xlu0 %1001
        %1003 = vrot.lane.b32.xlu0 %v596, 31
        %v1004 = vpop.permute.xlu0 %1003
        %1005 = vrot.lane.b32.xlu0 %v611, 31
        %v1006 = vpop.permute.xlu0 %1005
        %1007 = vrot.lane.b32.xlu0 %v612, 31
        %v1008 = vpop.permute.xlu0 %1007
        %1009 = vrot.lane.b32.xlu0 %v613, 31
        %v1010 = vpop.permute.xlu0 %1009
        %1011 = vrot.lane.b32.xlu0 %v614, 31
        %v1012 = vpop.permute.xlu0 %1011
        %1013 = vrot.lane.b32.xlu0 %v615, 31
        %v1014 = vpop.permute.xlu0 %1013
        %1015 = vrot.lane.b32.xlu0 %v616, 31
        %v1016 = vpop.permute.xlu0 %1015
        %1017 = vrot.lane.b32.xlu0 %v874, 31
        %v1018 = vpop.permute.xlu0 %1017
        %vm1019 = vcmask 252928
        %v1020 = vsel %vm1019, %v876, %v878
        %v1021 = vsel %vm1019, %v878, %v880
        %v1022 = vsel %vm1019, %v880, %v882
        %v1023 = vsel %vm1019, %v882, %v884
        %v1024 = vsel %vm1019, %v884, %v886
        %v1025 = vsel %vm1019, %v886, %v888
        %v1026 = vsel %vm1019, %v888, %v890
        %v1027 = vsel %vm1019, %v892, %v894
        %v1028 = vsel %vm1019, %v894, %v896
        %v1029 = vsel %vm1019, %v896, %v898
        %v1030 = vsel %vm1019, %v898, %v900
        %v1031 = vsel %vm1019, %v900, %v902
        %v1032 = vsel %vm1019, %v902, %v904
        %v1033 = vsel %vm1019, %v904, %v906
        %v1034 = vsel %vm1019, %v908, %v910
        %v1035 = vsel %vm1019, %v910, %v912
        %v1036 = vsel %vm1019, %v912, %v914
        %v1037 = vsel %vm1019, %v914, %v916
        %v1038 = vsel %vm1019, %v916, %v918
        %v1039 = vsel %vm1019, %v918, %v920
        %v1040 = vsel %vm1019, %v920, %v922
        %v1041 = vsel %vm1019, %v924, %v926
        %v1042 = vsel %vm1019, %v926, %v928
        %v1043 = vsel %vm1019, %v928, %v930
        %v1044 = vsel %vm1019, %v930, %v932
        %v1045 = vsel %vm1019, %v932, %v934
        %v1046 = vsel %vm1019, %v934, %v936
        %v1047 = vsel %vm1019, %v936, %v938
        %v1048 = vsel %vm1019, %v940, %v942
        %v1049 = vsel %vm1019, %v942, %v944
        %v1050 = vsel %vm1019, %v944, %v946
        %v1051 = vsel %vm1019, %v946, %v948
        %v1052 = vsel %vm1019, %v948, %v950
        %v1053 = vsel %vm1019, %v950, %v952
        %v1054 = vsel %vm1019, %v952, %v954
        %v1055 = vsel %vm1019, %v956, %v958
        %v1056 = vsel %vm1019, %v958, %v960
        %v1057 = vsel %vm1019, %v960, %v962
        %v1058 = vsel %vm1019, %v962, %v964
        %v1059 = vsel %vm1019, %v964, %v966
        %v1060 = vsel %vm1019, %v966, %v968
        %v1061 = vsel %vm1019, %v968, %v970
        %v1062 = vsel %vm1019, %v972, %v974
        %v1063 = vsel %vm1019, %v974, %v976
        %v1064 = vsel %vm1019, %v976, %v978
        %v1065 = vsel %vm1019, %v978, %v980
        %v1066 = vsel %vm1019, %v980, %v982
        %v1067 = vsel %vm1019, %v982, %v984
        %v1068 = vsel %vm1019, %v984, %v986
        %v1069 = vsel %vm1019, %v988, %v990
        %v1070 = vsel %vm1019, %v990, %v992
        %v1071 = vsel %vm1019, %v992, %v994
        %v1072 = vsel %vm1019, %v994, %v996
        %v1073 = vsel %vm1019, %v996, %v998
        %v1074 = vsel %vm1019, %v998, %v1000
        %v1075 = vsel %vm1019, %v1000, %v1002
        %v1076 = vsel %vm1019, %v1004, %v1006
        %v1077 = vsel %vm1019, %v1006, %v1008
        %v1078 = vsel %vm1019, %v1008, %v1010
        %v1079 = vsel %vm1019, %v1010, %v1012
        %v1080 = vsel %vm1019, %v1012, %v1014
        %v1081 = vsel %vm1019, %v1014, %v1016
        %v1082 = vsel %vm1019, %v1016, %v1018
        %v1146 = vpack.c.bf16 %v393, %v359
        %v1147 = vpack.c.bf16 %v394, %v360
        %v1148 = vpack.c.bf16 %v395, %v361
        %v1149 = vpack.c.bf16 %v396, %v362
        %v1150 = vpack.c.bf16 %v397, %v363
        %v1151 = vpack.c.bf16 %v398, %v364
        %v1152 = vpack.c.bf16 %v399, %v365
        %v1153 = vpack.c.bf16 %v455, %v424
        %v1154 = vpack.c.bf16 %v456, %v425
        %v1155 = vpack.c.bf16 %v457, %v426
        %v1156 = vpack.c.bf16 %v458, %v427
        %v1157 = vpack.c.bf16 %v459, %v428
        %v1158 = vpack.c.bf16 %v460, %v429
        %v1159 = vpack.c.bf16 %v461, %v430
        %v1160 = vpack.c.bf16 %v517, %v486
        %v1161 = vpack.c.bf16 %v518, %v487
        %v1162 = vpack.c.bf16 %v519, %v488
        %v1163 = vpack.c.bf16 %v520, %v489
        %v1164 = vpack.c.bf16 %v521, %v490
        %v1165 = vpack.c.bf16 %v522, %v491
        %v1166 = vpack.c.bf16 %v523, %v492
        %v1167 = vpack.c.bf16 %v579, %v548
        %v1168 = vpack.c.bf16 %v580, %v549
        %v1169 = vpack.c.bf16 %v581, %v550
        %v1170 = vpack.c.bf16 %v582, %v551
        %v1171 = vpack.c.bf16 %v583, %v552
        %v1172 = vpack.c.bf16 %v584, %v553
        %v1173 = vpack.c.bf16 %v585, %v554
        %v1174 = vpack.c.bf16 %v641, %v610
        %v1175 = vpack.c.bf16 %v642, %v611
        %v1176 = vpack.c.bf16 %v643, %v612
        %v1177 = vpack.c.bf16 %v644, %v613
        %v1178 = vpack.c.bf16 %v645, %v614
        %v1179 = vpack.c.bf16 %v646, %v615
        %v1180 = vpack.c.bf16 %v647, %v616
        %v1181 = vpack.c.bf16 %v703, %v672
        %v1182 = vpack.c.bf16 %v704, %v673
        %v1183 = vpack.c.bf16 %v705, %v674
        %v1184 = vpack.c.bf16 %v706, %v675
        %v1185 = vpack.c.bf16 %v707, %v676
        %v1186 = vpack.c.bf16 %v708, %v677
        %v1187 = vpack.c.bf16 %v709, %v678
        %v1188 = vpack.c.bf16 %v765, %v734
        %v1189 = vpack.c.bf16 %v766, %v735
        %v1190 = vpack.c.bf16 %v767, %v736
        %v1191 = vpack.c.bf16 %v768, %v737
        %v1192 = vpack.c.bf16 %v769, %v738
        %v1193 = vpack.c.bf16 %v770, %v739
        %v1194 = vpack.c.bf16 %v771, %v740
        %v1195 = vpack.c.bf16 %v827, %v796
        %v1196 = vpack.c.bf16 %v828, %v797
        %v1197 = vpack.c.bf16 %v829, %v798
        %v1198 = vpack.c.bf16 %v830, %v799
        %v1199 = vpack.c.bf16 %v831, %v800
        %v1200 = vpack.c.bf16 %v832, %v801
        %v1201 = vpack.c.bf16 %v833, %v802
        %v1202 = vpack.c.bf16 %v1027, %v1020
        %v1203 = vpack.c.bf16 %v1028, %v1021
        %v1204 = vpack.c.bf16 %v1029, %v1022
        %v1205 = vpack.c.bf16 %v1030, %v1023
        %v1206 = vpack.c.bf16 %v1031, %v1024
        %v1207 = vpack.c.bf16 %v1032, %v1025
        %v1208 = vpack.c.bf16 %v1033, %v1026
        %v1209 = vpack.c.bf16 %v1041, %v1034
        %v1210 = vpack.c.bf16 %v1042, %v1035
        %v1211 = vpack.c.bf16 %v1043, %v1036
        %v1212 = vpack.c.bf16 %v1044, %v1037
        %v1213 = vpack.c.bf16 %v1045, %v1038
        %v1214 = vpack.c.bf16 %v1046, %v1039
        %v1215 = vpack.c.bf16 %v1047, %v1040
        %v1216 = vpack.c.bf16 %v1055, %v1048
        %v1217 = vpack.c.bf16 %v1056, %v1049
        %v1218 = vpack.c.bf16 %v1057, %v1050
        %v1219 = vpack.c.bf16 %v1058, %v1051
        %v1220 = vpack.c.bf16 %v1059, %v1052
        %v1221 = vpack.c.bf16 %v1060, %v1053
        %v1222 = vpack.c.bf16 %v1061, %v1054
        %v1223 = vpack.c.bf16 %v1069, %v1062
        %v1224 = vpack.c.bf16 %v1070, %v1063
        %v1225 = vpack.c.bf16 %v1071, %v1064
        %v1226 = vpack.c.bf16 %v1072, %v1065
        %v1227 = vpack.c.bf16 %v1073, %v1066
        %v1228 = vpack.c.bf16 %v1074, %v1067
        %v1229 = vpack.c.bf16 %v1075, %v1068
        %v1230 = vpack.c.bf16 %v1076, %v1076
        %v1231 = vpack.c.bf16 %v1077, %v1077
        %v1232 = vpack.c.bf16 %v1078, %v1078
        %v1233 = vpack.c.bf16 %v1079, %v1079
        %v1234 = vpack.c.bf16 %v1080, %v1080
        %v1235 = vpack.c.bf16 %v1081, %v1081
        %v1236 = vpack.c.bf16 %v1082, %v1082
        %v1237 = vld [vmem:[%s1] sm:$0xff]
        %v1238 = vld [vmem:[%s1 + $0x8] sm:$0xff]
        %v1239 = vld [vmem:[%s1 + $0x10] sm:$0xff]
        %v1240 = vld [vmem:[%s1 + $0x18] sm:$0xff]
        %v1241 = vld [vmem:[%s2] sm:$0xff]
        %v1242 = vld [vmem:[%s2 + $0x8] sm:$0xff]
        %v1243 = vld [vmem:[%s2 + $0x10] sm:$0xff]
        %v1244 = vld [vmem:[%s2 + $0x18] sm:$0xff]
        %1246 = vset.pattern.permute.xlu0 0
        %1247 = vperm.xlu0 %1246, %v1241
        %v1248 = vpop.permute.xlu0 %1247
        %1251 = vset.pattern.permute.xlu0 0
        %1252 = vperm.xlu0 %1251, %v1242
        %v1253 = vpop.permute.xlu0 %1252
        %1256 = vset.pattern.permute.xlu0 0
        %1257 = vperm.xlu0 %1256, %v1243
        %v1258 = vpop.permute.xlu0 %1257
        %1261 = vset.pattern.permute.xlu0 0
        %1262 = vperm.xlu0 %1261, %v1244
        %v1263 = vpop.permute.xlu0 %1262
        %v1269 = vunpack.c.l.b16 %v1237
        %v1270 = vunpack.c.h.b16 %v1237
        %v1271 = vunpack.c.l.b16 %v1238
        %v1272 = vunpack.c.h.b16 %v1238
        %v1273 = vunpack.c.l.b16 %v1239
        %v1274 = vunpack.c.h.b16 %v1239
        %v1275 = vunpack.c.l.b16 %v1240
        %v1276 = vunpack.c.h.b16 %v1240
        %v1277 = vpack.c.b16 %v1271, %v1269
        %v1278 = vpack.c.b16 %v1272, %v1270
        %v1279 = vpack.c.b16 %v1275, %v1273
        %v1280 = vpack.c.b16 %v1276, %v1274
        %vm1283 = vcmask 588800
        %v1285 = vsel %vm1283, %v1278, 0
        %v1288 = vsel %vm1283, %v1280, 0
        %vm1290 = vcmask 1043456
        %v1292 = vsel %vm1290, %v1230, 0
        %v1295 = vsel %vm1290, %v1231, 0
        %v1298 = vsel %vm1290, %v1232, 0
        %v1301 = vsel %vm1290, %v1233, 0
        %v1304 = vsel %vm1290, %v1234, 0
        %v1307 = vsel %vm1290, %v1235, 0
        %v1310 = vsel %vm1290, %v1236, 0
        %1312 = vmatprep.subr.bf16.mxu0 %v1147
        %1313 = vmatpush1.bf16.msra.mxu0 %v1146
        %1314 = vmatprep.subr.bf16.mxu0 %v1154
        %1315 = vmatpush1.bf16.msra.mxu0 %v1153
        %1316 = vmatprep.subr.bf16.mxu0 %v1161
        %1317 = vmatpush1.bf16.msra.mxu0 %v1160
        %1318 = vmatprep.subr.bf16.mxu0 %v1168
        %1319 = vmatpush1.bf16.msra.mxu0 %v1167
        %1320 = vmatprep.subr.bf16.mxu0 %v1175
        %1321 = vmatpush1.bf16.msra.mxu0 %v1174
        %1322 = vmatprep.subr.bf16.mxu0 %v1182
        %1323 = vmatpush1.bf16.msra.mxu0 %v1181
        %1324 = vmatprep.subr.bf16.mxu0 %v1189
        %1325 = vmatpush1.bf16.msra.mxu0 %v1188
        %1326 = vmatprep.subr.bf16.mxu0 %v1196
        %1327 = vmatpush1.bf16.msra.mxu0 %v1195
        %1328 = vmatprep.subr.bf16.mxu0 %v1203
        %1329 = vmatpush1.bf16.msra.mxu0 %v1202
        %1330 = vmatprep.subr.bf16.mxu0 %v1210
        %1331 = vmatpush1.bf16.msra.mxu0 %v1209
        %1332 = vmatprep.subr.bf16.mxu0 %v1217
        %1333 = vmatpush1.bf16.msra.mxu0 %v1216
        %1334 = vmatprep.subr.bf16.mxu0 %v1224
        %1335 = vmatpush1.bf16.msra.mxu0 %v1223
        %1336 = vmatprep.subr.bf16.mxu0 %v1295
        %1337 = vmatpush1.bf16.msra.mxu0 %v1292
        %1338 = vmatprep.subr.bf16.mxu0 0
        %1339 = vmatpush1.bf16.msra.mxu0 0
        %1340 = vmatprep.subr.bf16.mxu0 0
        %1341 = vmatpush1.bf16.msra.mxu0 0
        %1342 = vmatprep.subr.bf16.mxu0 0
        %1343 = vmatpush1.bf16.msra.mxu0 0
        %1344 = vmatprep.mubr.bf16.mxu0 %v1285
        %1345 = vmatmul.mubr.bf16.gmra.mrb[0].mxu0 %v1277
        %v1346 = vpop.f32.mrb[0].mxu0
        %v1347 = vadd.f32 %v1248, %v1346
        %v1348 = vpop.f32.mrb[0].mxu0
        %v1349 = vadd.f32 %v1248, %v1348
        %v1350 = vpop.f32.mrb[0].mxu0
        %v1351 = vadd.f32 %v1253, %v1350
        %v1352 = vpop.f32.mrb[0].mxu0
        %v1353 = vadd.f32 %v1253, %v1352
        %1354 = vmatprep.mubr.bf16.mxu0 %v1288
        %1355 = vmatmul.mubr.bf16.gmra.mrb[0].mxu0 %v1279
        %v1356 = vpop.f32.mrb[0].mxu0
        %v1357 = vadd.f32 %v1258, %v1356
        %v1358 = vpop.f32.mrb[0].mxu0
        %v1359 = vadd.f32 %v1258, %v1358
        %v1360 = vpop.f32.mrb[0].mxu0
        %v1361 = vadd.f32 %v1263, %v1360
        %v1362 = vpop.f32.mrb[0].mxu0
        %v1363 = vadd.f32 %v1263, %v1362
        %1364 = vdwg.mxu0
        %1365 = vmatprep.subr.bf16.mxu0 %v1149
        %1366 = vmatpush1.bf16.msra.mxu0 %v1148
        %1367 = vmatprep.subr.bf16.mxu0 %v1156
        %1368 = vmatpush1.bf16.msra.mxu0 %v1155
        %1369 = vmatprep.subr.bf16.mxu0 %v1163
        %1370 = vmatpush1.bf16.msra.mxu0 %v1162
        %1371 = vmatprep.subr.bf16.mxu0 %v1170
        %1372 = vmatpush1.bf16.msra.mxu0 %v1169
        %1373 = vmatprep.subr.bf16.mxu0 %v1177
        %1374 = vmatpush1.bf16.msra.mxu0 %v1176
        %1375 = vmatprep.subr.bf16.mxu0 %v1184
        %1376 = vmatpush1.bf16.msra.mxu0 %v1183
        %1377 = vmatprep.subr.bf16.mxu0 %v1191
        %1378 = vmatpush1.bf16.msra.mxu0 %v1190
        %1379 = vmatprep.subr.bf16.mxu0 %v1198
        %1380 = vmatpush1.bf16.msra.mxu0 %v1197
        %1381 = vmatprep.subr.bf16.mxu0 %v1205
        %1382 = vmatpush1.bf16.msra.mxu0 %v1204
        %1383 = vmatprep.subr.bf16.mxu0 %v1212
        %1384 = vmatpush1.bf16.msra.mxu0 %v1211
        %1385 = vmatprep.subr.bf16.mxu0 %v1219
        %1386 = vmatpush1.bf16.msra.mxu0 %v1218
        %1387 = vmatprep.subr.bf16.mxu0 %v1226
        %1388 = vmatpush1.bf16.msra.mxu0 %v1225
        %1389 = vmatprep.subr.bf16.mxu0 %v1301
        %1390 = vmatpush1.bf16.msra.mxu0 %v1298
        %1391 = vmatprep.subr.bf16.mxu0 0
        %1392 = vmatpush1.bf16.msra.mxu0 0
        %1393 = vmatprep.subr.bf16.mxu0 0
        %1394 = vmatpush1.bf16.msra.mxu0 0
        %1395 = vmatprep.subr.bf16.mxu0 0
        %1396 = vmatpush1.bf16.msra.mxu0 0
        %1397 = vmatprep.mubr.bf16.mxu0 %v1285
        %1398 = vmatmul.mubr.bf16.gmra.mrb[0].mxu0 %v1277
        %v1399 = vpop.f32.mrb[0].mxu0
        %v1400 = vadd.f32 %v1248, %v1399
        %v1401 = vpop.f32.mrb[0].mxu0
        %v1402 = vadd.f32 %v1248, %v1401
        %v1403 = vpop.f32.mrb[0].mxu0
        %v1404 = vadd.f32 %v1253, %v1403
        %v1405 = vpop.f32.mrb[0].mxu0
        %v1406 = vadd.f32 %v1253, %v1405
        %1407 = vmatprep.mubr.bf16.mxu0 %v1288
        %1408 = vmatmul.mubr.bf16.gmra.mrb[0].mxu0 %v1279
        %v1409 = vpop.f32.mrb[0].mxu0
        %v1410 = vadd.f32 %v1258, %v1409
        %v1411 = vpop.f32.mrb[0].mxu0
        %v1412 = vadd.f32 %v1258, %v1411
        %v1413 = vpop.f32.mrb[0].mxu0
        %v1414 = vadd.f32 %v1263, %v1413
        %v1415 = vpop.f32.mrb[0].mxu0
        %v1416 = vadd.f32 %v1263, %v1415
        %1417 = vdwg.mxu0
        %1418 = vmatprep.subr.bf16.mxu0 %v1151
        %1419 = vmatpush1.bf16.msra.mxu0 %v1150
        %1420 = vmatprep.subr.bf16.mxu0 %v1158
        %1421 = vmatpush1.bf16.msra.mxu0 %v1157
        %1422 = vmatprep.subr.bf16.mxu0 %v1165
        %1423 = vmatpush1.bf16.msra.mxu0 %v1164
        %1424 = vmatprep.subr.bf16.mxu0 %v1172
        %1425 = vmatpush1.bf16.msra.mxu0 %v1171
        %1426 = vmatprep.subr.bf16.mxu0 %v1179
        %1427 = vmatpush1.bf16.msra.mxu0 %v1178
        %1428 = vmatprep.subr.bf16.mxu0 %v1186
        %1429 = vmatpush1.bf16.msra.mxu0 %v1185
        %1430 = vmatprep.subr.bf16.mxu0 %v1193
        %1431 = vmatpush1.bf16.msra.mxu0 %v1192
        %1432 = vmatprep.subr.bf16.mxu0 %v1200
        %1433 = vmatpush1.bf16.msra.mxu0 %v1199
        %1434 = vmatprep.subr.bf16.mxu0 %v1207
        %1435 = vmatpush1.bf16.msra.mxu0 %v1206
        %1436 = vmatprep.subr.bf16.mxu0 %v1214
        %1437 = vmatpush1.bf16.msra.mxu0 %v1213
        %1438 = vmatprep.subr.bf16.mxu0 %v1221
        %1439 = vmatpush1.bf16.msra.mxu0 %v1220
        %1440 = vmatprep.subr.bf16.mxu0 %v1228
        %1441 = vmatpush1.bf16.msra.mxu0 %v1227
        %1442 = vmatprep.subr.bf16.mxu0 %v1307
        %1443 = vmatpush1.bf16.msra.mxu0 %v1304
        %1444 = vmatprep.subr.bf16.mxu0 0
        %1445 = vmatpush1.bf16.msra.mxu0 0
        %1446 = vmatprep.subr.bf16.mxu0 0
        %1447 = vmatpush1.bf16.msra.mxu0 0
        %1448 = vmatprep.subr.bf16.mxu0 0
        %1449 = vmatpush1.bf16.msra.mxu0 0
        %1450 = vmatprep.mubr.bf16.mxu0 %v1285
        %1451 = vmatmul.mubr.bf16.gmra.mrb[0].mxu0 %v1277
        %v1452 = vpop.f32.mrb[0].mxu0
        %v1453 = vadd.f32 %v1248, %v1452
        %v1454 = vpop.f32.mrb[0].mxu0
        %v1455 = vadd.f32 %v1248, %v1454
        %v1456 = vpop.f32.mrb[0].mxu0
        %v1457 = vadd.f32 %v1253, %v1456
        %v1458 = vpop.f32.mrb[0].mxu0
        %v1459 = vadd.f32 %v1253, %v1458
        %1460 = vmatprep.mubr.bf16.mxu0 %v1288
        %1461 = vmatmul.mubr.bf16.gmra.mrb[0].mxu0 %v1279
        %v1462 = vpop.f32.mrb[0].mxu0
        %v1463 = vadd.f32 %v1258, %v1462
        %v1464 = vpop.f32.mrb[0].mxu0
        %v1465 = vadd.f32 %v1258, %v1464
        %v1466 = vpop.f32.mrb[0].mxu0
        %v1467 = vadd.f32 %v1263, %v1466
        %v1468 = vpop.f32.mrb[0].mxu0
        %v1469 = vadd.f32 %v1263, %v1468
        %1470 = vdwg.mxu0
        %1471 = vmatprep.subr.bf16.mxu0 0
        %1472 = vmatpush1.bf16.msra.mxu0 %v1152
        %1473 = vmatprep.subr.bf16.mxu0 0
        %1474 = vmatpush1.bf16.msra.mxu0 %v1159
        %1475 = vmatprep.subr.bf16.mxu0 0
        %1476 = vmatpush1.bf16.msra.mxu0 %v1166
        %1477 = vmatprep.subr.bf16.mxu0 0
        %1478 = vmatpush1.bf16.msra.mxu0 %v1173
        %1479 = vmatprep.subr.bf16.mxu0 0
        %1480 = vmatpush1.bf16.msra.mxu0 %v1180
        %1481 = vmatprep.subr.bf16.mxu0 0
        %1482 = vmatpush1.bf16.msra.mxu0 %v1187
        %1483 = vmatprep.subr.bf16.mxu0 0
        %1484 = vmatpush1.bf16.msra.mxu0 %v1194
        %1485 = vmatprep.subr.bf16.mxu0 0
        %1486 = vmatpush1.bf16.msra.mxu0 %v1201
        %1487 = vmatprep.subr.bf16.mxu0 0
        %1488 = vmatpush1.bf16.msra.mxu0 %v1208
        %1489 = vmatprep.subr.bf16.mxu0 0
        %1490 = vmatpush1.bf16.msra.mxu0 %v1215
        %1491 = vmatprep.subr.bf16.mxu0 0
        %1492 = vmatpush1.bf16.msra.mxu0 %v1222
        %1493 = vmatprep.subr.bf16.mxu0 0
        %1494 = vmatpush1.bf16.msra.mxu0 %v1229
        %1495 = vmatprep.subr.bf16.mxu0 0
        %1496 = vmatpush1.bf16.msra.mxu0 %v1310
        %1497 = vmatprep.subr.bf16.mxu0 0
        %1498 = vmatpush1.bf16.msra.mxu0 0
        %1499 = vmatprep.subr.bf16.mxu0 0
        %1500 = vmatpush1.bf16.msra.mxu0 0
        %1501 = vmatprep.subr.bf16.mxu0 0
        %1502 = vmatpush1.bf16.msra.mxu0 0
        %1503 = vmatprep.mubr.bf16.mxu0 %v1285
        %1504 = vmatmul.mubr.bf16.gmra.mrb[0].mxu0 %v1277
        %v1505 = vpop.f32.mrb[0].mxu0
        %v1506 = vadd.f32 %v1248, %v1505
        %v1507 = vpop.f32.mrb[0].mxu0
        %v1508 = vpop.f32.mrb[0].mxu0
        %v1509 = vadd.f32 %v1253, %v1508
        %v1510 = vpop.f32.mrb[0].mxu0
        %1511 = vmatprep.mubr.bf16.mxu0 %v1288
        %1512 = vmatmul.mubr.bf16.gmra.mrb[0].mxu0 %v1279
        %v1513 = vpop.f32.mrb[0].mxu0
        %v1514 = vadd.f32 %v1258, %v1513
        %v1515 = vpop.f32.mrb[0].mxu0
        %v1516 = vpop.f32.mrb[0].mxu0
        %v1517 = vadd.f32 %v1263, %v1516
        %v1518 = vpop.f32.mrb[0].mxu0
        %1519 = vdwg.mxu0
        %v1520 = vmax.f32 %v1347, 0.0
        %v1521 = vmax.f32 %v1349, 0.0
        %v1522 = vmax.f32 %v1400, 0.0
        %v1523 = vmax.f32 %v1402, 0.0
        %v1524 = vmax.f32 %v1453, 0.0
        %v1525 = vmax.f32 %v1455, 0.0
        %v1526 = vmax.f32 %v1506, 0.0
        %v1527 = vmax.f32 %v1351, 0.0
        %v1528 = vmax.f32 %v1353, 0.0
        %v1529 = vmax.f32 %v1404, 0.0
        %v1530 = vmax.f32 %v1406, 0.0
        %v1531 = vmax.f32 %v1457, 0.0
        %v1532 = vmax.f32 %v1459, 0.0
        %v1533 = vmax.f32 %v1509, 0.0
        %v1534 = vmax.f32 %v1357, 0.0
        %v1535 = vmax.f32 %v1359, 0.0
        %v1536 = vmax.f32 %v1410, 0.0
        %v1537 = vmax.f32 %v1412, 0.0
        %v1538 = vmax.f32 %v1463, 0.0
        %v1539 = vmax.f32 %v1465, 0.0
        %v1540 = vmax.f32 %v1514, 0.0
        %v1541 = vmax.f32 %v1361, 0.0
        %v1542 = vmax.f32 %v1363, 0.0
        %v1543 = vmax.f32 %v1414, 0.0
        %v1544 = vmax.f32 %v1416, 0.0
        %v1545 = vmax.f32 %v1467, 0.0
        %v1546 = vmax.f32 %v1469, 0.0
        %v1547 = vmax.f32 %v1517, 0.0
        %1548 = vrot.lane.b32.xlu0 %v1520, 127
        %v1549 = vpop.permute.xlu0 %1548
        %1550 = vrot.lane.b32.xlu0 %v1527, 127
        %v1551 = vpop.permute.xlu0 %1550
        %1552 = vrot.lane.b32.xlu0 %v1534, 127
        %v1553 = vpop.permute.xlu0 %1552
        %1554 = vrot.lane.b32.xlu0 %v1541, 127
        %v1555 = vpop.permute.xlu0 %1554
        %1556 = vrot.lane.b32.xlu0 %v1521, 127
        %v1557 = vpop.permute.xlu0 %1556
        %1558 = vrot.lane.b32.xlu0 %v1528, 127
        %v1559 = vpop.permute.xlu0 %1558
        %1560 = vrot.lane.b32.xlu0 %v1535, 127
        %v1561 = vpop.permute.xlu0 %1560
        %1562 = vrot.lane.b32.xlu0 %v1542, 127
        %v1563 = vpop.permute.xlu0 %1562
        %1564 = vrot.lane.b32.xlu0 %v1522, 127
        %v1565 = vpop.permute.xlu0 %1564
        %1566 = vrot.lane.b32.xlu0 %v1529, 127
        %v1567 = vpop.permute.xlu0 %1566
        %1568 = vrot.lane.b32.xlu0 %v1536, 127
        %v1569 = vpop.permute.xlu0 %1568
        %1570 = vrot.lane.b32.xlu0 %v1543, 127
        %v1571 = vpop.permute.xlu0 %1570
        %1572 = vrot.lane.b32.xlu0 %v1523, 127
        %v1573 = vpop.permute.xlu0 %1572
        %1574 = vrot.lane.b32.xlu0 %v1530, 127
        %v1575 = vpop.permute.xlu0 %1574
        %1576 = vrot.lane.b32.xlu0 %v1537, 127
        %v1577 = vpop.permute.xlu0 %1576
        %1578 = vrot.lane.b32.xlu0 %v1544, 127
        %v1579 = vpop.permute.xlu0 %1578
        %1580 = vrot.lane.b32.xlu0 %v1524, 127
        %v1581 = vpop.permute.xlu0 %1580
        %1582 = vrot.lane.b32.xlu0 %v1531, 127
        %v1583 = vpop.permute.xlu0 %1582
        %1584 = vrot.lane.b32.xlu0 %v1538, 127
        %v1585 = vpop.permute.xlu0 %1584
        %1586 = vrot.lane.b32.xlu0 %v1545, 127
        %v1587 = vpop.permute.xlu0 %1586
        %1588 = vrot.lane.b32.xlu0 %v1525, 127
        %v1589 = vpop.permute.xlu0 %1588
        %1590 = vrot.lane.b32.xlu0 %v1532, 127
        %v1591 = vpop.permute.xlu0 %1590
        %1592 = vrot.lane.b32.xlu0 %v1539, 127
        %v1593 = vpop.permute.xlu0 %1592
        %1594 = vrot.lane.b32.xlu0 %v1546, 127
        %v1595 = vpop.permute.xlu0 %1594
        %1596 = vrot.lane.b32.xlu0 %v1526, 127
        %v1597 = vpop.permute.xlu0 %1596
        %1598 = vrot.lane.b32.xlu0 %v1533, 127
        %v1599 = vpop.permute.xlu0 %1598
        %1600 = vrot.lane.b32.xlu0 %v1540, 127
        %v1601 = vpop.permute.xlu0 %1600
        %1602 = vrot.lane.b32.xlu0 %v1547, 127
        %v1603 = vpop.permute.xlu0 %1602
        %v1604 = vlaneseq
        %v1605 = vand.u32 %v1604, 127
        %vm1606 = vcmp.lt.s32.totalorder %v1605, 127
        %v1607 = vsel %vm1606, %v1589, %v1597
        %v1608 = vsel %vm1606, %v1591, %v1599
        %v1609 = vsel %vm1606, %v1593, %v1601
        %v1610 = vsel %vm1606, %v1595, %v1603
        %v1611 = vsel %vm1606, %v1581, %v1589
        %v1612 = vsel %vm1606, %v1583, %v1591
        %v1613 = vsel %vm1606, %v1585, %v1593
        %v1614 = vsel %vm1606, %v1587, %v1595
        %v1615 = vsel %vm1606, %v1573, %v1581
        %v1616 = vsel %vm1606, %v1575, %v1583
        %v1617 = vsel %vm1606, %v1577, %v1585
        %v1618 = vsel %vm1606, %v1579, %v1587
        %v1619 = vsel %vm1606, %v1565, %v1573
        %v1620 = vsel %vm1606, %v1567, %v1575
        %v1621 = vsel %vm1606, %v1569, %v1577
        %v1622 = vsel %vm1606, %v1571, %v1579
        %v1623 = vsel %vm1606, %v1557, %v1565
        %v1624 = vsel %vm1606, %v1559, %v1567
        %v1625 = vsel %vm1606, %v1561, %v1569
        %v1626 = vsel %vm1606, %v1563, %v1571
        %v1627 = vsel %vm1606, %v1549, %v1557
        %v1628 = vsel %vm1606, %v1551, %v1559
        %v1629 = vsel %vm1606, %v1553, %v1561
        %v1630 = vsel %vm1606, %v1555, %v1563
        %v1631 = vsel %vm1606, %v1597, %v1549
        %v1632 = vsel %vm1606, %v1599, %v1551
        %v1633 = vsel %vm1606, %v1601, %v1553
        %v1634 = vsel %vm1606, %v1603, %v1555
        %v1635 = vmax.f32 %v1520, %v1627
        %v1636 = vmax.f32 %v1521, %v1623
        %v1637 = vmax.f32 %v1522, %v1619
        %v1638 = vmax.f32 %v1523, %v1615
        %v1639 = vmax.f32 %v1524, %v1611
        %v1640 = vmax.f32 %v1525, %v1607
        %v1641 = vmax.f32 %v1526, %v1631
        %v1642 = vmax.f32 %v1527, %v1628
        %v1643 = vmax.f32 %v1528, %v1624
        %v1644 = vmax.f32 %v1529, %v1620
        %v1645 = vmax.f32 %v1530, %v1616
        %v1646 = vmax.f32 %v1531, %v1612
        %v1647 = vmax.f32 %v1532, %v1608
        %v1648 = vmax.f32 %v1533, %v1632
        %v1649 = vmax.f32 %v1534, %v1629
        %v1650 = vmax.f32 %v1535, %v1625
        %v1651 = vmax.f32 %v1536, %v1621
        %v1652 = vmax.f32 %v1537, %v1617
        %v1653 = vmax.f32 %v1538, %v1613
        %v1654 = vmax.f32 %v1539, %v1609
        %v1655 = vmax.f32 %v1540, %v1633
        %v1656 = vmax.f32 %v1541, %v1630
        %v1657 = vmax.f32 %v1542, %v1626
        %v1658 = vmax.f32 %v1543, %v1622
        %v1659 = vmax.f32 %v1544, %v1618
        %v1660 = vmax.f32 %v1545, %v1614
        %v1661 = vmax.f32 %v1546, %v1610
        %v1662 = vmax.f32 %v1547, %v1634
        %1663 = vrot.lane.b32.xlu0 %v1520, 96
        %v1664 = vpop.permute.xlu0 %1663
        %1665 = vrot.lane.b32.xlu0 %v1527, 96
        %v1666 = vpop.permute.xlu0 %1665
        %1667 = vrot.lane.b32.xlu0 %v1534, 96
        %v1668 = vpop.permute.xlu0 %1667
        %1669 = vrot.lane.b32.xlu0 %v1541, 96
        %v1670 = vpop.permute.xlu0 %1669
        %1671 = vrot.lane.b32.xlu0 %v1521, 96
        %v1672 = vpop.permute.xlu0 %1671
        %1673 = vrot.lane.b32.xlu0 %v1528, 96
        %v1674 = vpop.permute.xlu0 %1673
        %1675 = vrot.lane.b32.xlu0 %v1535, 96
        %v1676 = vpop.permute.xlu0 %1675
        %1677 = vrot.lane.b32.xlu0 %v1542, 96
        %v1678 = vpop.permute.xlu0 %1677
        %1679 = vrot.lane.b32.xlu0 %v1522, 96
        %v1680 = vpop.permute.xlu0 %1679
        %1681 = vrot.lane.b32.xlu0 %v1529, 96
        %v1682 = vpop.permute.xlu0 %1681
        %1683 = vrot.lane.b32.xlu0 %v1536, 96
        %v1684 = vpop.permute.xlu0 %1683
        %1685 = vrot.lane.b32.xlu0 %v1543, 96
        %v1686 = vpop.permute.xlu0 %1685
        %1687 = vrot.lane.b32.xlu0 %v1523, 96
        %v1688 = vpop.permute.xlu0 %1687
        %1689 = vrot.lane.b32.xlu0 %v1530, 96
        %v1690 = vpop.permute.xlu0 %1689
        %1691 = vrot.lane.b32.xlu0 %v1537, 96
        %v1692 = vpop.permute.xlu0 %1691
        %1693 = vrot.lane.b32.xlu0 %v1544, 96
        %v1694 = vpop.permute.xlu0 %1693
        %1695 = vrot.lane.b32.xlu0 %v1524, 96
        %v1696 = vpop.permute.xlu0 %1695
        %1697 = vrot.lane.b32.xlu0 %v1531, 96
        %v1698 = vpop.permute.xlu0 %1697
        %1699 = vrot.lane.b32.xlu0 %v1538, 96
        %v1700 = vpop.permute.xlu0 %1699
        %1701 = vrot.lane.b32.xlu0 %v1545, 96
        %v1702 = vpop.permute.xlu0 %1701
        %1703 = vrot.lane.b32.xlu0 %v1525, 96
        %v1704 = vpop.permute.xlu0 %1703
        %1705 = vrot.lane.b32.xlu0 %v1532, 96
        %v1706 = vpop.permute.xlu0 %1705
        %1707 = vrot.lane.b32.xlu0 %v1539, 96
        %v1708 = vpop.permute.xlu0 %1707
        %1709 = vrot.lane.b32.xlu0 %v1546, 96
        %v1710 = vpop.permute.xlu0 %1709
        %1711 = vrot.lane.b32.xlu0 %v1526, 96
        %v1712 = vpop.permute.xlu0 %1711
        %1713 = vrot.lane.b32.xlu0 %v1533, 96
        %v1714 = vpop.permute.xlu0 %1713
        %1715 = vrot.lane.b32.xlu0 %v1540, 96
        %v1716 = vpop.permute.xlu0 %1715
        %1717 = vrot.lane.b32.xlu0 %v1547, 96
        %v1718 = vpop.permute.xlu0 %1717
        %vm1719 = vcmp.lt.s32.totalorder %v1605, 96
        %v1720 = vsel %vm1719, %v1704, %v1712
        %v1721 = vsel %vm1719, %v1706, %v1714
        %v1722 = vsel %vm1719, %v1708, %v1716
        %v1723 = vsel %vm1719, %v1710, %v1718
        %v1724 = vsel %vm1719, %v1696, %v1704
        %v1725 = vsel %vm1719, %v1698, %v1706
        %v1726 = vsel %vm1719, %v1700, %v1708
        %v1727 = vsel %vm1719, %v1702, %v1710
        %v1728 = vsel %vm1719, %v1688, %v1696
        %v1729 = vsel %vm1719, %v1690, %v1698
        %v1730 = vsel %vm1719, %v1692, %v1700
        %v1731 = vsel %vm1719, %v1694, %v1702
        %v1732 = vsel %vm1719, %v1680, %v1688
        %v1733 = vsel %vm1719, %v1682, %v1690
        %v1734 = vsel %vm1719, %v1684, %v1692
        %v1735 = vsel %vm1719, %v1686, %v1694
        %v1736 = vsel %vm1719, %v1672, %v1680
        %v1737 = vsel %vm1719, %v1674, %v1682
        %v1738 = vsel %vm1719, %v1676, %v1684
        %v1739 = vsel %vm1719, %v1678, %v1686
        %v1740 = vsel %vm1719, %v1664, %v1672
        %v1741 = vsel %vm1719, %v1666, %v1674
        %v1742 = vsel %vm1719, %v1668, %v1676
        %v1743 = vsel %vm1719, %v1670, %v1678
        %v1744 = vsel %vm1719, %v1712, %v1664
        %v1745 = vsel %vm1719, %v1714, %v1666
        %v1746 = vsel %vm1719, %v1716, %v1668
        %v1747 = vsel %vm1719, %v1718, %v1670
        %1748 = vrot.lane.b32.xlu0 %v1520, 95
        %v1749 = vpop.permute.xlu0 %1748
        %1750 = vrot.lane.b32.xlu0 %v1527, 95
        %v1751 = vpop.permute.xlu0 %1750
        %1752 = vrot.lane.b32.xlu0 %v1534, 95
        %v1753 = vpop.permute.xlu0 %1752
        %1754 = vrot.lane.b32.xlu0 %v1541, 95
        %v1755 = vpop.permute.xlu0 %1754
        %1756 = vrot.lane.b32.xlu0 %v1521, 95
        %v1757 = vpop.permute.xlu0 %1756
        %1758 = vrot.lane.b32.xlu0 %v1528, 95
        %v1759 = vpop.permute.xlu0 %1758
        %1760 = vrot.lane.b32.xlu0 %v1535, 95
        %v1761 = vpop.permute.xlu0 %1760
        %1762 = vrot.lane.b32.xlu0 %v1542, 95
        %v1763 = vpop.permute.xlu0 %1762
        %1764 = vrot.lane.b32.xlu0 %v1522, 95
        %v1765 = vpop.permute.xlu0 %1764
        %1766 = vrot.lane.b32.xlu0 %v1529, 95
        %v1767 = vpop.permute.xlu0 %1766
        %1768 = vrot.lane.b32.xlu0 %v1536, 95
        %v1769 = vpop.permute.xlu0 %1768
        %1770 = vrot.lane.b32.xlu0 %v1543, 95
        %v1771 = vpop.permute.xlu0 %1770
        %1772 = vrot.lane.b32.xlu0 %v1523, 95
        %v1773 = vpop.permute.xlu0 %1772
        %1774 = vrot.lane.b32.xlu0 %v1530, 95
        %v1775 = vpop.permute.xlu0 %1774
        %1776 = vrot.lane.b32.xlu0 %v1537, 95
        %v1777 = vpop.permute.xlu0 %1776
        %1778 = vrot.lane.b32.xlu0 %v1544, 95
        %v1779 = vpop.permute.xlu0 %1778
        %1780 = vrot.lane.b32.xlu0 %v1524, 95
        %v1781 = vpop.permute.xlu0 %1780
        %1782 = vrot.lane.b32.xlu0 %v1531, 95
        %v1783 = vpop.permute.xlu0 %1782
        %1784 = vrot.lane.b32.xlu0 %v1538, 95
        %v1785 = vpop.permute.xlu0 %1784
        %1786 = vrot.lane.b32.xlu0 %v1545, 95
        %v1787 = vpop.permute.xlu0 %1786
        %1788 = vrot.lane.b32.xlu0 %v1525, 95
        %v1789 = vpop.permute.xlu0 %1788
        %1790 = vrot.lane.b32.xlu0 %v1532, 95
        %v1791 = vpop.permute.xlu0 %1790
        %1792 = vrot.lane.b32.xlu0 %v1539, 95
        %v1793 = vpop.permute.xlu0 %1792
        %1794 = vrot.lane.b32.xlu0 %v1546, 95
        %v1795 = vpop.permute.xlu0 %1794
        %1796 = vrot.lane.b32.xlu0 %v1526, 95
        %v1797 = vpop.permute.xlu0 %1796
        %1798 = vrot.lane.b32.xlu0 %v1533, 95
        %v1799 = vpop.permute.xlu0 %1798
        %1800 = vrot.lane.b32.xlu0 %v1540, 95
        %v1801 = vpop.permute.xlu0 %1800
        %1802 = vrot.lane.b32.xlu0 %v1547, 95
        %v1803 = vpop.permute.xlu0 %1802
        %vm1804 = vcmp.lt.s32.totalorder %v1605, 95
        %v1805 = vsel %vm1804, %v1789, %v1797
        %v1806 = vsel %vm1804, %v1791, %v1799
        %v1807 = vsel %vm1804, %v1793, %v1801
        %v1808 = vsel %vm1804, %v1795, %v1803
        %v1809 = vsel %vm1804, %v1781, %v1789
        %v1810 = vsel %vm1804, %v1783, %v1791
        %v1811 = vsel %vm1804, %v1785, %v1793
        %v1812 = vsel %vm1804, %v1787, %v1795
        %v1813 = vsel %vm1804, %v1773, %v1781
        %v1814 = vsel %vm1804, %v1775, %v1783
        %v1815 = vsel %vm1804, %v1777, %v1785
        %v1816 = vsel %vm1804, %v1779, %v1787
        %v1817 = vsel %vm1804, %v1765, %v1773
        %v1818 = vsel %vm1804, %v1767, %v1775
        %v1819 = vsel %vm1804, %v1769, %v1777
        %v1820 = vsel %vm1804, %v1771, %v1779
        %v1821 = vsel %vm1804, %v1757, %v1765
        %v1822 = vsel %vm1804, %v1759, %v1767
        %v1823 = vsel %vm1804, %v1761, %v1769
        %v1824 = vsel %vm1804, %v1763, %v1771
        %v1825 = vsel %vm1804, %v1749, %v1757
        %v1826 = vsel %vm1804, %v1751, %v1759
        %v1827 = vsel %vm1804, %v1753, %v1761
        %v1828 = vsel %vm1804, %v1755, %v1763
        %v1829 = vsel %vm1804, %v1797, %v1749
        %v1830 = vsel %vm1804, %v1799, %v1751
        %v1831 = vsel %vm1804, %v1801, %v1753
        %v1832 = vsel %vm1804, %v1803, %v1755
        %v1833 = vmax.f32 %v1740, %v1825
        %v1834 = vmax.f32 %v1736, %v1821
        %v1835 = vmax.f32 %v1732, %v1817
        %v1836 = vmax.f32 %v1728, %v1813
        %v1837 = vmax.f32 %v1724, %v1809
        %v1838 = vmax.f32 %v1720, %v1805
        %v1839 = vmax.f32 %v1744, %v1829
        %v1840 = vmax.f32 %v1741, %v1826
        %v1841 = vmax.f32 %v1737, %v1822
        %v1842 = vmax.f32 %v1733, %v1818
        %v1843 = vmax.f32 %v1729, %v1814
        %v1844 = vmax.f32 %v1725, %v1810
        %v1845 = vmax.f32 %v1721, %v1806
        %v1846 = vmax.f32 %v1745, %v1830
        %v1847 = vmax.f32 %v1742, %v1827
        %v1848 = vmax.f32 %v1738, %v1823
        %v1849 = vmax.f32 %v1734, %v1819
        %v1850 = vmax.f32 %v1730, %v1815
        %v1851 = vmax.f32 %v1726, %v1811
        %v1852 = vmax.f32 %v1722, %v1807
        %v1853 = vmax.f32 %v1746, %v1831
        %v1854 = vmax.f32 %v1743, %v1828
        %v1855 = vmax.f32 %v1739, %v1824
        %v1856 = vmax.f32 %v1735, %v1820
        %v1857 = vmax.f32 %v1731, %v1816
        %v1858 = vmax.f32 %v1727, %v1812
        %v1859 = vmax.f32 %v1723, %v1808
        %v1860 = vmax.f32 %v1747, %v1832
        %v1861 = vmax.f32 %v1635, %v1833
        %v1862 = vmax.f32 %v1636, %v1834
        %v1863 = vmax.f32 %v1637, %v1835
        %v1864 = vmax.f32 %v1638, %v1836
        %v1865 = vmax.f32 %v1639, %v1837
        %v1866 = vmax.f32 %v1640, %v1838
        %v1867 = vmax.f32 %v1641, %v1839
        %v1868 = vmax.f32 %v1642, %v1840
        %v1869 = vmax.f32 %v1643, %v1841
        %v1870 = vmax.f32 %v1644, %v1842
        %v1871 = vmax.f32 %v1645, %v1843
        %v1872 = vmax.f32 %v1646, %v1844
        %v1873 = vmax.f32 %v1647, %v1845
        %v1874 = vmax.f32 %v1648, %v1846
        %v1875 = vmax.f32 %v1649, %v1847
        %v1876 = vmax.f32 %v1650, %v1848
        %v1877 = vmax.f32 %v1651, %v1849
        %v1878 = vmax.f32 %v1652, %v1850
        %v1879 = vmax.f32 %v1653, %v1851
        %v1880 = vmax.f32 %v1654, %v1852
        %v1881 = vmax.f32 %v1655, %v1853
        %v1882 = vmax.f32 %v1656, %v1854
        %v1883 = vmax.f32 %v1657, %v1855
        %v1884 = vmax.f32 %v1658, %v1856
        %v1885 = vmax.f32 %v1659, %v1857
        %v1886 = vmax.f32 %v1660, %v1858
        %v1887 = vmax.f32 %v1661, %v1859
        %v1888 = vmax.f32 %v1662, %v1860
        %v1889 = vpack.c.bf16 %v1868, %v1861
        %v1890 = vpack.c.bf16 %v1869, %v1862
        %v1891 = vpack.c.bf16 %v1870, %v1863
        %v1892 = vpack.c.bf16 %v1871, %v1864
        %v1893 = vpack.c.bf16 %v1872, %v1865
        %v1894 = vpack.c.bf16 %v1873, %v1866
        %v1895 = vpack.c.bf16 %v1874, %v1867
        %v1896 = vpack.c.bf16 %v1882, %v1875
        %v1897 = vpack.c.bf16 %v1883, %v1876
        %v1898 = vpack.c.bf16 %v1884, %v1877
        %v1899 = vpack.c.bf16 %v1885, %v1878
        %v1900 = vpack.c.bf16 %v1886, %v1879
        %v1901 = vpack.c.bf16 %v1887, %v1880
        %v1902 = vpack.c.bf16 %v1888, %v1881
        %v1903 = vld [vmem:[%s3] sm:$0xff]
        %v1904 = vld [vmem:[%s3 + $0x8] sm:$0xf]
        %v1905 = vld [vmem:[%s3 + $0xc] sm:$0xff]
        %v1906 = vld [vmem:[%s3 + $0x14] sm:$0xf]
        %v1907 = vld [vmem:[%s3 + $0x18] sm:$0xff]
        %v1908 = vld [vmem:[%s3 + $0x20] sm:$0xf]
        %v1909 = vld [vmem:[%s3 + $0x24] sm:$0xff]
        %v1910 = vld [vmem:[%s3 + $0x2c] sm:$0xf]
        %v1911 = vld [vmem:[%s3 + $0x30] sm:$0xff]
        %v1912 = vld [vmem:[%s3 + $0x38] sm:$0xf]
        %v1913 = vld [vmem:[%s3 + $0x3c] sm:$0xff]
        %v1914 = vld [vmem:[%s3 + $0x44] sm:$0xf]
        %v1915 = vld [vmem:[%s3 + $0x48] sm:$0xff]
        %v1916 = vld [vmem:[%s3 + $0x50] sm:$0xf]
        %v1917 = vld [vmem:[%s3 + $0x54] sm:$0xff]
        %v1918 = vld [vmem:[%s3 + $0x5c] sm:$0xf]
        %v1919 = vld [vmem:[%s3 + $0x60] sm:$0xff]
        %v1920 = vld [vmem:[%s3 + $0x68] sm:$0xf]
        %v1921 = vld [vmem:[%s3 + $0x6c] sm:$0xff]
        %v1922 = vld [vmem:[%s3 + $0x74] sm:$0xf]
        %v1923 = vld [vmem:[%s3 + $0x78] sm:$0xff]
        %v1924 = vld [vmem:[%s3 + $0x80] sm:$0xf]
        %v1925 = vld [vmem:[%s3 + $0x84] sm:$0xff]
        %v1926 = vld [vmem:[%s3 + $0x8c] sm:$0xf]
        %v1927 = vld [vmem:[%s3 + $0x90] sm:$0xff]
        %v1928 = vld [vmem:[%s3 + $0x98] sm:$0xf]
        %v1929 = vld [vmem:[%s3 + $0x9c] sm:$0xff]
        %v1930 = vld [vmem:[%s3 + $0xa4] sm:$0xf]
        %v1931 = vld [vmem:[%s3 + $0xa8] sm:$0xff]
        %v1932 = vld [vmem:[%s3 + $0xb0] sm:$0xf]
        %v1933 = vld [vmem:[%s3 + $0xb4] sm:$0xff]
        %v1934 = vld [vmem:[%s3 + $0xbc] sm:$0xf]
        %v1935 = vld [vmem:[%s3 + $0xc0] sm:$0xff]
        %v1936 = vld [vmem:[%s3 + $0xc8] sm:$0xf]
        %v1937 = vld [vmem:[%s3 + $0xcc] sm:$0xff]
        %v1938 = vld [vmem:[%s3 + $0xd4] sm:$0xf]
        %v1939 = vld [vmem:[%s3 + $0xd8] sm:$0xff]
        %v1940 = vld [vmem:[%s3 + $0xe0] sm:$0xf]
        %v1941 = vld [vmem:[%s3 + $0xe4] sm:$0xff]
        %v1942 = vld [vmem:[%s3 + $0xec] sm:$0xf]
        %v1943 = vld [vmem:[%s3 + $0xf0] sm:$0xff]
        %v1944 = vld [vmem:[%s3 + $0xf8] sm:$0xf]
        %v1945 = vld [vmem:[%s3 + $0xfc] sm:$0xff]
        %v1946 = vld [vmem:[%s3 + $0x104] sm:$0xf]
        %v1947 = vld [vmem:[%s3 + $0x108] sm:$0xff]
        %v1948 = vld [vmem:[%s3 + $0x110] sm:$0xf]
        %v1949 = vld [vmem:[%s3 + $0x114] sm:$0xff]
        %v1950 = vld [vmem:[%s3 + $0x11c] sm:$0xf]
        %v1951 = vld [vmem:[%s3 + $0x120] sm:$0xff]
        %v1952 = vld [vmem:[%s3 + $0x128] sm:$0xf]
        %v1953 = vld [vmem:[%s3 + $0x12c] sm:$0xff]
        %v1954 = vld [vmem:[%s3 + $0x134] sm:$0xf]
        %v1955 = vld [vmem:[%s3 + $0x138] sm:$0xff]
        %v1956 = vld [vmem:[%s3 + $0x140] sm:$0xf]
        %v1957 = vld [vmem:[%s3 + $0x144] sm:$0xff]
        %v1958 = vld [vmem:[%s3 + $0x14c] sm:$0xf]
        %v1959 = vld [vmem:[%s3 + $0x150] sm:$0xff]
        %v1960 = vld [vmem:[%s3 + $0x158] sm:$0xf]
        %v1961 = vld [vmem:[%s3 + $0x15c] sm:$0xff]
        %v1962 = vld [vmem:[%s3 + $0x164] sm:$0xf]
        %v1963 = vld [vmem:[%s3 + $0x168] sm:$0xff]
        %v1964 = vld [vmem:[%s3 + $0x170] sm:$0xf]
        %v1965 = vld [vmem:[%s3 + $0x174] sm:$0xff]
        %v1966 = vld [vmem:[%s3 + $0x17c] sm:$0xf]
        %v1967 = vld [vmem:[%s3 + $0x180] sm:$0xff]
        %v1968 = vld [vmem:[%s3 + $0x188] sm:$0xf]
        %v1969 = vld [vmem:[%s3 + $0x18c] sm:$0xff]
        %v1970 = vld [vmem:[%s3 + $0x194] sm:$0xf]
        %v1971 = vld [vmem:[%s3 + $0x198] sm:$0xff]
        %v1972 = vld [vmem:[%s3 + $0x1a0] sm:$0xf]
        %v1973 = vld [vmem:[%s3 + $0x1a4] sm:$0xff]
        %v1974 = vld [vmem:[%s3 + $0x1ac] sm:$0xf]
        %v1975 = vld [vmem:[%s3 + $0x1b0] sm:$0xff]
        %v1976 = vld [vmem:[%s3 + $0x1b8] sm:$0xf]
        %v1977 = vld [vmem:[%s3 + $0x1bc] sm:$0xff]
        %v1978 = vld [vmem:[%s3 + $0x1c4] sm:$0xf]
        %v1979 = vld [vmem:[%s3 + $0x1c8] sm:$0xff]
        %v1980 = vld [vmem:[%s3 + $0x1d0] sm:$0xf]
        %v1981 = vld [vmem:[%s3 + $0x1d4] sm:$0xff]
        %v1982 = vld [vmem:[%s3 + $0x1dc] sm:$0xf]
        %v1983 = vld [vmem:[%s3 + $0x1e0] sm:$0xff]
        %v1984 = vld [vmem:[%s3 + $0x1e8] sm:$0xf]
        %v1985 = vld [vmem:[%s3 + $0x1ec] sm:$0xff]
        %v1986 = vld [vmem:[%s3 + $0x1f4] sm:$0xf]
        %v1987 = vld [vmem:[%s3 + $0x1f8] sm:$0xff]
        %v1988 = vld [vmem:[%s3 + $0x200] sm:$0xf]
        %v1989 = vld [vmem:[%s3 + $0x204] sm:$0xff]
        %v1990 = vld [vmem:[%s3 + $0x20c] sm:$0xf]
        %v1991 = vld [vmem:[%s3 + $0x210] sm:$0xff]
        %v1992 = vld [vmem:[%s3 + $0x218] sm:$0xf]
        %v1993 = vld [vmem:[%s3 + $0x21c] sm:$0xff]
        %v1994 = vld [vmem:[%s3 + $0x224] sm:$0xf]
        %v1995 = vld [vmem:[%s3 + $0x228] sm:$0xff]
        %v1996 = vld [vmem:[%s3 + $0x230] sm:$0xf]
        %v1997 = vld [vmem:[%s3 + $0x234] sm:$0xff]
        %v1998 = vld [vmem:[%s3 + $0x23c] sm:$0xf]
        %v1999 = vld [vmem:[%s3 + $0x240] sm:$0xff]
        %v2000 = vld [vmem:[%s3 + $0x248] sm:$0xf]
        %v2001 = vld [vmem:[%s3 + $0x24c] sm:$0xff]
        %v2002 = vld [vmem:[%s3 + $0x254] sm:$0xf]
        %v2003 = vld [vmem:[%s3 + $0x258] sm:$0xff]
        %v2004 = vld [vmem:[%s3 + $0x260] sm:$0xf]
        %v2005 = vld [vmem:[%s3 + $0x264] sm:$0xff]
        %v2006 = vld [vmem:[%s3 + $0x26c] sm:$0xf]
        %v2007 = vld [vmem:[%s3 + $0x270] sm:$0xff]
        %v2008 = vld [vmem:[%s3 + $0x278] sm:$0xf]
        %v2009 = vld [vmem:[%s3 + $0x27c] sm:$0xff]
        %v2010 = vld [vmem:[%s3 + $0x284] sm:$0xf]
        %v2011 = vld [vmem:[%s3 + $0x288] sm:$0xff]
        %v2012 = vld [vmem:[%s3 + $0x290] sm:$0xf]
        %v2013 = vld [vmem:[%s3 + $0x294] sm:$0xff]
        %v2014 = vld [vmem:[%s3 + $0x29c] sm:$0xf]
        %v2015 = vld [vmem:[%s3 + $0x2a0] sm:$0xff]
        %v2016 = vld [vmem:[%s3 + $0x2a8] sm:$0xf]
        %v2017 = vld [vmem:[%s3 + $0x2ac] sm:$0xff]
        %v2018 = vld [vmem:[%s3 + $0x2b4] sm:$0xf]
        %v2019 = vld [vmem:[%s3 + $0x2b8] sm:$0xff]
        %v2020 = vld [vmem:[%s3 + $0x2c0] sm:$0xf]
        %v2021 = vld [vmem:[%s3 + $0x2c4] sm:$0xff]
        %v2022 = vld [vmem:[%s3 + $0x2cc] sm:$0xf]
        %v2023 = vld [vmem:[%s3 + $0x2d0] sm:$0xff]
        %v2024 = vld [vmem:[%s3 + $0x2d8] sm:$0xf]
        %v2025 = vld [vmem:[%s3 + $0x2dc] sm:$0xff]
        %v2026 = vld [vmem:[%s3 + $0x2e4] sm:$0xf]
        %v2027 = vld [vmem:[%s3 + $0x2e8] sm:$0xff]
        %v2028 = vld [vmem:[%s3 + $0x2f0] sm:$0xf]
        %v2029 = vld [vmem:[%s3 + $0x2f4] sm:$0xff]
        %v2030 = vld [vmem:[%s3 + $0x2fc] sm:$0xf]
        %v2031 = vld [vmem:[%s3 + $0x300] sm:$0xff]
        %v2032 = vld [vmem:[%s3 + $0x308] sm:$0xf]
        %v2033 = vld [vmem:[%s3 + $0x30c] sm:$0xff]
        %v2034 = vld [vmem:[%s3 + $0x314] sm:$0xf]
        %v2035 = vld [vmem:[%s3 + $0x318] sm:$0xff]
        %v2036 = vld [vmem:[%s3 + $0x320] sm:$0xf]
        %v2037 = vld [vmem:[%s3 + $0x324] sm:$0xff]
        %v2038 = vld [vmem:[%s3 + $0x32c] sm:$0xf]
        %v2039 = vld [vmem:[%s3 + $0x330] sm:$0xff]
        %v2040 = vld [vmem:[%s3 + $0x338] sm:$0xf]
        %v2041 = vld [vmem:[%s3 + $0x33c] sm:$0xff]
        %v2042 = vld [vmem:[%s3 + $0x344] sm:$0xf]
        %v2043 = vld [vmem:[%s3 + $0x348] sm:$0xff]
        %v2044 = vld [vmem:[%s3 + $0x350] sm:$0xf]
        %v2045 = vld [vmem:[%s3 + $0x354] sm:$0xff]
        %v2046 = vld [vmem:[%s3 + $0x35c] sm:$0xf]
        %v2047 = vld [vmem:[%s3 + $0x360] sm:$0xff]
        %v2048 = vld [vmem:[%s3 + $0x368] sm:$0xf]
        %v2049 = vld [vmem:[%s3 + $0x36c] sm:$0xff]
        %v2050 = vld [vmem:[%s3 + $0x374] sm:$0xf]
        %v2051 = vld [vmem:[%s3 + $0x378] sm:$0xff]
        %v2052 = vld [vmem:[%s3 + $0x380] sm:$0xf]
        %v2053 = vld [vmem:[%s3 + $0x384] sm:$0xff]
        %v2054 = vld [vmem:[%s3 + $0x38c] sm:$0xf]
        %v2055 = vld [vmem:[%s3 + $0x390] sm:$0xff]
        %v2056 = vld [vmem:[%s3 + $0x398] sm:$0xf]
        %v2057 = vld [vmem:[%s3 + $0x39c] sm:$0xff]
        %v2058 = vld [vmem:[%s3 + $0x3a4] sm:$0xf]
        %v2059 = vld [vmem:[%s3 + $0x3a8] sm:$0xff]
        %v2060 = vld [vmem:[%s3 + $0x3b0] sm:$0xf]
        %v2061 = vld [vmem:[%s3 + $0x3b4] sm:$0xff]
        %v2062 = vld [vmem:[%s3 + $0x3bc] sm:$0xf]
        %v2063 = vld [vmem:[%s3 + $0x3c0] sm:$0xff]
        %v2064 = vld [vmem:[%s3 + $0x3c8] sm:$0xf]
        %v2065 = vld [vmem:[%s3 + $0x3cc] sm:$0xff]
        %v2066 = vld [vmem:[%s3 + $0x3d4] sm:$0xf]
        %v2067 = vld [vmem:[%s3 + $0x3d8] sm:$0xff]
        %v2068 = vld [vmem:[%s3 + $0x3e0] sm:$0xf]
        %v2069 = vld [vmem:[%s3 + $0x3e4] sm:$0xff]
        %v2070 = vld [vmem:[%s3 + $0x3ec] sm:$0xf]
        %v2071 = vld [vmem:[%s3 + $0x3f0] sm:$0xff]
        %v2072 = vld [vmem:[%s3 + $0x3f8] sm:$0xf]
        %v2073 = vld [vmem:[%s3 + $0x3fc] sm:$0xff]
        %v2074 = vld [vmem:[%s3 + $0x404] sm:$0xf]
        %v2075 = vld [vmem:[%s3 + $0x408] sm:$0xff]
        %v2076 = vld [vmem:[%s3 + $0x410] sm:$0xf]
        %v2077 = vld [vmem:[%s3 + $0x414] sm:$0xff]
        %v2078 = vld [vmem:[%s3 + $0x41c] sm:$0xf]
        %v2079 = vld [vmem:[%s3 + $0x420] sm:$0xff]
        %v2080 = vld [vmem:[%s3 + $0x428] sm:$0xf]
        %v2081 = vld [vmem:[%s3 + $0x42c] sm:$0xff]
        %v2082 = vld [vmem:[%s3 + $0x434] sm:$0xf]
        %v2083 = vld [vmem:[%s3 + $0x438] sm:$0xff]
        %v2084 = vld [vmem:[%s3 + $0x440] sm:$0xf]
        %v2085 = vld [vmem:[%s3 + $0x444] sm:$0xff]
        %v2086 = vld [vmem:[%s3 + $0x44c] sm:$0xf]
        %v2087 = vld [vmem:[%s3 + $0x450] sm:$0xff]
        %v2088 = vld [vmem:[%s3 + $0x458] sm:$0xf]
        %v2089 = vld [vmem:[%s3 + $0x45c] sm:$0xff]
        %v2090 = vld [vmem:[%s3 + $0x464] sm:$0xf]
        %v2091 = vld [vmem:[%s3 + $0x468] sm:$0xff]
        %v2092 = vld [vmem:[%s3 + $0x470] sm:$0xf]
        %v2093 = vld [vmem:[%s3 + $0x474] sm:$0xff]
        %v2094 = vld [vmem:[%s3 + $0x47c] sm:$0xf]
        %v2095 = vld [vmem:[%s3 + $0x480] sm:$0xff]
        %v2096 = vld [vmem:[%s3 + $0x488] sm:$0xf]
        %v2097 = vld [vmem:[%s3 + $0x48c] sm:$0xff]
        %v2098 = vld [vmem:[%s3 + $0x494] sm:$0xf]
        %v2099 = vld [vmem:[%s3 + $0x498] sm:$0xff]
        %v2100 = vld [vmem:[%s3 + $0x4a0] sm:$0xf]
        %v2101 = vld [vmem:[%s3 + $0x4a4] sm:$0xff]
        %v2102 = vld [vmem:[%s3 + $0x4ac] sm:$0xf]
        %v2103 = vld [vmem:[%s3 + $0x4b0] sm:$0xff]
        %v2104 = vld [vmem:[%s3 + $0x4b8] sm:$0xf]
        %v2105 = vld [vmem:[%s3 + $0x4bc] sm:$0xff]
        %v2106 = vld [vmem:[%s3 + $0x4c4] sm:$0xf]
        %v2107 = vld [vmem:[%s3 + $0x4c8] sm:$0xff]
        %v2108 = vld [vmem:[%s3 + $0x4d0] sm:$0xf]
        %v2109 = vld [vmem:[%s3 + $0x4d4] sm:$0xff]
        %v2110 = vld [vmem:[%s3 + $0x4dc] sm:$0xf]
        %v2111 = vld [vmem:[%s3 + $0x4e0] sm:$0xff]
        %v2112 = vld [vmem:[%s3 + $0x4e8] sm:$0xf]
        %v2113 = vld [vmem:[%s3 + $0x4ec] sm:$0xff]
        %v2114 = vld [vmem:[%s3 + $0x4f4] sm:$0xf]
        %v2115 = vld [vmem:[%s3 + $0x4f8] sm:$0xff]
        %v2116 = vld [vmem:[%s3 + $0x500] sm:$0xf]
        %v2117 = vld [vmem:[%s3 + $0x504] sm:$0xff]
        %v2118 = vld [vmem:[%s3 + $0x50c] sm:$0xf]
        %v2119 = vld [vmem:[%s3 + $0x510] sm:$0xff]
        %v2120 = vld [vmem:[%s3 + $0x518] sm:$0xf]
        %v2121 = vld [vmem:[%s3 + $0x51c] sm:$0xff]
        %v2122 = vld [vmem:[%s3 + $0x524] sm:$0xf]
        %v2123 = vld [vmem:[%s3 + $0x528] sm:$0xff]
        %v2124 = vld [vmem:[%s3 + $0x530] sm:$0xf]
        %v2125 = vld [vmem:[%s3 + $0x534] sm:$0xff]
        %v2126 = vld [vmem:[%s3 + $0x53c] sm:$0xf]
        %v2351 = vunpack.c.l.b16 %v1903
        %v2352 = vunpack.c.h.b16 %v1903
        %v2353 = vunpack.c.l.b16 %v1904
        %v2354 = vunpack.c.l.b16 %v1905
        %v2355 = vunpack.c.h.b16 %v1905
        %v2356 = vunpack.c.l.b16 %v1906
        %v2357 = vunpack.c.l.b16 %v1907
        %v2358 = vunpack.c.h.b16 %v1907
        %v2359 = vunpack.c.l.b16 %v1908
        %v2360 = vunpack.c.l.b16 %v1909
        %v2361 = vunpack.c.h.b16 %v1909
        %v2362 = vunpack.c.l.b16 %v1910
        %v2363 = vunpack.c.l.b16 %v1911
        %v2364 = vunpack.c.h.b16 %v1911
        %v2365 = vunpack.c.l.b16 %v1912
        %v2366 = vunpack.c.l.b16 %v1913
        %v2367 = vunpack.c.h.b16 %v1913
        %v2368 = vunpack.c.l.b16 %v1914
        %v2369 = vunpack.c.l.b16 %v1915
        %v2370 = vunpack.c.h.b16 %v1915
        %v2371 = vunpack.c.l.b16 %v1916
        %v2372 = vunpack.c.l.b16 %v1917
        %v2373 = vunpack.c.h.b16 %v1917
        %v2374 = vunpack.c.l.b16 %v1918
        %v2375 = vunpack.c.l.b16 %v1919
        %v2376 = vunpack.c.h.b16 %v1919
        %v2377 = vunpack.c.l.b16 %v1920
        %v2378 = vunpack.c.l.b16 %v1921
        %v2379 = vunpack.c.h.b16 %v1921
        %v2380 = vunpack.c.l.b16 %v1922
        %v2381 = vunpack.c.l.b16 %v1923
        %v2382 = vunpack.c.h.b16 %v1923
        %v2383 = vunpack.c.l.b16 %v1924
        %v2384 = vunpack.c.l.b16 %v1925
        %v2385 = vunpack.c.h.b16 %v1925
        %v2386 = vunpack.c.l.b16 %v1926
        %v2387 = vunpack.c.l.b16 %v1927
        %v2388 = vunpack.c.h.b16 %v1927
        %v2389 = vunpack.c.l.b16 %v1928
        %v2390 = vunpack.c.l.b16 %v1929
        %v2391 = vunpack.c.h.b16 %v1929
        %v2392 = vunpack.c.l.b16 %v1930
        %v2393 = vunpack.c.l.b16 %v1931
        %v2394 = vunpack.c.h.b16 %v1931
        %v2395 = vunpack.c.l.b16 %v1932
        %v2396 = vunpack.c.l.b16 %v1933
        %v2397 = vunpack.c.h.b16 %v1933
        %v2398 = vunpack.c.l.b16 %v1934
        %v2399 = vunpack.c.l.b16 %v1935
        %v2400 = vunpack.c.h.b16 %v1935
        %v2401 = vunpack.c.l.b16 %v1936
        %v2402 = vunpack.c.l.b16 %v1937
        %v2403 = vunpack.c.h.b16 %v1937
        %v2404 = vunpack.c.l.b16 %v1938
        %v2405 = vunpack.c.l.b16 %v1939
        %v2406 = vunpack.c.h.b16 %v1939
        %v2407 = vunpack.c.l.b16 %v1940
        %v2408 = vunpack.c.l.b16 %v1941
        %v2409 = vunpack.c.h.b16 %v1941
        %v2410 = vunpack.c.l.b16 %v1942
        %v2411 = vunpack.c.l.b16 %v1943
        %v2412 = vunpack.c.h.b16 %v1943
        %v2413 = vunpack.c.l.b16 %v1944
        %v2414 = vunpack.c.l.b16 %v1945
        %v2415 = vunpack.c.h.b16 %v1945
        %v2416 = vunpack.c.l.b16 %v1946
        %v2417 = vunpack.c.l.b16 %v1947
        %v2418 = vunpack.c.h.b16 %v1947
        %v2419 = vunpack.c.l.b16 %v1948
        %v2420 = vunpack.c.l.b16 %v1949
        %v2421 = vunpack.c.h.b16 %v1949
        %v2422 = vunpack.c.l.b16 %v1950
        %v2423 = vunpack.c.l.b16 %v1951
        %v2424 = vunpack.c.h.b16 %v1951
        %v2425 = vunpack.c.l.b16 %v1952
        %v2426 = vunpack.c.l.b16 %v1953
        %v2427 = vunpack.c.h.b16 %v1953
        %v2428 = vunpack.c.l.b16 %v1954
        %v2429 = vunpack.c.l.b16 %v1955
        %v2430 = vunpack.c.h.b16 %v1955
        %v2431 = vunpack.c.l.b16 %v1956
        %v2432 = vunpack.c.l.b16 %v1957
        %v2433 = vunpack.c.h.b16 %v1957
        %v2434 = vunpack.c.l.b16 %v1958
        %v2435 = vunpack.c.l.b16 %v1959
        %v2436 = vunpack.c.h.b16 %v1959
        %v2437 = vunpack.c.l.b16 %v1960
        %v2438 = vunpack.c.l.b16 %v1961
        %v2439 = vunpack.c.h.b16 %v1961
        %v2440 = vunpack.c.l.b16 %v1962
        %v2441 = vunpack.c.l.b16 %v1963
        %v2442 = vunpack.c.h.b16 %v1963
        %v2443 = vunpack.c.l.b16 %v1964
        %v2444 = vunpack.c.l.b16 %v1965
        %v2445 = vunpack.c.h.b16 %v1965
        %v2446 = vunpack.c.l.b16 %v1966
        %v2447 = vunpack.c.l.b16 %v1967
        %v2448 = vunpack.c.h.b16 %v1967
        %v2449 = vunpack.c.l.b16 %v1968
        %v2450 = vunpack.c.l.b16 %v1969
        %v2451 = vunpack.c.h.b16 %v1969
        %v2452 = vunpack.c.l.b16 %v1970
        %v2453 = vunpack.c.l.b16 %v1971
        %v2454 = vunpack.c.h.b16 %v1971
        %v2455 = vunpack.c.l.b16 %v1972
        %v2456 = vunpack.c.l.b16 %v1973
        %v2457 = vunpack.c.h.b16 %v1973
        %v2458 = vunpack.c.l.b16 %v1974
        %v2459 = vunpack.c.l.b16 %v1975
        %v2460 = vunpack.c.h.b16 %v1975
        %v2461 = vunpack.c.l.b16 %v1976
        %v2462 = vunpack.c.l.b16 %v1977
        %v2463 = vunpack.c.h.b16 %v1977
        %v2464 = vunpack.c.l.b16 %v1978
        %v2465 = vunpack.c.l.b16 %v1979
        %v2466 = vunpack.c.h.b16 %v1979
        %v2467 = vunpack.c.l.b16 %v1980
        %v2468 = vunpack.c.l.b16 %v1981
        %v2469 = vunpack.c.h.b16 %v1981
        %v2470 = vunpack.c.l.b16 %v1982
        %v2471 = vunpack.c.l.b16 %v1983
        %v2472 = vunpack.c.h.b16 %v1983
        %v2473 = vunpack.c.l.b16 %v1984
        %v2474 = vunpack.c.l.b16 %v1985
        %v2475 = vunpack.c.h.b16 %v1985
        %v2476 = vunpack.c.l.b16 %v1986
        %v2477 = vunpack.c.l.b16 %v1987
        %v2478 = vunpack.c.h.b16 %v1987
        %v2479 = vunpack.c.l.b16 %v1988
        %v2480 = vunpack.c.l.b16 %v1989
        %v2481 = vunpack.c.h.b16 %v1989
        %v2482 = vunpack.c.l.b16 %v1990
        %v2483 = vunpack.c.l.b16 %v1991
        %v2484 = vunpack.c.h.b16 %v1991
        %v2485 = vunpack.c.l.b16 %v1992
        %v2486 = vunpack.c.l.b16 %v1993
        %v2487 = vunpack.c.h.b16 %v1993
        %v2488 = vunpack.c.l.b16 %v1994
        %v2489 = vunpack.c.l.b16 %v1995
        %v2490 = vunpack.c.h.b16 %v1995
        %v2491 = vunpack.c.l.b16 %v1996
        %v2492 = vunpack.c.l.b16 %v1997
        %v2493 = vunpack.c.h.b16 %v1997
        %v2494 = vunpack.c.l.b16 %v1998
        %v2495 = vunpack.c.l.b16 %v1999
        %v2496 = vunpack.c.h.b16 %v1999
        %v2497 = vunpack.c.l.b16 %v2000
        %v2498 = vunpack.c.l.b16 %v2001
        %v2499 = vunpack.c.h.b16 %v2001
        %v2500 = vunpack.c.l.b16 %v2002
        %v2501 = vunpack.c.l.b16 %v2003
        %v2502 = vunpack.c.h.b16 %v2003
        %v2503 = vunpack.c.l.b16 %v2004
        %v2504 = vunpack.c.l.b16 %v2005
        %v2505 = vunpack.c.h.b16 %v2005
        %v2506 = vunpack.c.l.b16 %v2006
        %v2507 = vunpack.c.l.b16 %v2007
        %v2508 = vunpack.c.h.b16 %v2007
        %v2509 = vunpack.c.l.b16 %v2008
        %v2510 = vunpack.c.l.b16 %v2009
        %v2511 = vunpack.c.h.b16 %v2009
        %v2512 = vunpack.c.l.b16 %v2010
        %v2513 = vunpack.c.l.b16 %v2011
        %v2514 = vunpack.c.h.b16 %v2011
        %v2515 = vunpack.c.l.b16 %v2012
        %v2516 = vunpack.c.l.b16 %v2013
        %v2517 = vunpack.c.h.b16 %v2013
        %v2518 = vunpack.c.l.b16 %v2014
        %v2519 = vunpack.c.l.b16 %v2015
        %v2520 = vunpack.c.h.b16 %v2015
        %v2521 = vunpack.c.l.b16 %v2016
        %v2522 = vunpack.c.l.b16 %v2017
        %v2523 = vunpack.c.h.b16 %v2017
        %v2524 = vunpack.c.l.b16 %v2018
        %v2525 = vunpack.c.l.b16 %v2019
        %v2526 = vunpack.c.h.b16 %v2019
        %v2527 = vunpack.c.l.b16 %v2020
        %v2528 = vunpack.c.l.b16 %v2021
        %v2529 = vunpack.c.h.b16 %v2021
        %v2530 = vunpack.c.l.b16 %v2022
        %v2531 = vunpack.c.l.b16 %v2023
        %v2532 = vunpack.c.h.b16 %v2023
        %v2533 = vunpack.c.l.b16 %v2024
        %v2534 = vunpack.c.l.b16 %v2025
        %v2535 = vunpack.c.h.b16 %v2025
        %v2536 = vunpack.c.l.b16 %v2026
        %v2537 = vunpack.c.l.b16 %v2027
        %v2538 = vunpack.c.h.b16 %v2027
        %v2539 = vunpack.c.l.b16 %v2028
        %v2540 = vunpack.c.l.b16 %v2029
        %v2541 = vunpack.c.h.b16 %v2029
        %v2542 = vunpack.c.l.b16 %v2030
        %v2543 = vunpack.c.l.b16 %v2031
        %v2544 = vunpack.c.h.b16 %v2031
        %v2545 = vunpack.c.l.b16 %v2032
        %v2546 = vunpack.c.l.b16 %v2033
        %v2547 = vunpack.c.h.b16 %v2033
        %v2548 = vunpack.c.l.b16 %v2034
        %v2549 = vunpack.c.l.b16 %v2035
        %v2550 = vunpack.c.h.b16 %v2035
        %v2551 = vunpack.c.l.b16 %v2036
        %v2552 = vunpack.c.l.b16 %v2037
        %v2553 = vunpack.c.h.b16 %v2037
        %v2554 = vunpack.c.l.b16 %v2038
        %v2555 = vunpack.c.l.b16 %v2039
        %v2556 = vunpack.c.h.b16 %v2039
        %v2557 = vunpack.c.l.b16 %v2040
        %v2558 = vunpack.c.l.b16 %v2041
        %v2559 = vunpack.c.h.b16 %v2041
        %v2560 = vunpack.c.l.b16 %v2042
        %v2561 = vunpack.c.l.b16 %v2043
        %v2562 = vunpack.c.h.b16 %v2043
        %v2563 = vunpack.c.l.b16 %v2044
        %v2564 = vunpack.c.l.b16 %v2045
        %v2565 = vunpack.c.h.b16 %v2045
        %v2566 = vunpack.c.l.b16 %v2046
        %v2567 = vunpack.c.l.b16 %v2047
        %v2568 = vunpack.c.h.b16 %v2047
        %v2569 = vunpack.c.l.b16 %v2048
        %v2570 = vunpack.c.l.b16 %v2049
        %v2571 = vunpack.c.h.b16 %v2049
        %v2572 = vunpack.c.l.b16 %v2050
        %v2573 = vunpack.c.l.b16 %v2051
        %v2574 = vunpack.c.h.b16 %v2051
        %v2575 = vunpack.c.l.b16 %v2052
        %v2576 = vunpack.c.l.b16 %v2053
        %v2577 = vunpack.c.h.b16 %v2053
        %v2578 = vunpack.c.l.b16 %v2054
        %v2579 = vunpack.c.l.b16 %v2055
        %v2580 = vunpack.c.h.b16 %v2055
        %v2581 = vunpack.c.l.b16 %v2056
        %v2582 = vunpack.c.l.b16 %v2057
        %v2583 = vunpack.c.h.b16 %v2057
        %v2584 = vunpack.c.l.b16 %v2058
        %v2585 = vunpack.c.l.b16 %v2059
        %v2586 = vunpack.c.h.b16 %v2059
        %v2587 = vunpack.c.l.b16 %v2060
        %v2588 = vunpack.c.l.b16 %v2061
        %v2589 = vunpack.c.h.b16 %v2061
        %v2590 = vunpack.c.l.b16 %v2062
        %v2591 = vunpack.c.l.b16 %v2063
        %v2592 = vunpack.c.h.b16 %v2063
        %v2593 = vunpack.c.l.b16 %v2064
        %v2594 = vunpack.c.l.b16 %v2065
        %v2595 = vunpack.c.h.b16 %v2065
        %v2596 = vunpack.c.l.b16 %v2066
        %v2597 = vunpack.c.l.b16 %v2067
        %v2598 = vunpack.c.h.b16 %v2067
        %v2599 = vunpack.c.l.b16 %v2068
        %v2600 = vunpack.c.l.b16 %v2069
        %v2601 = vunpack.c.h.b16 %v2069
        %v2602 = vunpack.c.l.b16 %v2070
        %v2603 = vunpack.c.l.b16 %v2071
        %v2604 = vunpack.c.h.b16 %v2071
        %v2605 = vunpack.c.l.b16 %v2072
        %v2606 = vunpack.c.l.b16 %v2073
        %v2607 = vunpack.c.h.b16 %v2073
        %v2608 = vunpack.c.l.b16 %v2074
        %v2609 = vunpack.c.l.b16 %v2075
        %v2610 = vunpack.c.h.b16 %v2075
        %v2611 = vunpack.c.l.b16 %v2076
        %v2612 = vunpack.c.l.b16 %v2077
        %v2613 = vunpack.c.h.b16 %v2077
        %v2614 = vunpack.c.l.b16 %v2078
        %v2615 = vunpack.c.l.b16 %v2079
        %v2616 = vunpack.c.h.b16 %v2079
        %v2617 = vunpack.c.l.b16 %v2080
        %v2618 = vunpack.c.l.b16 %v2081
        %v2619 = vunpack.c.h.b16 %v2081
        %v2620 = vunpack.c.l.b16 %v2082
        %v2621 = vunpack.c.l.b16 %v2083
        %v2622 = vunpack.c.h.b16 %v2083
        %v2623 = vunpack.c.l.b16 %v2084
        %v2624 = vunpack.c.l.b16 %v2085
        %v2625 = vunpack.c.h.b16 %v2085
        %v2626 = vunpack.c.l.b16 %v2086
        %v2627 = vunpack.c.l.b16 %v2087
        %v2628 = vunpack.c.h.b16 %v2087
        %v2629 = vunpack.c.l.b16 %v2088
        %v2630 = vunpack.c.l.b16 %v2089
        %v2631 = vunpack.c.h.b16 %v2089
        %v2632 = vunpack.c.l.b16 %v2090
        %v2633 = vunpack.c.l.b16 %v2091
        %v2634 = vunpack.c.h.b16 %v2091
        %v2635 = vunpack.c.l.b16 %v2092
        %v2636 = vunpack.c.l.b16 %v2093
        %v2637 = vunpack.c.h.b16 %v2093
        %v2638 = vunpack.c.l.b16 %v2094
        %v2639 = vunpack.c.l.b16 %v2095
        %v2640 = vunpack.c.h.b16 %v2095
        %v2641 = vunpack.c.l.b16 %v2096
        %v2642 = vunpack.c.l.b16 %v2097
        %v2643 = vunpack.c.h.b16 %v2097
        %v2644 = vunpack.c.l.b16 %v2098
        %v2645 = vunpack.c.l.b16 %v2099
        %v2646 = vunpack.c.h.b16 %v2099
        %v2647 = vunpack.c.l.b16 %v2100
        %v2648 = vunpack.c.l.b16 %v2101
        %v2649 = vunpack.c.h.b16 %v2101
        %v2650 = vunpack.c.l.b16 %v2102
        %v2651 = vunpack.c.l.b16 %v2103
        %v2652 = vunpack.c.h.b16 %v2103
        %v2653 = vunpack.c.l.b16 %v2104
        %v2654 = vunpack.c.l.b16 %v2105
        %v2655 = vunpack.c.h.b16 %v2105
        %v2656 = vunpack.c.l.b16 %v2106
        %v2657 = vunpack.c.l.b16 %v2107
        %v2658 = vunpack.c.h.b16 %v2107
        %v2659 = vunpack.c.l.b16 %v2108
        %v2660 = vunpack.c.l.b16 %v2109
        %v2661 = vunpack.c.h.b16 %v2109
        %v2662 = vunpack.c.l.b16 %v2110
        %v2663 = vunpack.c.l.b16 %v2111
        %v2664 = vunpack.c.h.b16 %v2111
        %v2665 = vunpack.c.l.b16 %v2112
        %v2666 = vunpack.c.l.b16 %v2113
        %v2667 = vunpack.c.h.b16 %v2113
        %v2668 = vunpack.c.l.b16 %v2114
        %v2669 = vunpack.c.l.b16 %v2115
        %v2670 = vunpack.c.h.b16 %v2115
        %v2671 = vunpack.c.l.b16 %v2116
        %v2672 = vunpack.c.l.b16 %v2117
        %v2673 = vunpack.c.h.b16 %v2117
        %v2674 = vunpack.c.l.b16 %v2118
        %v2675 = vunpack.c.l.b16 %v2119
        %v2676 = vunpack.c.h.b16 %v2119
        %v2677 = vunpack.c.l.b16 %v2120
        %v2678 = vunpack.c.l.b16 %v2121
        %v2679 = vunpack.c.h.b16 %v2121
        %v2680 = vunpack.c.l.b16 %v2122
        %v2681 = vunpack.c.l.b16 %v2123
        %v2682 = vunpack.c.h.b16 %v2123
        %v2683 = vunpack.c.l.b16 %v2124
        %v2684 = vunpack.c.l.b16 %v2125
        %v2685 = vunpack.c.h.b16 %v2125
        %v2686 = vunpack.c.l.b16 %v2126
        %v2687 = vpack.c.b16 %v2354, %v2351
        %v2688 = vpack.c.b16 %v2355, %v2352
        %v2689 = vpack.c.b16 %v2356, %v2353
        %v2690 = vpack.c.b16 %v2360, %v2357
        %v2691 = vpack.c.b16 %v2361, %v2358
        %v2692 = vpack.c.b16 %v2362, %v2359
        %v2693 = vpack.c.b16 %v2366, %v2363
        %v2694 = vpack.c.b16 %v2367, %v2364
        %v2695 = vpack.c.b16 %v2368, %v2365
        %v2696 = vpack.c.b16 %v2372, %v2369
        %v2697 = vpack.c.b16 %v2373, %v2370
        %v2698 = vpack.c.b16 %v2374, %v2371
        %v2699 = vpack.c.b16 %v2378, %v2375
        %v2700 = vpack.c.b16 %v2379, %v2376
        %v2701 = vpack.c.b16 %v2380, %v2377
        %v2702 = vpack.c.b16 %v2384, %v2381
        %v2703 = vpack.c.b16 %v2385, %v2382
        %v2704 = vpack.c.b16 %v2386, %v2383
        %v2705 = vpack.c.b16 %v2390, %v2387
        %v2706 = vpack.c.b16 %v2391, %v2388
        %v2707 = vpack.c.b16 %v2392, %v2389
        %v2708 = vpack.c.b16 %v2396, %v2393
        %v2709 = vpack.c.b16 %v2397, %v2394
        %v2710 = vpack.c.b16 %v2398, %v2395
        %v2711 = vpack.c.b16 %v2402, %v2399
        %v2712 = vpack.c.b16 %v2403, %v2400
        %v2713 = vpack.c.b16 %v2404, %v2401
        %v2714 = vpack.c.b16 %v2408, %v2405
        %v2715 = vpack.c.b16 %v2409, %v2406
        %v2716 = vpack.c.b16 %v2410, %v2407
        %v2717 = vpack.c.b16 %v2414, %v2411
        %v2718 = vpack.c.b16 %v2415, %v2412
        %v2719 = vpack.c.b16 %v2416, %v2413
        %v2720 = vpack.c.b16 %v2420, %v2417
        %v2721 = vpack.c.b16 %v2421, %v2418
        %v2722 = vpack.c.b16 %v2422, %v2419
        %v2723 = vpack.c.b16 %v2426, %v2423
        %v2724 = vpack.c.b16 %v2427, %v2424
        %v2725 = vpack.c.b16 %v2428, %v2425
        %v2726 = vpack.c.b16 %v2432, %v2429
        %v2727 = vpack.c.b16 %v2433, %v2430
        %v2728 = vpack.c.b16 %v2434, %v2431
        %v2729 = vpack.c.b16 %v2438, %v2435
        %v2730 = vpack.c.b16 %v2439, %v2436
        %v2731 = vpack.c.b16 %v2440, %v2437
        %v2732 = vpack.c.b16 %v2444, %v2441
        %v2733 = vpack.c.b16 %v2445, %v2442
        %v2734 = vpack.c.b16 %v2446, %v2443
        %v2735 = vpack.c.b16 %v2450, %v2447
        %v2736 = vpack.c.b16 %v2451, %v2448
        %v2737 = vpack.c.b16 %v2452, %v2449
        %v2738 = vpack.c.b16 %v2456, %v2453
        %v2739 = vpack.c.b16 %v2457, %v2454
        %v2740 = vpack.c.b16 %v2458, %v2455
        %v2741 = vpack.c.b16 %v2462, %v2459
        %v2742 = vpack.c.b16 %v2463, %v2460
        %v2743 = vpack.c.b16 %v2464, %v2461
        %v2744 = vpack.c.b16 %v2468, %v2465
        %v2745 = vpack.c.b16 %v2469, %v2466
        %v2746 = vpack.c.b16 %v2470, %v2467
        %v2747 = vpack.c.b16 %v2474, %v2471
        %v2748 = vpack.c.b16 %v2475, %v2472
        %v2749 = vpack.c.b16 %v2476, %v2473
        %v2750 = vpack.c.b16 %v2480, %v2477
        %v2751 = vpack.c.b16 %v2481, %v2478
        %v2752 = vpack.c.b16 %v2482, %v2479
        %v2753 = vpack.c.b16 %v2486, %v2483
        %v2754 = vpack.c.b16 %v2487, %v2484
        %v2755 = vpack.c.b16 %v2488, %v2485
        %v2756 = vpack.c.b16 %v2492, %v2489
        %v2757 = vpack.c.b16 %v2493, %v2490
        %v2758 = vpack.c.b16 %v2494, %v2491
        %v2759 = vpack.c.b16 %v2498, %v2495
        %v2760 = vpack.c.b16 %v2499, %v2496
        %v2761 = vpack.c.b16 %v2500, %v2497
        %v2762 = vpack.c.b16 %v2504, %v2501
        %v2763 = vpack.c.b16 %v2505, %v2502
        %v2764 = vpack.c.b16 %v2506, %v2503
        %v2765 = vpack.c.b16 %v2510, %v2507
        %v2766 = vpack.c.b16 %v2511, %v2508
        %v2767 = vpack.c.b16 %v2512, %v2509
        %v2768 = vpack.c.b16 %v2516, %v2513
        %v2769 = vpack.c.b16 %v2517, %v2514
        %v2770 = vpack.c.b16 %v2518, %v2515
        %v2771 = vpack.c.b16 %v2522, %v2519
        %v2772 = vpack.c.b16 %v2523, %v2520
        %v2773 = vpack.c.b16 %v2524, %v2521
        %v2774 = vpack.c.b16 %v2528, %v2525
        %v2775 = vpack.c.b16 %v2529, %v2526
        %v2776 = vpack.c.b16 %v2530, %v2527
        %v2777 = vpack.c.b16 %v2534, %v2531
        %v2778 = vpack.c.b16 %v2535, %v2532
        %v2779 = vpack.c.b16 %v2536, %v2533
        %v2780 = vpack.c.b16 %v2540, %v2537
        %v2781 = vpack.c.b16 %v2541, %v2538
        %v2782 = vpack.c.b16 %v2542, %v2539
        %v2783 = vpack.c.b16 %v2546, %v2543
        %v2784 = vpack.c.b16 %v2547, %v2544
        %v2785 = vpack.c.b16 %v2548, %v2545
        %v2786 = vpack.c.b16 %v2552, %v2549
        %v2787 = vpack.c.b16 %v2553, %v2550
        %v2788 = vpack.c.b16 %v2554, %v2551
        %v2789 = vpack.c.b16 %v2558, %v2555
        %v2790 = vpack.c.b16 %v2559, %v2556
        %v2791 = vpack.c.b16 %v2560, %v2557
        %v2792 = vpack.c.b16 %v2564, %v2561
        %v2793 = vpack.c.b16 %v2565, %v2562
        %v2794 = vpack.c.b16 %v2566, %v2563
        %v2795 = vpack.c.b16 %v2570, %v2567
        %v2796 = vpack.c.b16 %v2571, %v2568
        %v2797 = vpack.c.b16 %v2572, %v2569
        %v2798 = vpack.c.b16 %v2576, %v2573
        %v2799 = vpack.c.b16 %v2577, %v2574
        %v2800 = vpack.c.b16 %v2578, %v2575
        %v2801 = vpack.c.b16 %v2582, %v2579
        %v2802 = vpack.c.b16 %v2583, %v2580
        %v2803 = vpack.c.b16 %v2584, %v2581
        %v2804 = vpack.c.b16 %v2588, %v2585
        %v2805 = vpack.c.b16 %v2589, %v2586
        %v2806 = vpack.c.b16 %v2590, %v2587
        %v2807 = vpack.c.b16 %v2594, %v2591
        %v2808 = vpack.c.b16 %v2595, %v2592
        %v2809 = vpack.c.b16 %v2596, %v2593
        %v2810 = vpack.c.b16 %v2600, %v2597
        %v2811 = vpack.c.b16 %v2601, %v2598
        %v2812 = vpack.c.b16 %v2602, %v2599
        %v2813 = vpack.c.b16 %v2606, %v2603
        %v2814 = vpack.c.b16 %v2607, %v2604
        %v2815 = vpack.c.b16 %v2608, %v2605
        %v2816 = vpack.c.b16 %v2612, %v2609
        %v2817 = vpack.c.b16 %v2613, %v2610
        %v2818 = vpack.c.b16 %v2614, %v2611
        %v2819 = vpack.c.b16 %v2618, %v2615
        %v2820 = vpack.c.b16 %v2619, %v2616
        %v2821 = vpack.c.b16 %v2620, %v2617
        %v2822 = vpack.c.b16 %v2624, %v2621
        %v2823 = vpack.c.b16 %v2625, %v2622
        %v2824 = vpack.c.b16 %v2626, %v2623
        %v2825 = vpack.c.b16 %v2630, %v2627
        %v2826 = vpack.c.b16 %v2631, %v2628
        %v2827 = vpack.c.b16 %v2632, %v2629
        %v2828 = vpack.c.b16 %v2636, %v2633
        %v2829 = vpack.c.b16 %v2637, %v2634
        %v2830 = vpack.c.b16 %v2638, %v2635
        %v2831 = vpack.c.b16 %v2642, %v2639
        %v2832 = vpack.c.b16 %v2643, %v2640
        %v2833 = vpack.c.b16 %v2644, %v2641
        %v2834 = vpack.c.b16 %v2648, %v2645
        %v2835 = vpack.c.b16 %v2649, %v2646
        %v2836 = vpack.c.b16 %v2650, %v2647
        %v2837 = vpack.c.b16 %v2654, %v2651
        %v2838 = vpack.c.b16 %v2655, %v2652
        %v2839 = vpack.c.b16 %v2656, %v2653
        %v2840 = vpack.c.b16 %v2660, %v2657
        %v2841 = vpack.c.b16 %v2661, %v2658
        %v2842 = vpack.c.b16 %v2662, %v2659
        %v2843 = vpack.c.b16 %v2666, %v2663
        %v2844 = vpack.c.b16 %v2667, %v2664
        %v2845 = vpack.c.b16 %v2668, %v2665
        %v2846 = vpack.c.b16 %v2672, %v2669
        %v2847 = vpack.c.b16 %v2673, %v2670
        %v2848 = vpack.c.b16 %v2674, %v2671
        %v2849 = vpack.c.b16 %v2678, %v2675
        %v2850 = vpack.c.b16 %v2679, %v2676
        %v2851 = vpack.c.b16 %v2680, %v2677
        %v2852 = vpack.c.b16 %v2684, %v2681
        %v2853 = vpack.c.b16 %v2685, %v2682
        %v2854 = vpack.c.b16 %v2686, %v2683
        %3023 = vmatprep.subr.bf16.mxu0 %v2688
        %3024 = vmatpush1.bf16.msra.mxu0 %v2687
        %3025 = vmatprep.subr.bf16.mxu0 %v2691
        %3026 = vmatpush1.bf16.msra.mxu0 %v2690
        %3027 = vmatprep.subr.bf16.mxu0 %v2694
        %3028 = vmatpush1.bf16.msra.mxu0 %v2693
        %3029 = vmatprep.subr.bf16.mxu0 %v2697
        %3030 = vmatpush1.bf16.msra.mxu0 %v2696
        %3031 = vmatprep.subr.bf16.mxu0 %v2700
        %3032 = vmatpush1.bf16.msra.mxu0 %v2699
        %3033 = vmatprep.subr.bf16.mxu0 %v2703
        %3034 = vmatpush1.bf16.msra.mxu0 %v2702
        %3035 = vmatprep.subr.bf16.mxu0 %v2706
        %3036 = vmatpush1.bf16.msra.mxu0 %v2705
        %3037 = vmatprep.subr.bf16.mxu0 %v2709
        %3038 = vmatpush1.bf16.msra.mxu0 %v2708
        %3039 = vmatprep.subr.bf16.mxu0 %v2712
        %3040 = vmatpush1.bf16.msra.mxu0 %v2711
        %3041 = vmatprep.subr.bf16.mxu0 %v2715
        %3042 = vmatpush1.bf16.msra.mxu0 %v2714
        %3043 = vmatprep.subr.bf16.mxu0 %v2718
        %3044 = vmatpush1.bf16.msra.mxu0 %v2717
        %3045 = vmatprep.subr.bf16.mxu0 %v2721
        %3046 = vmatpush1.bf16.msra.mxu0 %v2720
        %3047 = vmatprep.subr.bf16.mxu0 %v2724
        %3048 = vmatpush1.bf16.msra.mxu0 %v2723
        %3049 = vmatprep.subr.bf16.mxu0 %v2727
        %3050 = vmatpush1.bf16.msra.mxu0 %v2726
        %3051 = vmatprep.subr.bf16.mxu0 %v2730
        %3052 = vmatpush1.bf16.msra.mxu0 %v2729
        %3053 = vmatprep.subr.bf16.mxu0 %v2733
        %3054 = vmatpush1.bf16.msra.mxu0 %v2732
        %3055 = vmatprep.mubr.bf16.mxu0 %v1890
        %3056 = vmatmul.mubr.bf16.gmra.mrb[0].mxu0 %v1889
        %v3057 = vpop.f32.mrb[0].mxu0
        %v3058 = vadd.f32 0.0, %v3057
        %v3059 = vpop.f32.mrb[0].mxu0
        %v3060 = vadd.f32 0.0, %v3059
        %v3061 = vpop.f32.mrb[0].mxu0
        %v3062 = vadd.f32 0.0, %v3061
        %v3063 = vpop.f32.mrb[0].mxu0
        %v3064 = vadd.f32 0.0, %v3063
        %3065 = vmatprep.mubr.bf16.mxu0 %v1897
        %3066 = vmatmul.mubr.bf16.gmra.mrb[0].mxu0 %v1896
        %v3067 = vpop.f32.mrb[0].mxu0
        %v3068 = vadd.f32 0.0, %v3067
        %v3069 = vpop.f32.mrb[0].mxu0
        %v3070 = vadd.f32 0.0, %v3069
        %v3071 = vpop.f32.mrb[0].mxu0
        %v3072 = vadd.f32 0.0, %v3071
        %v3073 = vpop.f32.mrb[0].mxu0
        %v3074 = vadd.f32 0.0, %v3073
        %3075 = vdwg.mxu0
        %3076 = vmatprep.subr.bf16.mxu0 %v2736
        %3077 = vmatpush1.bf16.msra.mxu0 %v2735
        %3078 = vmatprep.subr.bf16.mxu0 %v2739
        %3079 = vmatpush1.bf16.msra.mxu0 %v2738
        %3080 = vmatprep.subr.bf16.mxu0 %v2742
        %3081 = vmatpush1.bf16.msra.mxu0 %v2741
        %3082 = vmatprep.subr.bf16.mxu0 %v2745
        %3083 = vmatpush1.bf16.msra.mxu0 %v2744
        %3084 = vmatprep.subr.bf16.mxu0 %v2748
        %3085 = vmatpush1.bf16.msra.mxu0 %v2747
        %3086 = vmatprep.subr.bf16.mxu0 %v2751
        %3087 = vmatpush1.bf16.msra.mxu0 %v2750
        %3088 = vmatprep.subr.bf16.mxu0 %v2754
        %3089 = vmatpush1.bf16.msra.mxu0 %v2753
        %3090 = vmatprep.subr.bf16.mxu0 %v2757
        %3091 = vmatpush1.bf16.msra.mxu0 %v2756
        %3092 = vmatprep.subr.bf16.mxu0 %v2760
        %3093 = vmatpush1.bf16.msra.mxu0 %v2759
        %3094 = vmatprep.subr.bf16.mxu0 %v2763
        %3095 = vmatpush1.bf16.msra.mxu0 %v2762
        %3096 = vmatprep.subr.bf16.mxu0 %v2766
        %3097 = vmatpush1.bf16.msra.mxu0 %v2765
        %3098 = vmatprep.subr.bf16.mxu0 %v2769
        %3099 = vmatpush1.bf16.msra.mxu0 %v2768
        %3100 = vmatprep.subr.bf16.mxu0 %v2772
        %3101 = vmatpush1.bf16.msra.mxu0 %v2771
        %3102 = vmatprep.subr.bf16.mxu0 %v2775
        %3103 = vmatpush1.bf16.msra.mxu0 %v2774
        %3104 = vmatprep.subr.bf16.mxu0 %v2778
        %3105 = vmatpush1.bf16.msra.mxu0 %v2777
        %3106 = vmatprep.subr.bf16.mxu0 %v2781
        %3107 = vmatpush1.bf16.msra.mxu0 %v2780
        %3108 = vmatprep.mubr.bf16.mxu0 %v1892
        %3109 = vmatmul.mubr.bf16.gmra.mrb[0].mxu0 %v1891
        %v3110 = vpop.f32.mrb[0].mxu0
        %v3111 = vadd.f32 %v3058, %v3110
        %v3112 = vpop.f32.mrb[0].mxu0
        %v3113 = vadd.f32 %v3060, %v3112
        %v3114 = vpop.f32.mrb[0].mxu0
        %v3115 = vadd.f32 %v3062, %v3114
        %v3116 = vpop.f32.mrb[0].mxu0
        %v3117 = vadd.f32 %v3064, %v3116
        %3118 = vmatprep.mubr.bf16.mxu0 %v1899
        %3119 = vmatmul.mubr.bf16.gmra.mrb[0].mxu0 %v1898
        %v3120 = vpop.f32.mrb[0].mxu0
        %v3121 = vadd.f32 %v3068, %v3120
        %v3122 = vpop.f32.mrb[0].mxu0
        %v3123 = vadd.f32 %v3070, %v3122
        %v3124 = vpop.f32.mrb[0].mxu0
        %v3125 = vadd.f32 %v3072, %v3124
        %v3126 = vpop.f32.mrb[0].mxu0
        %v3127 = vadd.f32 %v3074, %v3126
        %3128 = vdwg.mxu0
        %3129 = vmatprep.subr.bf16.mxu0 %v2784
        %3130 = vmatpush1.bf16.msra.mxu0 %v2783
        %3131 = vmatprep.subr.bf16.mxu0 %v2787
        %3132 = vmatpush1.bf16.msra.mxu0 %v2786
        %3133 = vmatprep.subr.bf16.mxu0 %v2790
        %3134 = vmatpush1.bf16.msra.mxu0 %v2789
        %3135 = vmatprep.subr.bf16.mxu0 %v2793
        %3136 = vmatpush1.bf16.msra.mxu0 %v2792
        %3137 = vmatprep.subr.bf16.mxu0 %v2796
        %3138 = vmatpush1.bf16.msra.mxu0 %v2795
        %3139 = vmatprep.subr.bf16.mxu0 %v2799
        %3140 = vmatpush1.bf16.msra.mxu0 %v2798
        %3141 = vmatprep.subr.bf16.mxu0 %v2802
        %3142 = vmatpush1.bf16.msra.mxu0 %v2801
        %3143 = vmatprep.subr.bf16.mxu0 %v2805
        %3144 = vmatpush1.bf16.msra.mxu0 %v2804
        %3145 = vmatprep.subr.bf16.mxu0 %v2808
        %3146 = vmatpush1.bf16.msra.mxu0 %v2807
        %3147 = vmatprep.subr.bf16.mxu0 %v2811
        %3148 = vmatpush1.bf16.msra.mxu0 %v2810
        %3149 = vmatprep.subr.bf16.mxu0 %v2814
        %3150 = vmatpush1.bf16.msra.mxu0 %v2813
        %3151 = vmatprep.subr.bf16.mxu0 %v2817
        %3152 = vmatpush1.bf16.msra.mxu0 %v2816
        %3153 = vmatprep.subr.bf16.mxu0 %v2820
        %3154 = vmatpush1.bf16.msra.mxu0 %v2819
        %3155 = vmatprep.subr.bf16.mxu0 %v2823
        %3156 = vmatpush1.bf16.msra.mxu0 %v2822
        %3157 = vmatprep.subr.bf16.mxu0 %v2826
        %3158 = vmatpush1.bf16.msra.mxu0 %v2825
        %3159 = vmatprep.subr.bf16.mxu0 %v2829
        %3160 = vmatpush1.bf16.msra.mxu0 %v2828
        %3161 = vmatprep.mubr.bf16.mxu0 %v1894
        %3162 = vmatmul.mubr.bf16.gmra.mrb[0].mxu0 %v1893
        %v3163 = vpop.f32.mrb[0].mxu0
        %v3164 = vadd.f32 %v3111, %v3163
        %v3165 = vpop.f32.mrb[0].mxu0
        %v3166 = vadd.f32 %v3113, %v3165
        %v3167 = vpop.f32.mrb[0].mxu0
        %v3168 = vadd.f32 %v3115, %v3167
        %v3169 = vpop.f32.mrb[0].mxu0
        %v3170 = vadd.f32 %v3117, %v3169
        %3171 = vmatprep.mubr.bf16.mxu0 %v1901
        %3172 = vmatmul.mubr.bf16.gmra.mrb[0].mxu0 %v1900
        %v3173 = vpop.f32.mrb[0].mxu0
        %v3174 = vadd.f32 %v3121, %v3173
        %v3175 = vpop.f32.mrb[0].mxu0
        %v3176 = vadd.f32 %v3123, %v3175
        %v3177 = vpop.f32.mrb[0].mxu0
        %v3178 = vadd.f32 %v3125, %v3177
        %v3179 = vpop.f32.mrb[0].mxu0
        %v3180 = vadd.f32 %v3127, %v3179
        %3181 = vdwg.mxu0
        %3182 = vmatprep.subr.bf16.mxu0 %v2832
        %3183 = vmatpush1.bf16.msra.mxu0 %v2831
        %3184 = vmatprep.subr.bf16.mxu0 %v2835
        %3185 = vmatpush1.bf16.msra.mxu0 %v2834
        %3186 = vmatprep.subr.bf16.mxu0 %v2838
        %3187 = vmatpush1.bf16.msra.mxu0 %v2837
        %3188 = vmatprep.subr.bf16.mxu0 %v2841
        %3189 = vmatpush1.bf16.msra.mxu0 %v2840
        %3190 = vmatprep.subr.bf16.mxu0 %v2844
        %3191 = vmatpush1.bf16.msra.mxu0 %v2843
        %3192 = vmatprep.subr.bf16.mxu0 %v2847
        %3193 = vmatpush1.bf16.msra.mxu0 %v2846
        %3194 = vmatprep.subr.bf16.mxu0 %v2850
        %3195 = vmatpush1.bf16.msra.mxu0 %v2849
        %3196 = vmatprep.subr.bf16.mxu0 %v2853
        %3197 = vmatpush1.bf16.msra.mxu0 %v2852
        %3198 = vmatprep.subr.bf16.mxu0 0
        %3199 = vmatpush1.bf16.msra.mxu0 0
        %3200 = vmatprep.subr.bf16.mxu0 0
        %3201 = vmatpush1.bf16.msra.mxu0 0
        %3202 = vmatprep.subr.bf16.mxu0 0
        %3203 = vmatpush1.bf16.msra.mxu0 0
        %3204 = vmatprep.subr.bf16.mxu0 0
        %3205 = vmatpush1.bf16.msra.mxu0 0
        %3206 = vmatprep.subr.bf16.mxu0 0
        %3207 = vmatpush1.bf16.msra.mxu0 0
        %3208 = vmatprep.subr.bf16.mxu0 0
        %3209 = vmatpush1.bf16.msra.mxu0 0
        %3210 = vmatprep.subr.bf16.mxu0 0
        %3211 = vmatpush1.bf16.msra.mxu0 0
        %3212 = vmatprep.subr.bf16.mxu0 0
        %3213 = vmatpush1.bf16.msra.mxu0 0
        %3214 = vmatprep.mubr.bf16.mxu0 0
        %3215 = vmatmul.mubr.bf16.gmra.mrb[0].mxu0 %v1895
        %v3216 = vpop.f32.mrb[0].mxu0
        %v3217 = vadd.f32 %v3164, %v3216
        %v3218 = vpop.f32.mrb[0].mxu0
        %v3219 = vadd.f32 %v3166, %v3218
        %v3220 = vpop.f32.mrb[0].mxu0
        %v3221 = vadd.f32 %v3168, %v3220
        %v3222 = vpop.f32.mrb[0].mxu0
        %v3223 = vadd.f32 %v3170, %v3222
        %3224 = vmatprep.mubr.bf16.mxu0 0
        %3225 = vmatmul.mubr.bf16.gmra.mrb[0].mxu0 %v1902
        %v3226 = vpop.f32.mrb[0].mxu0
        %v3227 = vadd.f32 %v3174, %v3226
        %v3228 = vpop.f32.mrb[0].mxu0
        %v3229 = vadd.f32 %v3176, %v3228
        %v3230 = vpop.f32.mrb[0].mxu0
        %v3231 = vadd.f32 %v3178, %v3230
        %v3232 = vpop.f32.mrb[0].mxu0
        %v3233 = vadd.f32 %v3180, %v3232
        %3234 = vdwg.mxu0
        %3235 = vmatprep.subr.bf16.mxu0 0
        %3236 = vmatpush1.bf16.msra.mxu0 %v2689
        %3237 = vmatprep.subr.bf16.mxu0 0
        %3238 = vmatpush1.bf16.msra.mxu0 %v2692
        %3239 = vmatprep.subr.bf16.mxu0 0
        %3240 = vmatpush1.bf16.msra.mxu0 %v2695
        %3241 = vmatprep.subr.bf16.mxu0 0
        %3242 = vmatpush1.bf16.msra.mxu0 %v2698
        %3243 = vmatprep.subr.bf16.mxu0 0
        %3244 = vmatpush1.bf16.msra.mxu0 %v2701
        %3245 = vmatprep.subr.bf16.mxu0 0
        %3246 = vmatpush1.bf16.msra.mxu0 %v2704
        %3247 = vmatprep.subr.bf16.mxu0 0
        %3248 = vmatpush1.bf16.msra.mxu0 %v2707
        %3249 = vmatprep.subr.bf16.mxu0 0
        %3250 = vmatpush1.bf16.msra.mxu0 %v2710
        %3251 = vmatprep.subr.bf16.mxu0 0
        %3252 = vmatpush1.bf16.msra.mxu0 %v2713
        %3253 = vmatprep.subr.bf16.mxu0 0
        %3254 = vmatpush1.bf16.msra.mxu0 %v2716
        %3255 = vmatprep.subr.bf16.mxu0 0
        %3256 = vmatpush1.bf16.msra.mxu0 %v2719
        %3257 = vmatprep.subr.bf16.mxu0 0
        %3258 = vmatpush1.bf16.msra.mxu0 %v2722
        %3259 = vmatprep.subr.bf16.mxu0 0
        %3260 = vmatpush1.bf16.msra.mxu0 %v2725
        %3261 = vmatprep.subr.bf16.mxu0 0
        %3262 = vmatpush1.bf16.msra.mxu0 %v2728
        %3263 = vmatprep.subr.bf16.mxu0 0
        %3264 = vmatpush1.bf16.msra.mxu0 %v2731
        %3265 = vmatprep.subr.bf16.mxu0 0
        %3266 = vmatpush1.bf16.msra.mxu0 %v2734
        %3267 = vmatprep.mubr.bf16.mxu0 %v1890
        %3268 = vmatmul.mubr.bf16.gmra.mrb[0].mxu0 %v1889
        %v3269 = vpop.f32.mrb[0].mxu0
        %v3270 = vadd.f32 0.0, %v3269
        %v3271 = vpop.f32.mrb[0].mxu0
        %v3272 = vpop.f32.mrb[0].mxu0
        %v3273 = vadd.f32 0.0, %v3272
        %v3274 = vpop.f32.mrb[0].mxu0
        %3275 = vmatprep.mubr.bf16.mxu0 %v1897
        %3276 = vmatmul.mubr.bf16.gmra.mrb[0].mxu0 %v1896
        %v3277 = vpop.f32.mrb[0].mxu0
        %v3278 = vadd.f32 0.0, %v3277
        %v3279 = vpop.f32.mrb[0].mxu0
        %v3280 = vpop.f32.mrb[0].mxu0
        %v3281 = vadd.f32 0.0, %v3280
        %v3282 = vpop.f32.mrb[0].mxu0
        %3283 = vdwg.mxu0
        %3284 = vmatprep.subr.bf16.mxu0 0
        %3285 = vmatpush1.bf16.msra.mxu0 %v2737
        %3286 = vmatprep.subr.bf16.mxu0 0
        %3287 = vmatpush1.bf16.msra.mxu0 %v2740
        %3288 = vmatprep.subr.bf16.mxu0 0
        %3289 = vmatpush1.bf16.msra.mxu0 %v2743
        %3290 = vmatprep.subr.bf16.mxu0 0
        %3291 = vmatpush1.bf16.msra.mxu0 %v2746
        %3292 = vmatprep.subr.bf16.mxu0 0
        %3293 = vmatpush1.bf16.msra.mxu0 %v2749
        %3294 = vmatprep.subr.bf16.mxu0 0
        %3295 = vmatpush1.bf16.msra.mxu0 %v2752
        %3296 = vmatprep.subr.bf16.mxu0 0
        %3297 = vmatpush1.bf16.msra.mxu0 %v2755
        %3298 = vmatprep.subr.bf16.mxu0 0
        %3299 = vmatpush1.bf16.msra.mxu0 %v2758
        %3300 = vmatprep.subr.bf16.mxu0 0
        %3301 = vmatpush1.bf16.msra.mxu0 %v2761
        %3302 = vmatprep.subr.bf16.mxu0 0
        %3303 = vmatpush1.bf16.msra.mxu0 %v2764
        %3304 = vmatprep.subr.bf16.mxu0 0
        %3305 = vmatpush1.bf16.msra.mxu0 %v2767
        %3306 = vmatprep.subr.bf16.mxu0 0
        %3307 = vmatpush1.bf16.msra.mxu0 %v2770
        %3308 = vmatprep.subr.bf16.mxu0 0
        %3309 = vmatpush1.bf16.msra.mxu0 %v2773
        %3310 = vmatprep.subr.bf16.mxu0 0
        %3311 = vmatpush1.bf16.msra.mxu0 %v2776
        %3312 = vmatprep.subr.bf16.mxu0 0
        %3313 = vmatpush1.bf16.msra.mxu0 %v2779
        %3314 = vmatprep.subr.bf16.mxu0 0
        %3315 = vmatpush1.bf16.msra.mxu0 %v2782
        %3316 = vmatprep.mubr.bf16.mxu0 %v1892
        %3317 = vmatmul.mubr.bf16.gmra.mrb[0].mxu0 %v1891
        %v3318 = vpop.f32.mrb[0].mxu0
        %v3319 = vadd.f32 %v3270, %v3318
        %v3320 = vpop.f32.mrb[0].mxu0
        %v3321 = vpop.f32.mrb[0].mxu0
        %v3322 = vadd.f32 %v3273, %v3321
        %v3323 = vpop.f32.mrb[0].mxu0
        %3324 = vmatprep.mubr.bf16.mxu0 %v1899
        %3325 = vmatmul.mubr.bf16.gmra.mrb[0].mxu0 %v1898
        %v3326 = vpop.f32.mrb[0].mxu0
        %v3327 = vadd.f32 %v3278, %v3326
        %v3328 = vpop.f32.mrb[0].mxu0
        %v3329 = vpop.f32.mrb[0].mxu0
        %v3330 = vadd.f32 %v3281, %v3329
        %v3331 = vpop.f32.mrb[0].mxu0
        %3332 = vdwg.mxu0
        %3333 = vmatprep.subr.bf16.mxu0 0
        %3334 = vmatpush1.bf16.msra.mxu0 %v2785
        %3335 = vmatprep.subr.bf16.mxu0 0
        %3336 = vmatpush1.bf16.msra.mxu0 %v2788
        %3337 = vmatprep.subr.bf16.mxu0 0
        %3338 = vmatpush1.bf16.msra.mxu0 %v2791
        %3339 = vmatprep.subr.bf16.mxu0 0
        %3340 = vmatpush1.bf16.msra.mxu0 %v2794
        %3341 = vmatprep.subr.bf16.mxu0 0
        %3342 = vmatpush1.bf16.msra.mxu0 %v2797
        %3343 = vmatprep.subr.bf16.mxu0 0
        %3344 = vmatpush1.bf16.msra.mxu0 %v2800
        %3345 = vmatprep.subr.bf16.mxu0 0
        %3346 = vmatpush1.bf16.msra.mxu0 %v2803
        %3347 = vmatprep.subr.bf16.mxu0 0
        %3348 = vmatpush1.bf16.msra.mxu0 %v2806
        %3349 = vmatprep.subr.bf16.mxu0 0
        %3350 = vmatpush1.bf16.msra.mxu0 %v2809
        %3351 = vmatprep.subr.bf16.mxu0 0
        %3352 = vmatpush1.bf16.msra.mxu0 %v2812
        %3353 = vmatprep.subr.bf16.mxu0 0
        %3354 = vmatpush1.bf16.msra.mxu0 %v2815
        %3355 = vmatprep.subr.bf16.mxu0 0
        %3356 = vmatpush1.bf16.msra.mxu0 %v2818
        %3357 = vmatprep.subr.bf16.mxu0 0
        %3358 = vmatpush1.bf16.msra.mxu0 %v2821
        %3359 = vmatprep.subr.bf16.mxu0 0
        %3360 = vmatpush1.bf16.msra.mxu0 %v2824
        %3361 = vmatprep.subr.bf16.mxu0 0
        %3362 = vmatpush1.bf16.msra.mxu0 %v2827
        %3363 = vmatprep.subr.bf16.mxu0 0
        %3364 = vmatpush1.bf16.msra.mxu0 %v2830
        %3365 = vmatprep.mubr.bf16.mxu0 %v1894
        %3366 = vmatmul.mubr.bf16.gmra.mrb[0].mxu0 %v1893
        %v3367 = vpop.f32.mrb[0].mxu0
        %v3368 = vadd.f32 %v3319, %v3367
        %v3369 = vpop.f32.mrb[0].mxu0
        %v3370 = vpop.f32.mrb[0].mxu0
        %v3371 = vadd.f32 %v3322, %v3370
        %v3372 = vpop.f32.mrb[0].mxu0
        %3373 = vmatprep.mubr.bf16.mxu0 %v1901
        %3374 = vmatmul.mubr.bf16.gmra.mrb[0].mxu0 %v1900
        %v3375 = vpop.f32.mrb[0].mxu0
        %v3376 = vadd.f32 %v3327, %v3375
        %v3377 = vpop.f32.mrb[0].mxu0
        %v3378 = vpop.f32.mrb[0].mxu0
        %v3379 = vadd.f32 %v3330, %v3378
        %v3380 = vpop.f32.mrb[0].mxu0
        %3381 = vdwg.mxu0
        %3382 = vmatprep.subr.bf16.mxu0 0
        %3383 = vmatpush1.bf16.msra.mxu0 %v2833
        %3384 = vmatprep.subr.bf16.mxu0 0
        %3385 = vmatpush1.bf16.msra.mxu0 %v2836
        %3386 = vmatprep.subr.bf16.mxu0 0
        %3387 = vmatpush1.bf16.msra.mxu0 %v2839
        %3388 = vmatprep.subr.bf16.mxu0 0
        %3389 = vmatpush1.bf16.msra.mxu0 %v2842
        %3390 = vmatprep.subr.bf16.mxu0 0
        %3391 = vmatpush1.bf16.msra.mxu0 %v2845
        %3392 = vmatprep.subr.bf16.mxu0 0
        %3393 = vmatpush1.bf16.msra.mxu0 %v2848
        %3394 = vmatprep.subr.bf16.mxu0 0
        %3395 = vmatpush1.bf16.msra.mxu0 %v2851
        %3396 = vmatprep.subr.bf16.mxu0 0
        %3397 = vmatpush1.bf16.msra.mxu0 %v2854
        %3398 = vmatprep.subr.bf16.mxu0 0
        %3399 = vmatpush1.bf16.msra.mxu0 0
        %3400 = vmatprep.subr.bf16.mxu0 0
        %3401 = vmatpush1.bf16.msra.mxu0 0
        %3402 = vmatprep.subr.bf16.mxu0 0
        %3403 = vmatpush1.bf16.msra.mxu0 0
        %3404 = vmatprep.subr.bf16.mxu0 0
        %3405 = vmatpush1.bf16.msra.mxu0 0
        %3406 = vmatprep.subr.bf16.mxu0 0
        %3407 = vmatpush1.bf16.msra.mxu0 0
        %3408 = vmatprep.subr.bf16.mxu0 0
        %3409 = vmatpush1.bf16.msra.mxu0 0
        %3410 = vmatprep.subr.bf16.mxu0 0
        %3411 = vmatpush1.bf16.msra.mxu0 0
        %3412 = vmatprep.subr.bf16.mxu0 0
        %3413 = vmatpush1.bf16.msra.mxu0 0
        %3414 = vmatprep.mubr.bf16.mxu0 0
        %3415 = vmatmul.mubr.bf16.gmra.mrb[0].mxu0 %v1895
        %v3416 = vpop.f32.mrb[0].mxu0
        %v3417 = vadd.f32 %v3368, %v3416
        %v3418 = vpop.f32.mrb[0].mxu0
        %v3419 = vpop.f32.mrb[0].mxu0
        %v3420 = vadd.f32 %v3371, %v3419
        %v3421 = vpop.f32.mrb[0].mxu0
        %3422 = vmatprep.mubr.bf16.mxu0 0
        %3423 = vmatmul.mubr.bf16.gmra.mrb[0].mxu0 %v1902
        %v3424 = vpop.f32.mrb[0].mxu0
        %v3425 = vadd.f32 %v3376, %v3424
        %v3426 = vpop.f32.mrb[0].mxu0
        %v3427 = vpop.f32.mrb[0].mxu0
        %v3428 = vadd.f32 %v3379, %v3427
        %v3429 = vpop.f32.mrb[0].mxu0
        %3430 = vdwg.mxu0
        %3443 = vrot.lane.b32.xlu0 %v3217, 127
        %v3444 = vpop.permute.xlu0 %3443
        %3445 = vrot.lane.b32.xlu0 %v3219, 127
        %v3446 = vpop.permute.xlu0 %3445
        %3447 = vrot.lane.b32.xlu0 %v3417, 127
        %v3448 = vpop.permute.xlu0 %3447
        %3449 = vrot.lane.b32.xlu0 %v3221, 127
        %v3450 = vpop.permute.xlu0 %3449
        %3451 = vrot.lane.b32.xlu0 %v3223, 127
        %v3452 = vpop.permute.xlu0 %3451
        %3453 = vrot.lane.b32.xlu0 %v3420, 127
        %v3454 = vpop.permute.xlu0 %3453
        %3455 = vrot.lane.b32.xlu0 %v3227, 127
        %v3456 = vpop.permute.xlu0 %3455
        %3457 = vrot.lane.b32.xlu0 %v3229, 127
        %v3458 = vpop.permute.xlu0 %3457
        %3459 = vrot.lane.b32.xlu0 %v3425, 127
        %v3460 = vpop.permute.xlu0 %3459
        %3461 = vrot.lane.b32.xlu0 %v3231, 127
        %v3462 = vpop.permute.xlu0 %3461
        %3463 = vrot.lane.b32.xlu0 %v3233, 127
        %v3464 = vpop.permute.xlu0 %3463
        %3465 = vrot.lane.b32.xlu0 %v3428, 127
        %v3466 = vpop.permute.xlu0 %3465
        %v3467 = vsel %vm392, %v3444, %v3446
        %v3468 = vsel %vm392, %v3446, %v3448
        %v3469 = vsel %vm392, %v3450, %v3452
        %v3470 = vsel %vm392, %v3452, %v3454
        %v3471 = vsel %vm392, %v3456, %v3458
        %v3472 = vsel %vm392, %v3458, %v3460
        %v3473 = vsel %vm392, %v3462, %v3464
        %v3474 = vsel %vm392, %v3464, %v3466
        %3483 = vrot.lane.b32.xlu0 %v3217, 126
        %v3484 = vpop.permute.xlu0 %3483
        %3485 = vrot.lane.b32.xlu0 %v3219, 126
        %v3486 = vpop.permute.xlu0 %3485
        %3487 = vrot.lane.b32.xlu0 %v3417, 126
        %v3488 = vpop.permute.xlu0 %3487
        %3489 = vrot.lane.b32.xlu0 %v3221, 126
        %v3490 = vpop.permute.xlu0 %3489
        %3491 = vrot.lane.b32.xlu0 %v3223, 126
        %v3492 = vpop.permute.xlu0 %3491
        %3493 = vrot.lane.b32.xlu0 %v3420, 126
        %v3494 = vpop.permute.xlu0 %3493
        %3495 = vrot.lane.b32.xlu0 %v3227, 126
        %v3496 = vpop.permute.xlu0 %3495
        %3497 = vrot.lane.b32.xlu0 %v3229, 126
        %v3498 = vpop.permute.xlu0 %3497
        %3499 = vrot.lane.b32.xlu0 %v3425, 126
        %v3500 = vpop.permute.xlu0 %3499
        %3501 = vrot.lane.b32.xlu0 %v3231, 126
        %v3502 = vpop.permute.xlu0 %3501
        %3503 = vrot.lane.b32.xlu0 %v3233, 126
        %v3504 = vpop.permute.xlu0 %3503
        %3505 = vrot.lane.b32.xlu0 %v3428, 126
        %v3506 = vpop.permute.xlu0 %3505
        %v3507 = vsel %vm423, %v3484, %v3486
        %v3508 = vsel %vm423, %v3486, %v3488
        %v3509 = vsel %vm423, %v3490, %v3492
        %v3510 = vsel %vm423, %v3492, %v3494
        %v3511 = vsel %vm423, %v3496, %v3498
        %v3512 = vsel %vm423, %v3498, %v3500
        %v3513 = vsel %vm423, %v3502, %v3504
        %v3514 = vsel %vm423, %v3504, %v3506
        %3523 = vrot.lane.b32.xlu0 %v3217, 125
        %v3524 = vpop.permute.xlu0 %3523
        %3525 = vrot.lane.b32.xlu0 %v3219, 125
        %v3526 = vpop.permute.xlu0 %3525
        %3527 = vrot.lane.b32.xlu0 %v3417, 125
        %v3528 = vpop.permute.xlu0 %3527
        %3529 = vrot.lane.b32.xlu0 %v3221, 125
        %v3530 = vpop.permute.xlu0 %3529
        %3531 = vrot.lane.b32.xlu0 %v3223, 125
        %v3532 = vpop.permute.xlu0 %3531
        %3533 = vrot.lane.b32.xlu0 %v3420, 125
        %v3534 = vpop.permute.xlu0 %3533
        %3535 = vrot.lane.b32.xlu0 %v3227, 125
        %v3536 = vpop.permute.xlu0 %3535
        %3537 = vrot.lane.b32.xlu0 %v3229, 125
        %v3538 = vpop.permute.xlu0 %3537
        %3539 = vrot.lane.b32.xlu0 %v3425, 125
        %v3540 = vpop.permute.xlu0 %3539
        %3541 = vrot.lane.b32.xlu0 %v3231, 125
        %v3542 = vpop.permute.xlu0 %3541
        %3543 = vrot.lane.b32.xlu0 %v3233, 125
        %v3544 = vpop.permute.xlu0 %3543
        %3545 = vrot.lane.b32.xlu0 %v3428, 125
        %v3546 = vpop.permute.xlu0 %3545
        %v3547 = vsel %vm454, %v3524, %v3526
        %v3548 = vsel %vm454, %v3526, %v3528
        %v3549 = vsel %vm454, %v3530, %v3532
        %v3550 = vsel %vm454, %v3532, %v3534
        %v3551 = vsel %vm454, %v3536, %v3538
        %v3552 = vsel %vm454, %v3538, %v3540
        %v3553 = vsel %vm454, %v3542, %v3544
        %v3554 = vsel %vm454, %v3544, %v3546
        %3563 = vrot.lane.b32.xlu0 %v3217, 124
        %v3564 = vpop.permute.xlu0 %3563
        %3565 = vrot.lane.b32.xlu0 %v3219, 124
        %v3566 = vpop.permute.xlu0 %3565
        %3567 = vrot.lane.b32.xlu0 %v3417, 124
        %v3568 = vpop.permute.xlu0 %3567
        %3569 = vrot.lane.b32.xlu0 %v3221, 124
        %v3570 = vpop.permute.xlu0 %3569
        %3571 = vrot.lane.b32.xlu0 %v3223, 124
        %v3572 = vpop.permute.xlu0 %3571
        %3573 = vrot.lane.b32.xlu0 %v3420, 124
        %v3574 = vpop.permute.xlu0 %3573
        %3575 = vrot.lane.b32.xlu0 %v3227, 124
        %v3576 = vpop.permute.xlu0 %3575
        %3577 = vrot.lane.b32.xlu0 %v3229, 124
        %v3578 = vpop.permute.xlu0 %3577
        %3579 = vrot.lane.b32.xlu0 %v3425, 124
        %v3580 = vpop.permute.xlu0 %3579
        %3581 = vrot.lane.b32.xlu0 %v3231, 124
        %v3582 = vpop.permute.xlu0 %3581
        %3583 = vrot.lane.b32.xlu0 %v3233, 124
        %v3584 = vpop.permute.xlu0 %3583
        %3585 = vrot.lane.b32.xlu0 %v3428, 124
        %v3586 = vpop.permute.xlu0 %3585
        %v3587 = vsel %vm485, %v3564, %v3566
        %v3588 = vsel %vm485, %v3566, %v3568
        %v3589 = vsel %vm485, %v3570, %v3572
        %v3590 = vsel %vm485, %v3572, %v3574
        %v3591 = vsel %vm485, %v3576, %v3578
        %v3592 = vsel %vm485, %v3578, %v3580
        %v3593 = vsel %vm485, %v3582, %v3584
        %v3594 = vsel %vm485, %v3584, %v3586
        %3603 = vrot.lane.b32.xlu0 %v3217, 110
        %v3604 = vpop.permute.xlu0 %3603
        %3605 = vrot.lane.b32.xlu0 %v3219, 110
        %v3606 = vpop.permute.xlu0 %3605
        %3607 = vrot.lane.b32.xlu0 %v3417, 110
        %v3608 = vpop.permute.xlu0 %3607
        %3609 = vrot.lane.b32.xlu0 %v3221, 110
        %v3610 = vpop.permute.xlu0 %3609
        %3611 = vrot.lane.b32.xlu0 %v3223, 110
        %v3612 = vpop.permute.xlu0 %3611
        %3613 = vrot.lane.b32.xlu0 %v3420, 110
        %v3614 = vpop.permute.xlu0 %3613
        %3615 = vrot.lane.b32.xlu0 %v3227, 110
        %v3616 = vpop.permute.xlu0 %3615
        %3617 = vrot.lane.b32.xlu0 %v3229, 110
        %v3618 = vpop.permute.xlu0 %3617
        %3619 = vrot.lane.b32.xlu0 %v3425, 110
        %v3620 = vpop.permute.xlu0 %3619
        %3621 = vrot.lane.b32.xlu0 %v3231, 110
        %v3622 = vpop.permute.xlu0 %3621
        %3623 = vrot.lane.b32.xlu0 %v3233, 110
        %v3624 = vpop.permute.xlu0 %3623
        %3625 = vrot.lane.b32.xlu0 %v3428, 110
        %v3626 = vpop.permute.xlu0 %3625
        %vm3627 = vcmask 900096
        %v3628 = vsel %vm3627, %v3604, %v3606
        %v3629 = vsel %vm3627, %v3606, %v3608
        %v3630 = vsel %vm3627, %v3610, %v3612
        %v3631 = vsel %vm3627, %v3612, %v3614
        %v3632 = vsel %vm3627, %v3616, %v3618
        %v3633 = vsel %vm3627, %v3618, %v3620
        %v3634 = vsel %vm3627, %v3622, %v3624
        %v3635 = vsel %vm3627, %v3624, %v3626
        %3644 = vrot.lane.b32.xlu0 %v3217, 109
        %v3645 = vpop.permute.xlu0 %3644
        %3646 = vrot.lane.b32.xlu0 %v3219, 109
        %v3647 = vpop.permute.xlu0 %3646
        %3648 = vrot.lane.b32.xlu0 %v3417, 109
        %v3649 = vpop.permute.xlu0 %3648
        %3650 = vrot.lane.b32.xlu0 %v3221, 109
        %v3651 = vpop.permute.xlu0 %3650
        %3652 = vrot.lane.b32.xlu0 %v3223, 109
        %v3653 = vpop.permute.xlu0 %3652
        %3654 = vrot.lane.b32.xlu0 %v3420, 109
        %v3655 = vpop.permute.xlu0 %3654
        %3656 = vrot.lane.b32.xlu0 %v3227, 109
        %v3657 = vpop.permute.xlu0 %3656
        %3658 = vrot.lane.b32.xlu0 %v3229, 109
        %v3659 = vpop.permute.xlu0 %3658
        %3660 = vrot.lane.b32.xlu0 %v3425, 109
        %v3661 = vpop.permute.xlu0 %3660
        %3662 = vrot.lane.b32.xlu0 %v3231, 109
        %v3663 = vpop.permute.xlu0 %3662
        %3664 = vrot.lane.b32.xlu0 %v3233, 109
        %v3665 = vpop.permute.xlu0 %3664
        %3666 = vrot.lane.b32.xlu0 %v3428, 109
        %v3667 = vpop.permute.xlu0 %3666
        %vm3668 = vcmask 891904
        %v3669 = vsel %vm3668, %v3645, %v3647
        %v3670 = vsel %vm3668, %v3647, %v3649
        %v3671 = vsel %vm3668, %v3651, %v3653
        %v3672 = vsel %vm3668, %v3653, %v3655
        %v3673 = vsel %vm3668, %v3657, %v3659
        %v3674 = vsel %vm3668, %v3659, %v3661
        %v3675 = vsel %vm3668, %v3663, %v3665
        %v3676 = vsel %vm3668, %v3665, %v3667
        %3685 = vrot.lane.b32.xlu0 %v3217, 108
        %v3686 = vpop.permute.xlu0 %3685
        %3687 = vrot.lane.b32.xlu0 %v3219, 108
        %v3688 = vpop.permute.xlu0 %3687
        %3689 = vrot.lane.b32.xlu0 %v3417, 108
        %v3690 = vpop.permute.xlu0 %3689
        %3691 = vrot.lane.b32.xlu0 %v3221, 108
        %v3692 = vpop.permute.xlu0 %3691
        %3693 = vrot.lane.b32.xlu0 %v3223, 108
        %v3694 = vpop.permute.xlu0 %3693
        %3695 = vrot.lane.b32.xlu0 %v3420, 108
        %v3696 = vpop.permute.xlu0 %3695
        %3697 = vrot.lane.b32.xlu0 %v3227, 108
        %v3698 = vpop.permute.xlu0 %3697
        %3699 = vrot.lane.b32.xlu0 %v3229, 108
        %v3700 = vpop.permute.xlu0 %3699
        %3701 = vrot.lane.b32.xlu0 %v3425, 108
        %v3702 = vpop.permute.xlu0 %3701
        %3703 = vrot.lane.b32.xlu0 %v3231, 108
        %v3704 = vpop.permute.xlu0 %3703
        %3705 = vrot.lane.b32.xlu0 %v3233, 108
        %v3706 = vpop.permute.xlu0 %3705
        %3707 = vrot.lane.b32.xlu0 %v3428, 108
        %v3708 = vpop.permute.xlu0 %3707
        %vm3709 = vcmask 883712
        %v3710 = vsel %vm3709, %v3686, %v3688
        %v3711 = vsel %vm3709, %v3688, %v3690
        %v3712 = vsel %vm3709, %v3692, %v3694
        %v3713 = vsel %vm3709, %v3694, %v3696
        %v3714 = vsel %vm3709, %v3698, %v3700
        %v3715 = vsel %vm3709, %v3700, %v3702
        %v3716 = vsel %vm3709, %v3704, %v3706
        %v3717 = vsel %vm3709, %v3706, %v3708
        %3726 = vrot.lane.b32.xlu0 %v3217, 107
        %v3727 = vpop.permute.xlu0 %3726
        %3728 = vrot.lane.b32.xlu0 %v3219, 107
        %v3729 = vpop.permute.xlu0 %3728
        %3730 = vrot.lane.b32.xlu0 %v3417, 107
        %v3731 = vpop.permute.xlu0 %3730
        %3732 = vrot.lane.b32.xlu0 %v3221, 107
        %v3733 = vpop.permute.xlu0 %3732
        %3734 = vrot.lane.b32.xlu0 %v3223, 107
        %v3735 = vpop.permute.xlu0 %3734
        %3736 = vrot.lane.b32.xlu0 %v3420, 107
        %v3737 = vpop.permute.xlu0 %3736
        %3738 = vrot.lane.b32.xlu0 %v3227, 107
        %v3739 = vpop.permute.xlu0 %3738
        %3740 = vrot.lane.b32.xlu0 %v3229, 107
        %v3741 = vpop.permute.xlu0 %3740
        %3742 = vrot.lane.b32.xlu0 %v3425, 107
        %v3743 = vpop.permute.xlu0 %3742
        %3744 = vrot.lane.b32.xlu0 %v3231, 107
        %v3745 = vpop.permute.xlu0 %3744
        %3746 = vrot.lane.b32.xlu0 %v3233, 107
        %v3747 = vpop.permute.xlu0 %3746
        %3748 = vrot.lane.b32.xlu0 %v3428, 107
        %v3749 = vpop.permute.xlu0 %3748
        %vm3750 = vcmask 875520
        %v3751 = vsel %vm3750, %v3727, %v3729
        %v3752 = vsel %vm3750, %v3729, %v3731
        %v3753 = vsel %vm3750, %v3733, %v3735
        %v3754 = vsel %vm3750, %v3735, %v3737
        %v3755 = vsel %vm3750, %v3739, %v3741
        %v3756 = vsel %vm3750, %v3741, %v3743
        %v3757 = vsel %vm3750, %v3745, %v3747
        %v3758 = vsel %vm3750, %v3747, %v3749
        %3767 = vrot.lane.b32.xlu0 %v3217, 106
        %v3768 = vpop.permute.xlu0 %3767
        %3769 = vrot.lane.b32.xlu0 %v3219, 106
        %v3770 = vpop.permute.xlu0 %3769
        %3771 = vrot.lane.b32.xlu0 %v3417, 106
        %v3772 = vpop.permute.xlu0 %3771
        %3773 = vrot.lane.b32.xlu0 %v3221, 106
        %v3774 = vpop.permute.xlu0 %3773
        %3775 = vrot.lane.b32.xlu0 %v3223, 106
        %v3776 = vpop.permute.xlu0 %3775
        %3777 = vrot.lane.b32.xlu0 %v3420, 106
        %v3778 = vpop.permute.xlu0 %3777
        %3779 = vrot.lane.b32.xlu0 %v3227, 106
        %v3780 = vpop.permute.xlu0 %3779
        %3781 = vrot.lane.b32.xlu0 %v3229, 106
        %v3782 = vpop.permute.xlu0 %3781
        %3783 = vrot.lane.b32.xlu0 %v3425, 106
        %v3784 = vpop.permute.xlu0 %3783
        %3785 = vrot.lane.b32.xlu0 %v3231, 106
        %v3786 = vpop.permute.xlu0 %3785
        %3787 = vrot.lane.b32.xlu0 %v3233, 106
        %v3788 = vpop.permute.xlu0 %3787
        %3789 = vrot.lane.b32.xlu0 %v3428, 106
        %v3790 = vpop.permute.xlu0 %3789
        %vm3791 = vcmask 867328
        %v3792 = vsel %vm3791, %v3768, %v3770
        %v3793 = vsel %vm3791, %v3770, %v3772
        %v3794 = vsel %vm3791, %v3774, %v3776
        %v3795 = vsel %vm3791, %v3776, %v3778
        %v3796 = vsel %vm3791, %v3780, %v3782
        %v3797 = vsel %vm3791, %v3782, %v3784
        %v3798 = vsel %vm3791, %v3786, %v3788
        %v3799 = vsel %vm3791, %v3788, %v3790
        %3808 = vrot.lane.b32.xlu0 %v3217, 92
        %v3809 = vpop.permute.xlu0 %3808
        %3810 = vrot.lane.b32.xlu0 %v3219, 92
        %v3811 = vpop.permute.xlu0 %3810
        %3812 = vrot.lane.b32.xlu0 %v3417, 92
        %v3813 = vpop.permute.xlu0 %3812
        %3814 = vrot.lane.b32.xlu0 %v3221, 92
        %v3815 = vpop.permute.xlu0 %3814
        %3816 = vrot.lane.b32.xlu0 %v3223, 92
        %v3817 = vpop.permute.xlu0 %3816
        %3818 = vrot.lane.b32.xlu0 %v3420, 92
        %v3819 = vpop.permute.xlu0 %3818
        %3820 = vrot.lane.b32.xlu0 %v3227, 92
        %v3821 = vpop.permute.xlu0 %3820
        %3822 = vrot.lane.b32.xlu0 %v3229, 92
        %v3823 = vpop.permute.xlu0 %3822
        %3824 = vrot.lane.b32.xlu0 %v3425, 92
        %v3825 = vpop.permute.xlu0 %3824
        %3826 = vrot.lane.b32.xlu0 %v3231, 92
        %v3827 = vpop.permute.xlu0 %3826
        %3828 = vrot.lane.b32.xlu0 %v3233, 92
        %v3829 = vpop.permute.xlu0 %3828
        %3830 = vrot.lane.b32.xlu0 %v3428, 92
        %v3831 = vpop.permute.xlu0 %3830
        %v3832 = vsel %vm640, %v3809, %v3811
        %v3833 = vsel %vm640, %v3811, %v3813
        %v3834 = vsel %vm640, %v3815, %v3817
        %v3835 = vsel %vm640, %v3817, %v3819
        %v3836 = vsel %vm640, %v3821, %v3823
        %v3837 = vsel %vm640, %v3823, %v3825
        %v3838 = vsel %vm640, %v3827, %v3829
        %v3839 = vsel %vm640, %v3829, %v3831
        %3848 = vrot.lane.b32.xlu0 %v3217, 91
        %v3849 = vpop.permute.xlu0 %3848
        %3850 = vrot.lane.b32.xlu0 %v3219, 91
        %v3851 = vpop.permute.xlu0 %3850
        %3852 = vrot.lane.b32.xlu0 %v3417, 91
        %v3853 = vpop.permute.xlu0 %3852
        %3854 = vrot.lane.b32.xlu0 %v3221, 91
        %v3855 = vpop.permute.xlu0 %3854
        %3856 = vrot.lane.b32.xlu0 %v3223, 91
        %v3857 = vpop.permute.xlu0 %3856
        %3858 = vrot.lane.b32.xlu0 %v3420, 91
        %v3859 = vpop.permute.xlu0 %3858
        %3860 = vrot.lane.b32.xlu0 %v3227, 91
        %v3861 = vpop.permute.xlu0 %3860
        %3862 = vrot.lane.b32.xlu0 %v3229, 91
        %v3863 = vpop.permute.xlu0 %3862
        %3864 = vrot.lane.b32.xlu0 %v3425, 91
        %v3865 = vpop.permute.xlu0 %3864
        %3866 = vrot.lane.b32.xlu0 %v3231, 91
        %v3867 = vpop.permute.xlu0 %3866
        %3868 = vrot.lane.b32.xlu0 %v3233, 91
        %v3869 = vpop.permute.xlu0 %3868
        %3870 = vrot.lane.b32.xlu0 %v3428, 91
        %v3871 = vpop.permute.xlu0 %3870
        %vm3872 = vcmask 744448
        %v3873 = vsel %vm3872, %v3849, %v3851
        %v3874 = vsel %vm3872, %v3851, %v3853
        %v3875 = vsel %vm3872, %v3855, %v3857
        %v3876 = vsel %vm3872, %v3857, %v3859
        %v3877 = vsel %vm3872, %v3861, %v3863
        %v3878 = vsel %vm3872, %v3863, %v3865
        %v3879 = vsel %vm3872, %v3867, %v3869
        %v3880 = vsel %vm3872, %v3869, %v3871
        %3889 = vrot.lane.b32.xlu0 %v3217, 90
        %v3890 = vpop.permute.xlu0 %3889
        %3891 = vrot.lane.b32.xlu0 %v3219, 90
        %v3892 = vpop.permute.xlu0 %3891
        %3893 = vrot.lane.b32.xlu0 %v3417, 90
        %v3894 = vpop.permute.xlu0 %3893
        %3895 = vrot.lane.b32.xlu0 %v3221, 90
        %v3896 = vpop.permute.xlu0 %3895
        %3897 = vrot.lane.b32.xlu0 %v3223, 90
        %v3898 = vpop.permute.xlu0 %3897
        %3899 = vrot.lane.b32.xlu0 %v3420, 90
        %v3900 = vpop.permute.xlu0 %3899
        %3901 = vrot.lane.b32.xlu0 %v3227, 90
        %v3902 = vpop.permute.xlu0 %3901
        %3903 = vrot.lane.b32.xlu0 %v3229, 90
        %v3904 = vpop.permute.xlu0 %3903
        %3905 = vrot.lane.b32.xlu0 %v3425, 90
        %v3906 = vpop.permute.xlu0 %3905
        %3907 = vrot.lane.b32.xlu0 %v3231, 90
        %v3908 = vpop.permute.xlu0 %3907
        %3909 = vrot.lane.b32.xlu0 %v3233, 90
        %v3910 = vpop.permute.xlu0 %3909
        %3911 = vrot.lane.b32.xlu0 %v3428, 90
        %v3912 = vpop.permute.xlu0 %3911
        %vm3913 = vcmask 736256
        %v3914 = vsel %vm3913, %v3890, %v3892
        %v3915 = vsel %vm3913, %v3892, %v3894
        %v3916 = vsel %vm3913, %v3896, %v3898
        %v3917 = vsel %vm3913, %v3898, %v3900
        %v3918 = vsel %vm3913, %v3902, %v3904
        %v3919 = vsel %vm3913, %v3904, %v3906
        %v3920 = vsel %vm3913, %v3908, %v3910
        %v3921 = vsel %vm3913, %v3910, %v3912
        %3930 = vrot.lane.b32.xlu0 %v3217, 89
        %v3931 = vpop.permute.xlu0 %3930
        %3932 = vrot.lane.b32.xlu0 %v3219, 89
        %v3933 = vpop.permute.xlu0 %3932
        %3934 = vrot.lane.b32.xlu0 %v3417, 89
        %v3935 = vpop.permute.xlu0 %3934
        %3936 = vrot.lane.b32.xlu0 %v3221, 89
        %v3937 = vpop.permute.xlu0 %3936
        %3938 = vrot.lane.b32.xlu0 %v3223, 89
        %v3939 = vpop.permute.xlu0 %3938
        %3940 = vrot.lane.b32.xlu0 %v3420, 89
        %v3941 = vpop.permute.xlu0 %3940
        %3942 = vrot.lane.b32.xlu0 %v3227, 89
        %v3943 = vpop.permute.xlu0 %3942
        %3944 = vrot.lane.b32.xlu0 %v3229, 89
        %v3945 = vpop.permute.xlu0 %3944
        %3946 = vrot.lane.b32.xlu0 %v3425, 89
        %v3947 = vpop.permute.xlu0 %3946
        %3948 = vrot.lane.b32.xlu0 %v3231, 89
        %v3949 = vpop.permute.xlu0 %3948
        %3950 = vrot.lane.b32.xlu0 %v3233, 89
        %v3951 = vpop.permute.xlu0 %3950
        %3952 = vrot.lane.b32.xlu0 %v3428, 89
        %v3953 = vpop.permute.xlu0 %3952
        %vm3954 = vcmask 728064
        %v3955 = vsel %vm3954, %v3931, %v3933
        %v3956 = vsel %vm3954, %v3933, %v3935
        %v3957 = vsel %vm3954, %v3937, %v3939
        %v3958 = vsel %vm3954, %v3939, %v3941
        %v3959 = vsel %vm3954, %v3943, %v3945
        %v3960 = vsel %vm3954, %v3945, %v3947
        %v3961 = vsel %vm3954, %v3949, %v3951
        %v3962 = vsel %vm3954, %v3951, %v3953
        %3971 = vrot.lane.b32.xlu0 %v3217, 88
        %v3972 = vpop.permute.xlu0 %3971
        %3973 = vrot.lane.b32.xlu0 %v3219, 88
        %v3974 = vpop.permute.xlu0 %3973
        %3975 = vrot.lane.b32.xlu0 %v3417, 88
        %v3976 = vpop.permute.xlu0 %3975
        %3977 = vrot.lane.b32.xlu0 %v3221, 88
        %v3978 = vpop.permute.xlu0 %3977
        %3979 = vrot.lane.b32.xlu0 %v3223, 88
        %v3980 = vpop.permute.xlu0 %3979
        %3981 = vrot.lane.b32.xlu0 %v3420, 88
        %v3982 = vpop.permute.xlu0 %3981
        %3983 = vrot.lane.b32.xlu0 %v3227, 88
        %v3984 = vpop.permute.xlu0 %3983
        %3985 = vrot.lane.b32.xlu0 %v3229, 88
        %v3986 = vpop.permute.xlu0 %3985
        %3987 = vrot.lane.b32.xlu0 %v3425, 88
        %v3988 = vpop.permute.xlu0 %3987
        %3989 = vrot.lane.b32.xlu0 %v3231, 88
        %v3990 = vpop.permute.xlu0 %3989
        %3991 = vrot.lane.b32.xlu0 %v3233, 88
        %v3992 = vpop.permute.xlu0 %3991
        %3993 = vrot.lane.b32.xlu0 %v3428, 88
        %v3994 = vpop.permute.xlu0 %3993
        %vm3995 = vcmask 719872
        %v3996 = vsel %vm3995, %v3972, %v3974
        %v3997 = vsel %vm3995, %v3974, %v3976
        %v3998 = vsel %vm3995, %v3978, %v3980
        %v3999 = vsel %vm3995, %v3980, %v3982
        %v4000 = vsel %vm3995, %v3984, %v3986
        %v4001 = vsel %vm3995, %v3986, %v3988
        %v4002 = vsel %vm3995, %v3990, %v3992
        %v4003 = vsel %vm3995, %v3992, %v3994
        %4012 = vrot.lane.b32.xlu0 %v3217, 74
        %v4013 = vpop.permute.xlu0 %4012
        %4014 = vrot.lane.b32.xlu0 %v3219, 74
        %v4015 = vpop.permute.xlu0 %4014
        %4016 = vrot.lane.b32.xlu0 %v3417, 74
        %v4017 = vpop.permute.xlu0 %4016
        %4018 = vrot.lane.b32.xlu0 %v3221, 74
        %v4019 = vpop.permute.xlu0 %4018
        %4020 = vrot.lane.b32.xlu0 %v3223, 74
        %v4021 = vpop.permute.xlu0 %4020
        %4022 = vrot.lane.b32.xlu0 %v3420, 74
        %v4023 = vpop.permute.xlu0 %4022
        %4024 = vrot.lane.b32.xlu0 %v3227, 74
        %v4025 = vpop.permute.xlu0 %4024
        %4026 = vrot.lane.b32.xlu0 %v3229, 74
        %v4027 = vpop.permute.xlu0 %4026
        %4028 = vrot.lane.b32.xlu0 %v3425, 74
        %v4029 = vpop.permute.xlu0 %4028
        %4030 = vrot.lane.b32.xlu0 %v3231, 74
        %v4031 = vpop.permute.xlu0 %4030
        %4032 = vrot.lane.b32.xlu0 %v3233, 74
        %v4033 = vpop.permute.xlu0 %4032
        %4034 = vrot.lane.b32.xlu0 %v3428, 74
        %v4035 = vpop.permute.xlu0 %4034
        %vm4036 = vcmask 605184
        %v4037 = vsel %vm4036, %v4013, %v4015
        %v4038 = vsel %vm4036, %v4015, %v4017
        %v4039 = vsel %vm4036, %v4019, %v4021
        %v4040 = vsel %vm4036, %v4021, %v4023
        %v4041 = vsel %vm4036, %v4025, %v4027
        %v4042 = vsel %vm4036, %v4027, %v4029
        %v4043 = vsel %vm4036, %v4031, %v4033
        %v4044 = vsel %vm4036, %v4033, %v4035
        %4053 = vrot.lane.b32.xlu0 %v3217, 111
        %v4054 = vpop.permute.xlu0 %4053
        %4055 = vrot.lane.b32.xlu0 %v3219, 111
        %v4056 = vpop.permute.xlu0 %4055
        %4057 = vrot.lane.b32.xlu0 %v3417, 111
        %v4058 = vpop.permute.xlu0 %4057
        %4059 = vrot.lane.b32.xlu0 %v3221, 111
        %v4060 = vpop.permute.xlu0 %4059
        %4061 = vrot.lane.b32.xlu0 %v3223, 111
        %v4062 = vpop.permute.xlu0 %4061
        %4063 = vrot.lane.b32.xlu0 %v3420, 111
        %v4064 = vpop.permute.xlu0 %4063
        %4065 = vrot.lane.b32.xlu0 %v3227, 111
        %v4066 = vpop.permute.xlu0 %4065
        %4067 = vrot.lane.b32.xlu0 %v3229, 111
        %v4068 = vpop.permute.xlu0 %4067
        %4069 = vrot.lane.b32.xlu0 %v3425, 111
        %v4070 = vpop.permute.xlu0 %4069
        %4071 = vrot.lane.b32.xlu0 %v3231, 111
        %v4072 = vpop.permute.xlu0 %4071
        %4073 = vrot.lane.b32.xlu0 %v3233, 111
        %v4074 = vpop.permute.xlu0 %4073
        %4075 = vrot.lane.b32.xlu0 %v3428, 111
        %v4076 = vpop.permute.xlu0 %4075
        %vm4077 = vcmask 908288
        %v4078 = vsel %vm4077, %v4054, %v4056
        %v4079 = vsel %vm4077, %v4056, %v4058
        %v4080 = vsel %vm4077, %v4060, %v4062
        %v4081 = vsel %vm4077, %v4062, %v4064
        %v4082 = vsel %vm4077, %v4066, %v4068
        %v4083 = vsel %vm4077, %v4068, %v4070
        %v4084 = vsel %vm4077, %v4072, %v4074
        %v4085 = vsel %vm4077, %v4074, %v4076
        %4086 = vrot.lane.b32.xlu0 %v3217, 73
        %v4087 = vpop.permute.xlu0 %4086
        %4088 = vrot.lane.b32.xlu0 %v3219, 73
        %v4089 = vpop.permute.xlu0 %4088
        %4090 = vrot.lane.b32.xlu0 %v3417, 73
        %v4091 = vpop.permute.xlu0 %4090
        %4092 = vrot.lane.b32.xlu0 %v3221, 73
        %v4093 = vpop.permute.xlu0 %4092
        %4094 = vrot.lane.b32.xlu0 %v3223, 73
        %v4095 = vpop.permute.xlu0 %4094
        %4096 = vrot.lane.b32.xlu0 %v3420, 73
        %v4097 = vpop.permute.xlu0 %4096
        %4098 = vrot.lane.b32.xlu0 %v3227, 73
        %v4099 = vpop.permute.xlu0 %4098
        %4100 = vrot.lane.b32.xlu0 %v3229, 73
        %v4101 = vpop.permute.xlu0 %4100
        %4102 = vrot.lane.b32.xlu0 %v3425, 73
        %v4103 = vpop.permute.xlu0 %4102
        %4104 = vrot.lane.b32.xlu0 %v3231, 73
        %v4105 = vpop.permute.xlu0 %4104
        %4106 = vrot.lane.b32.xlu0 %v3233, 73
        %v4107 = vpop.permute.xlu0 %4106
        %4108 = vrot.lane.b32.xlu0 %v3428, 73
        %v4109 = vpop.permute.xlu0 %4108
        %4110 = vrot.lane.b32.xlu0 %v3467, 73
        %v4111 = vpop.permute.xlu0 %4110
        %4112 = vrot.lane.b32.xlu0 %v3468, 73
        %v4113 = vpop.permute.xlu0 %4112
        %4114 = vrot.lane.b32.xlu0 %v3448, 73
        %v4115 = vpop.permute.xlu0 %4114
        %4116 = vrot.lane.b32.xlu0 %v3469, 73
        %v4117 = vpop.permute.xlu0 %4116
        %4118 = vrot.lane.b32.xlu0 %v3470, 73
        %v4119 = vpop.permute.xlu0 %4118
        %4120 = vrot.lane.b32.xlu0 %v3454, 73
        %v4121 = vpop.permute.xlu0 %4120
        %4122 = vrot.lane.b32.xlu0 %v3471, 73
        %v4123 = vpop.permute.xlu0 %4122
        %4124 = vrot.lane.b32.xlu0 %v3472, 73
        %v4125 = vpop.permute.xlu0 %4124
        %4126 = vrot.lane.b32.xlu0 %v3460, 73
        %v4127 = vpop.permute.xlu0 %4126
        %4128 = vrot.lane.b32.xlu0 %v3473, 73
        %v4129 = vpop.permute.xlu0 %4128
        %4130 = vrot.lane.b32.xlu0 %v3474, 73
        %v4131 = vpop.permute.xlu0 %4130
        %4132 = vrot.lane.b32.xlu0 %v3466, 73
        %v4133 = vpop.permute.xlu0 %4132
        %4134 = vrot.lane.b32.xlu0 %v3507, 73
        %v4135 = vpop.permute.xlu0 %4134
        %4136 = vrot.lane.b32.xlu0 %v3508, 73
        %v4137 = vpop.permute.xlu0 %4136
        %4138 = vrot.lane.b32.xlu0 %v3488, 73
        %v4139 = vpop.permute.xlu0 %4138
        %4140 = vrot.lane.b32.xlu0 %v3509, 73
        %v4141 = vpop.permute.xlu0 %4140
        %4142 = vrot.lane.b32.xlu0 %v3510, 73
        %v4143 = vpop.permute.xlu0 %4142
        %4144 = vrot.lane.b32.xlu0 %v3494, 73
        %v4145 = vpop.permute.xlu0 %4144
        %4146 = vrot.lane.b32.xlu0 %v3511, 73
        %v4147 = vpop.permute.xlu0 %4146
        %4148 = vrot.lane.b32.xlu0 %v3512, 73
        %v4149 = vpop.permute.xlu0 %4148
        %4150 = vrot.lane.b32.xlu0 %v3500, 73
        %v4151 = vpop.permute.xlu0 %4150
        %4152 = vrot.lane.b32.xlu0 %v3513, 73
        %v4153 = vpop.permute.xlu0 %4152
        %4154 = vrot.lane.b32.xlu0 %v3514, 73
        %v4155 = vpop.permute.xlu0 %4154
        %4156 = vrot.lane.b32.xlu0 %v3506, 73
        %v4157 = vpop.permute.xlu0 %4156
        %4158 = vrot.lane.b32.xlu0 %v3547, 73
        %v4159 = vpop.permute.xlu0 %4158
        %4160 = vrot.lane.b32.xlu0 %v3548, 73
        %v4161 = vpop.permute.xlu0 %4160
        %4162 = vrot.lane.b32.xlu0 %v3528, 73
        %v4163 = vpop.permute.xlu0 %4162
        %4164 = vrot.lane.b32.xlu0 %v3549, 73
        %v4165 = vpop.permute.xlu0 %4164
        %4166 = vrot.lane.b32.xlu0 %v3550, 73
        %v4167 = vpop.permute.xlu0 %4166
        %4168 = vrot.lane.b32.xlu0 %v3534, 73
        %v4169 = vpop.permute.xlu0 %4168
        %4170 = vrot.lane.b32.xlu0 %v3551, 73
        %v4171 = vpop.permute.xlu0 %4170
        %4172 = vrot.lane.b32.xlu0 %v3552, 73
        %v4173 = vpop.permute.xlu0 %4172
        %4174 = vrot.lane.b32.xlu0 %v3540, 73
        %v4175 = vpop.permute.xlu0 %4174
        %4176 = vrot.lane.b32.xlu0 %v3553, 73
        %v4177 = vpop.permute.xlu0 %4176
        %4178 = vrot.lane.b32.xlu0 %v3554, 73
        %v4179 = vpop.permute.xlu0 %4178
        %4180 = vrot.lane.b32.xlu0 %v3546, 73
        %v4181 = vpop.permute.xlu0 %4180
        %4182 = vrot.lane.b32.xlu0 %v4078, 73
        %v4183 = vpop.permute.xlu0 %4182
        %4184 = vrot.lane.b32.xlu0 %v4079, 73
        %v4185 = vpop.permute.xlu0 %4184
        %4186 = vrot.lane.b32.xlu0 %v4058, 73
        %v4187 = vpop.permute.xlu0 %4186
        %4188 = vrot.lane.b32.xlu0 %v4080, 73
        %v4189 = vpop.permute.xlu0 %4188
        %4190 = vrot.lane.b32.xlu0 %v4081, 73
        %v4191 = vpop.permute.xlu0 %4190
        %4192 = vrot.lane.b32.xlu0 %v4064, 73
        %v4193 = vpop.permute.xlu0 %4192
        %4194 = vrot.lane.b32.xlu0 %v4082, 73
        %v4195 = vpop.permute.xlu0 %4194
        %4196 = vrot.lane.b32.xlu0 %v4083, 73
        %v4197 = vpop.permute.xlu0 %4196
        %4198 = vrot.lane.b32.xlu0 %v4070, 73
        %v4199 = vpop.permute.xlu0 %4198
        %4200 = vrot.lane.b32.xlu0 %v4084, 73
        %v4201 = vpop.permute.xlu0 %4200
        %4202 = vrot.lane.b32.xlu0 %v4085, 73
        %v4203 = vpop.permute.xlu0 %4202
        %4204 = vrot.lane.b32.xlu0 %v4076, 73
        %v4205 = vpop.permute.xlu0 %4204
        %4206 = vrot.lane.b32.xlu0 %v3628, 73
        %v4207 = vpop.permute.xlu0 %4206
        %4208 = vrot.lane.b32.xlu0 %v3629, 73
        %v4209 = vpop.permute.xlu0 %4208
        %4210 = vrot.lane.b32.xlu0 %v3608, 73
        %v4211 = vpop.permute.xlu0 %4210
        %4212 = vrot.lane.b32.xlu0 %v3630, 73
        %v4213 = vpop.permute.xlu0 %4212
        %4214 = vrot.lane.b32.xlu0 %v3631, 73
        %v4215 = vpop.permute.xlu0 %4214
        %4216 = vrot.lane.b32.xlu0 %v3614, 73
        %v4217 = vpop.permute.xlu0 %4216
        %4218 = vrot.lane.b32.xlu0 %v3632, 73
        %v4219 = vpop.permute.xlu0 %4218
        %4220 = vrot.lane.b32.xlu0 %v3633, 73
        %v4221 = vpop.permute.xlu0 %4220
        %4222 = vrot.lane.b32.xlu0 %v3620, 73
        %v4223 = vpop.permute.xlu0 %4222
        %4224 = vrot.lane.b32.xlu0 %v3634, 73
        %v4225 = vpop.permute.xlu0 %4224
        %4226 = vrot.lane.b32.xlu0 %v3635, 73
        %v4227 = vpop.permute.xlu0 %4226
        %4228 = vrot.lane.b32.xlu0 %v3626, 73
        %v4229 = vpop.permute.xlu0 %4228
        %4230 = vrot.lane.b32.xlu0 %v3669, 73
        %v4231 = vpop.permute.xlu0 %4230
        %4232 = vrot.lane.b32.xlu0 %v3670, 73
        %v4233 = vpop.permute.xlu0 %4232
        %4234 = vrot.lane.b32.xlu0 %v3649, 73
        %v4235 = vpop.permute.xlu0 %4234
        %4236 = vrot.lane.b32.xlu0 %v3671, 73
        %v4237 = vpop.permute.xlu0 %4236
        %4238 = vrot.lane.b32.xlu0 %v3672, 73
        %v4239 = vpop.permute.xlu0 %4238
        %4240 = vrot.lane.b32.xlu0 %v3655, 73
        %v4241 = vpop.permute.xlu0 %4240
        %4242 = vrot.lane.b32.xlu0 %v3673, 73
        %v4243 = vpop.permute.xlu0 %4242
        %4244 = vrot.lane.b32.xlu0 %v3674, 73
        %v4245 = vpop.permute.xlu0 %4244
        %4246 = vrot.lane.b32.xlu0 %v3661, 73
        %v4247 = vpop.permute.xlu0 %4246
        %4248 = vrot.lane.b32.xlu0 %v3675, 73
        %v4249 = vpop.permute.xlu0 %4248
        %4250 = vrot.lane.b32.xlu0 %v3676, 73
        %v4251 = vpop.permute.xlu0 %4250
        %4252 = vrot.lane.b32.xlu0 %v3667, 73
        %v4253 = vpop.permute.xlu0 %4252
        %4254 = vrot.lane.b32.xlu0 %v3710, 73
        %v4255 = vpop.permute.xlu0 %4254
        %4256 = vrot.lane.b32.xlu0 %v3711, 73
        %v4257 = vpop.permute.xlu0 %4256
        %4258 = vrot.lane.b32.xlu0 %v3690, 73
        %v4259 = vpop.permute.xlu0 %4258
        %4260 = vrot.lane.b32.xlu0 %v3712, 73
        %v4261 = vpop.permute.xlu0 %4260
        %4262 = vrot.lane.b32.xlu0 %v3713, 73
        %v4263 = vpop.permute.xlu0 %4262
        %4264 = vrot.lane.b32.xlu0 %v3696, 73
        %v4265 = vpop.permute.xlu0 %4264
        %4266 = vrot.lane.b32.xlu0 %v3714, 73
        %v4267 = vpop.permute.xlu0 %4266
        %4268 = vrot.lane.b32.xlu0 %v3715, 73
        %v4269 = vpop.permute.xlu0 %4268
        %4270 = vrot.lane.b32.xlu0 %v3702, 73
        %v4271 = vpop.permute.xlu0 %4270
        %4272 = vrot.lane.b32.xlu0 %v3716, 73
        %v4273 = vpop.permute.xlu0 %4272
        %4274 = vrot.lane.b32.xlu0 %v3717, 73
        %v4275 = vpop.permute.xlu0 %4274
        %4276 = vrot.lane.b32.xlu0 %v3708, 73
        %v4277 = vpop.permute.xlu0 %4276
        %4278 = vrot.lane.b32.xlu0 %v3751, 73
        %v4279 = vpop.permute.xlu0 %4278
        %4280 = vrot.lane.b32.xlu0 %v3752, 73
        %v4281 = vpop.permute.xlu0 %4280
        %4282 = vrot.lane.b32.xlu0 %v3731, 73
        %v4283 = vpop.permute.xlu0 %4282
        %4284 = vrot.lane.b32.xlu0 %v3753, 73
        %v4285 = vpop.permute.xlu0 %4284
        %4286 = vrot.lane.b32.xlu0 %v3754, 73
        %v4287 = vpop.permute.xlu0 %4286
        %4288 = vrot.lane.b32.xlu0 %v3737, 73
        %v4289 = vpop.permute.xlu0 %4288
        %4290 = vrot.lane.b32.xlu0 %v3755, 73
        %v4291 = vpop.permute.xlu0 %4290
        %4292 = vrot.lane.b32.xlu0 %v3756, 73
        %v4293 = vpop.permute.xlu0 %4292
        %4294 = vrot.lane.b32.xlu0 %v3743, 73
        %v4295 = vpop.permute.xlu0 %4294
        %4296 = vrot.lane.b32.xlu0 %v3757, 73
        %v4297 = vpop.permute.xlu0 %4296
        %4298 = vrot.lane.b32.xlu0 %v3758, 73
        %v4299 = vpop.permute.xlu0 %4298
        %4300 = vrot.lane.b32.xlu0 %v3749, 73
        %v4301 = vpop.permute.xlu0 %4300
        %vm4302 = vcmask 596992
        %v4303 = vsel %vm4302, %v4087, %v4089
        %v4304 = vsel %vm4302, %v4089, %v4091
        %v4305 = vsel %vm4302, %v4093, %v4095
        %v4306 = vsel %vm4302, %v4095, %v4097
        %v4307 = vsel %vm4302, %v4099, %v4101
        %v4308 = vsel %vm4302, %v4101, %v4103
        %v4309 = vsel %vm4302, %v4105, %v4107
        %v4310 = vsel %vm4302, %v4107, %v4109
        %v4311 = vsel %vm4302, %v4111, %v4113
        %v4312 = vsel %vm4302, %v4113, %v4115
        %v4313 = vsel %vm4302, %v4117, %v4119
        %v4314 = vsel %vm4302, %v4119, %v4121
        %v4315 = vsel %vm4302, %v4123, %v4125
        %v4316 = vsel %vm4302, %v4125, %v4127
        %v4317 = vsel %vm4302, %v4129, %v4131
        %v4318 = vsel %vm4302, %v4131, %v4133
        %v4319 = vsel %vm4302, %v4135, %v4137
        %v4320 = vsel %vm4302, %v4137, %v4139
        %v4321 = vsel %vm4302, %v4141, %v4143
        %v4322 = vsel %vm4302, %v4143, %v4145
        %v4323 = vsel %vm4302, %v4147, %v4149
        %v4324 = vsel %vm4302, %v4149, %v4151
        %v4325 = vsel %vm4302, %v4153, %v4155
        %v4326 = vsel %vm4302, %v4155, %v4157
        %v4327 = vsel %vm4302, %v4159, %v4161
        %v4328 = vsel %vm4302, %v4161, %v4163
        %v4329 = vsel %vm4302, %v4165, %v4167
        %v4330 = vsel %vm4302, %v4167, %v4169
        %v4331 = vsel %vm4302, %v4171, %v4173
        %v4332 = vsel %vm4302, %v4173, %v4175
        %v4333 = vsel %vm4302, %v4177, %v4179
        %v4334 = vsel %vm4302, %v4179, %v4181
        %v4335 = vsel %vm4302, %v4183, %v4185
        %v4336 = vsel %vm4302, %v4185, %v4187
        %v4337 = vsel %vm4302, %v4189, %v4191
        %v4338 = vsel %vm4302, %v4191, %v4193
        %v4339 = vsel %vm4302, %v4195, %v4197
        %v4340 = vsel %vm4302, %v4197, %v4199
        %v4341 = vsel %vm4302, %v4201, %v4203
        %v4342 = vsel %vm4302, %v4203, %v4205
        %v4343 = vsel %vm4302, %v4207, %v4209
        %v4344 = vsel %vm4302, %v4209, %v4211
        %v4345 = vsel %vm4302, %v4213, %v4215
        %v4346 = vsel %vm4302, %v4215, %v4217
        %v4347 = vsel %vm4302, %v4219, %v4221
        %v4348 = vsel %vm4302, %v4221, %v4223
        %v4349 = vsel %vm4302, %v4225, %v4227
        %v4350 = vsel %vm4302, %v4227, %v4229
        %v4351 = vsel %vm4302, %v4231, %v4233
        %v4352 = vsel %vm4302, %v4233, %v4235
        %v4353 = vsel %vm4302, %v4237, %v4239
        %v4354 = vsel %vm4302, %v4239, %v4241
        %v4355 = vsel %vm4302, %v4243, %v4245
        %v4356 = vsel %vm4302, %v4245, %v4247
        %v4357 = vsel %vm4302, %v4249, %v4251
        %v4358 = vsel %vm4302, %v4251, %v4253
        %v4359 = vsel %vm4302, %v4255, %v4257
        %v4360 = vsel %vm4302, %v4257, %v4259
        %v4361 = vsel %vm4302, %v4261, %v4263
        %v4362 = vsel %vm4302, %v4263, %v4265
        %v4363 = vsel %vm4302, %v4267, %v4269
        %v4364 = vsel %vm4302, %v4269, %v4271
        %v4365 = vsel %vm4302, %v4273, %v4275
        %v4366 = vsel %vm4302, %v4275, %v4277
        %v4367 = vsel %vm4302, %v4279, %v4281
        %v4368 = vsel %vm4302, %v4281, %v4283
        %v4369 = vsel %vm4302, %v4285, %v4287
        %v4370 = vsel %vm4302, %v4287, %v4289
        %v4371 = vsel %vm4302, %v4291, %v4293
        %v4372 = vsel %vm4302, %v4293, %v4295
        %v4373 = vsel %vm4302, %v4297, %v4299
        %v4374 = vsel %vm4302, %v4299, %v4301
        %v4447 = vpack.c.bf16 %v3221, %v3217
        %v4448 = vpack.c.bf16 %v3223, %v3219
        %v4449 = vpack.c.bf16 %v3231, %v3227
        %v4450 = vpack.c.bf16 %v3233, %v3229
        %v4451 = vpack.c.bf16 %v3469, %v3467
        %v4452 = vpack.c.bf16 %v3470, %v3468
        %v4453 = vpack.c.bf16 %v3473, %v3471
        %v4454 = vpack.c.bf16 %v3474, %v3472
        %v4455 = vpack.c.bf16 %v3509, %v3507
        %v4456 = vpack.c.bf16 %v3510, %v3508
        %v4457 = vpack.c.bf16 %v3513, %v3511
        %v4458 = vpack.c.bf16 %v3514, %v3512
        %v4459 = vpack.c.bf16 %v3549, %v3547
        %v4460 = vpack.c.bf16 %v3550, %v3548
        %v4461 = vpack.c.bf16 %v3553, %v3551
        %v4462 = vpack.c.bf16 %v3554, %v3552
        %v4463 = vpack.c.bf16 %v3589, %v3587
        %v4464 = vpack.c.bf16 %v3590, %v3588
        %v4465 = vpack.c.bf16 %v3593, %v3591
        %v4466 = vpack.c.bf16 %v3594, %v3592
        %v4467 = vpack.c.bf16 %v3630, %v3628
        %v4468 = vpack.c.bf16 %v3631, %v3629
        %v4469 = vpack.c.bf16 %v3634, %v3632
        %v4470 = vpack.c.bf16 %v3635, %v3633
        %v4471 = vpack.c.bf16 %v3671, %v3669
        %v4472 = vpack.c.bf16 %v3672, %v3670
        %v4473 = vpack.c.bf16 %v3675, %v3673
        %v4474 = vpack.c.bf16 %v3676, %v3674
        %v4475 = vpack.c.bf16 %v3712, %v3710
        %v4476 = vpack.c.bf16 %v3713, %v3711
        %v4477 = vpack.c.bf16 %v3716, %v3714
        %v4478 = vpack.c.bf16 %v3717, %v3715
        %v4479 = vpack.c.bf16 %v3753, %v3751
        %v4480 = vpack.c.bf16 %v3754, %v3752
        %v4481 = vpack.c.bf16 %v3757, %v3755
        %v4482 = vpack.c.bf16 %v3758, %v3756
        %v4483 = vpack.c.bf16 %v3794, %v3792
        %v4484 = vpack.c.bf16 %v3795, %v3793
        %v4485 = vpack.c.bf16 %v3798, %v3796
        %v4486 = vpack.c.bf16 %v3799, %v3797
        %v4487 = vpack.c.bf16 %v3834, %v3832
        %v4488 = vpack.c.bf16 %v3835, %v3833
        %v4489 = vpack.c.bf16 %v3838, %v3836
        %v4490 = vpack.c.bf16 %v3839, %v3837
        %v4491 = vpack.c.bf16 %v3875, %v3873
        %v4492 = vpack.c.bf16 %v3876, %v3874
        %v4493 = vpack.c.bf16 %v3879, %v3877
        %v4494 = vpack.c.bf16 %v3880, %v3878
        %v4495 = vpack.c.bf16 %v3916, %v3914
        %v4496 = vpack.c.bf16 %v3917, %v3915
        %v4497 = vpack.c.bf16 %v3920, %v3918
        %v4498 = vpack.c.bf16 %v3921, %v3919
        %v4499 = vpack.c.bf16 %v3957, %v3955
        %v4500 = vpack.c.bf16 %v3958, %v3956
        %v4501 = vpack.c.bf16 %v3961, %v3959
        %v4502 = vpack.c.bf16 %v3962, %v3960
        %v4503 = vpack.c.bf16 %v3998, %v3996
        %v4504 = vpack.c.bf16 %v3999, %v3997
        %v4505 = vpack.c.bf16 %v4002, %v4000
        %v4506 = vpack.c.bf16 %v4003, %v4001
        %v4507 = vpack.c.bf16 %v4039, %v4037
        %v4508 = vpack.c.bf16 %v4040, %v4038
        %v4509 = vpack.c.bf16 %v4043, %v4041
        %v4510 = vpack.c.bf16 %v4044, %v4042
        %v4511 = vpack.c.bf16 %v4305, %v4303
        %v4512 = vpack.c.bf16 %v4306, %v4304
        %v4513 = vpack.c.bf16 %v4309, %v4307
        %v4514 = vpack.c.bf16 %v4310, %v4308
        %v4515 = vpack.c.bf16 %v4313, %v4311
        %v4516 = vpack.c.bf16 %v4314, %v4312
        %v4517 = vpack.c.bf16 %v4317, %v4315
        %v4518 = vpack.c.bf16 %v4318, %v4316
        %v4519 = vpack.c.bf16 %v4321, %v4319
        %v4520 = vpack.c.bf16 %v4322, %v4320
        %v4521 = vpack.c.bf16 %v4325, %v4323
        %v4522 = vpack.c.bf16 %v4326, %v4324
        %v4523 = vpack.c.bf16 %v4329, %v4327
        %v4524 = vpack.c.bf16 %v4330, %v4328
        %v4525 = vpack.c.bf16 %v4333, %v4331
        %v4526 = vpack.c.bf16 %v4334, %v4332
        %v4527 = vpack.c.bf16 %v4337, %v4335
        %v4528 = vpack.c.bf16 %v4338, %v4336
        %v4529 = vpack.c.bf16 %v4341, %v4339
        %v4530 = vpack.c.bf16 %v4342, %v4340
        %v4531 = vpack.c.bf16 %v4345, %v4343
        %v4532 = vpack.c.bf16 %v4346, %v4344
        %v4533 = vpack.c.bf16 %v4349, %v4347
        %v4534 = vpack.c.bf16 %v4350, %v4348
        %v4535 = vpack.c.bf16 %v4353, %v4351
        %v4536 = vpack.c.bf16 %v4354, %v4352
        %v4537 = vpack.c.bf16 %v4357, %v4355
        %v4538 = vpack.c.bf16 %v4358, %v4356
        %v4539 = vpack.c.bf16 %v4361, %v4359
        %v4540 = vpack.c.bf16 %v4362, %v4360
        %v4541 = vpack.c.bf16 %v4365, %v4363
        %v4542 = vpack.c.bf16 %v4366, %v4364
        %v4543 = vpack.c.bf16 %v4369, %v4367
        %v4544 = vpack.c.bf16 %v4370, %v4368
        %v4545 = vpack.c.bf16 %v4373, %v4371
        %v4546 = vpack.c.bf16 %v4374, %v4372
        %v4547 = vld [vmem:[%s4] sm:$0xff]
        %v4548 = vld [vmem:[%s4 + $0x8] sm:$0xff]
        %v4549 = vld [vmem:[%s4 + $0x10] sm:$0xff]
        %v4550 = vld [vmem:[%s4 + $0x18] sm:$0xf]
        %v4551 = vld [vmem:[%s4 + $0x1c] sm:$0xff]
        %v4552 = vld [vmem:[%s4 + $0x24] sm:$0xff]
        %v4553 = vld [vmem:[%s4 + $0x2c] sm:$0xff]
        %v4554 = vld [vmem:[%s4 + $0x34] sm:$0xf]
        %v4555 = vld [vmem:[%s4 + $0x38] sm:$0xff]
        %v4556 = vld [vmem:[%s4 + $0x40] sm:$0xff]
        %v4557 = vld [vmem:[%s4 + $0x48] sm:$0xff]
        %v4558 = vld [vmem:[%s4 + $0x50] sm:$0xf]
        %v4559 = vld [vmem:[%s4 + $0x54] sm:$0xff]
        %v4560 = vld [vmem:[%s4 + $0x5c] sm:$0xff]
        %v4561 = vld [vmem:[%s4 + $0x64] sm:$0xff]
        %v4562 = vld [vmem:[%s4 + $0x6c] sm:$0xf]
        %v4563 = vld [vmem:[%s4 + $0x70] sm:$0xff]
        %v4564 = vld [vmem:[%s4 + $0x78] sm:$0xff]
        %v4565 = vld [vmem:[%s4 + $0x80] sm:$0xff]
        %v4566 = vld [vmem:[%s4 + $0x88] sm:$0xf]
        %v4567 = vld [vmem:[%s4 + $0x8c] sm:$0xff]
        %v4568 = vld [vmem:[%s4 + $0x94] sm:$0xff]
        %v4569 = vld [vmem:[%s4 + $0x9c] sm:$0xff]
        %v4570 = vld [vmem:[%s4 + $0xa4] sm:$0xf]
        %v4571 = vld [vmem:[%s4 + $0xa8] sm:$0xff]
        %v4572 = vld [vmem:[%s4 + $0xb0] sm:$0xff]
        %v4573 = vld [vmem:[%s4 + $0xb8] sm:$0xff]
        %v4574 = vld [vmem:[%s4 + $0xc0] sm:$0xf]
        %v4575 = vld [vmem:[%s4 + $0xc4] sm:$0xff]
        %v4576 = vld [vmem:[%s4 + $0xcc] sm:$0xff]
        %v4577 = vld [vmem:[%s4 + $0xd4] sm:$0xff]
        %v4578 = vld [vmem:[%s4 + $0xdc] sm:$0xf]
        %v4579 = vld [vmem:[%s5] sm:$0xff]
        %v4580 = vld [vmem:[%s5 + $0x8] sm:$0xff]
        %v4581 = vld [vmem:[%s5 + $0x10] sm:$0xff]
        %v4582 = vld [vmem:[%s5 + $0x18] sm:$0xff]
        %v4583 = vld [vmem:[%s5 + $0x20] sm:$0xff]
        %v4584 = vld [vmem:[%s5 + $0x28] sm:$0xff]
        %v4585 = vld [vmem:[%s5 + $0x30] sm:$0xff]
        %v4586 = vld [vmem:[%s5 + $0x38] sm:$0xff]
        %4588 = vset.pattern.permute.xlu0 0
        %4589 = vperm.xlu0 %4588, %v4579
        %v4590 = vpop.permute.xlu0 %4589
        %4593 = vset.pattern.permute.xlu0 0
        %4594 = vperm.xlu0 %4593, %v4580
        %v4595 = vpop.permute.xlu0 %4594
        %4598 = vset.pattern.permute.xlu0 0
        %4599 = vperm.xlu0 %4598, %v4581
        %v4600 = vpop.permute.xlu0 %4599
        %4603 = vset.pattern.permute.xlu0 0
        %4604 = vperm.xlu0 %4603, %v4582
        %v4605 = vpop.permute.xlu0 %4604
        %4608 = vset.pattern.permute.xlu0 0
        %4609 = vperm.xlu0 %4608, %v4583
        %v4610 = vpop.permute.xlu0 %4609
        %4613 = vset.pattern.permute.xlu0 0
        %4614 = vperm.xlu0 %4613, %v4584
        %v4615 = vpop.permute.xlu0 %4614
        %4618 = vset.pattern.permute.xlu0 0
        %4619 = vperm.xlu0 %4618, %v4585
        %v4620 = vpop.permute.xlu0 %4619
        %4623 = vset.pattern.permute.xlu0 0
        %4624 = vperm.xlu0 %4623, %v4586
        %v4625 = vpop.permute.xlu0 %4624
        %v4659 = vunpack.c.l.b16 %v4547
        %v4660 = vunpack.c.h.b16 %v4547
        %v4661 = vunpack.c.l.b16 %v4548
        %v4662 = vunpack.c.h.b16 %v4548
        %v4663 = vunpack.c.l.b16 %v4549
        %v4664 = vunpack.c.h.b16 %v4549
        %v4665 = vunpack.c.l.b16 %v4550
        %v4666 = vunpack.c.l.b16 %v4551
        %v4667 = vunpack.c.h.b16 %v4551
        %v4668 = vunpack.c.l.b16 %v4552
        %v4669 = vunpack.c.h.b16 %v4552
        %v4670 = vunpack.c.l.b16 %v4553
        %v4671 = vunpack.c.h.b16 %v4553
        %v4672 = vunpack.c.l.b16 %v4554
        %v4673 = vunpack.c.l.b16 %v4555
        %v4674 = vunpack.c.h.b16 %v4555
        %v4675 = vunpack.c.l.b16 %v4556
        %v4676 = vunpack.c.h.b16 %v4556
        %v4677 = vunpack.c.l.b16 %v4557
        %v4678 = vunpack.c.h.b16 %v4557
        %v4679 = vunpack.c.l.b16 %v4558
        %v4680 = vunpack.c.l.b16 %v4559
        %v4681 = vunpack.c.h.b16 %v4559
        %v4682 = vunpack.c.l.b16 %v4560
        %v4683 = vunpack.c.h.b16 %v4560
        %v4684 = vunpack.c.l.b16 %v4561
        %v4685 = vunpack.c.h.b16 %v4561
        %v4686 = vunpack.c.l.b16 %v4562
        %v4687 = vunpack.c.l.b16 %v4563
        %v4688 = vunpack.c.h.b16 %v4563
        %v4689 = vunpack.c.l.b16 %v4564
        %v4690 = vunpack.c.h.b16 %v4564
        %v4691 = vunpack.c.l.b16 %v4565
        %v4692 = vunpack.c.h.b16 %v4565
        %v4693 = vunpack.c.l.b16 %v4566
        %v4694 = vunpack.c.l.b16 %v4567
        %v4695 = vunpack.c.h.b16 %v4567
        %v4696 = vunpack.c.l.b16 %v4568
        %v4697 = vunpack.c.h.b16 %v4568
        %v4698 = vunpack.c.l.b16 %v4569
        %v4699 = vunpack.c.h.b16 %v4569
        %v4700 = vunpack.c.l.b16 %v4570
        %v4701 = vunpack.c.l.b16 %v4571
        %v4702 = vunpack.c.h.b16 %v4571
        %v4703 = vunpack.c.l.b16 %v4572
        %v4704 = vunpack.c.h.b16 %v4572
        %v4705 = vunpack.c.l.b16 %v4573
        %v4706 = vunpack.c.h.b16 %v4573
        %v4707 = vunpack.c.l.b16 %v4574
        %v4708 = vunpack.c.l.b16 %v4575
        %v4709 = vunpack.c.h.b16 %v4575
        %v4710 = vunpack.c.l.b16 %v4576
        %v4711 = vunpack.c.h.b16 %v4576
        %v4712 = vunpack.c.l.b16 %v4577
        %v4713 = vunpack.c.h.b16 %v4577
        %v4714 = vunpack.c.l.b16 %v4578
        %v4715 = vpack.c.b16 %v4666, %v4659
        %v4716 = vpack.c.b16 %v4667, %v4660
        %v4717 = vpack.c.b16 %v4668, %v4661
        %v4718 = vpack.c.b16 %v4669, %v4662
        %v4719 = vpack.c.b16 %v4670, %v4663
        %v4720 = vpack.c.b16 %v4671, %v4664
        %v4721 = vpack.c.b16 %v4672, %v4665
        %v4722 = vpack.c.b16 %v4680, %v4673
        %v4723 = vpack.c.b16 %v4681, %v4674
        %v4724 = vpack.c.b16 %v4682, %v4675
        %v4725 = vpack.c.b16 %v4683, %v4676
        %v4726 = vpack.c.b16 %v4684, %v4677
        %v4727 = vpack.c.b16 %v4685, %v4678
        %v4728 = vpack.c.b16 %v4686, %v4679
        %v4729 = vpack.c.b16 %v4694, %v4687
        %v4730 = vpack.c.b16 %v4695, %v4688
        %v4731 = vpack.c.b16 %v4696, %v4689
        %v4732 = vpack.c.b16 %v4697, %v4690
        %v4733 = vpack.c.b16 %v4698, %v4691
        %v4734 = vpack.c.b16 %v4699, %v4692
        %v4735 = vpack.c.b16 %v4700, %v4693
        %v4736 = vpack.c.b16 %v4708, %v4701
        %v4737 = vpack.c.b16 %v4709, %v4702
        %v4738 = vpack.c.b16 %v4710, %v4703
        %v4739 = vpack.c.b16 %v4711, %v4704
        %v4740 = vpack.c.b16 %v4712, %v4705
        %v4741 = vpack.c.b16 %v4713, %v4706
        %v4742 = vpack.c.b16 %v4714, %v4707
        %v4768 = vsel %vm826, %v4721, 0
        %v4771 = vsel %vm826, %v4728, 0
        %v4774 = vsel %vm826, %v4735, 0
        %v4777 = vsel %vm826, %v4742, 0
        %4779 = vmatprep.subr.bf16.mxu0 %v4448
        %4780 = vmatpush1.bf16.msra.mxu0 %v4447
        %4781 = vmatprep.subr.bf16.mxu0 %v4450
        %4782 = vmatpush1.bf16.msra.mxu0 %v4449
        %4783 = vmatprep.subr.bf16.mxu0 %v4452
        %4784 = vmatpush1.bf16.msra.mxu0 %v4451
        %4785 = vmatprep.subr.bf16.mxu0 %v4454
        %4786 = vmatpush1.bf16.msra.mxu0 %v4453
        %4787 = vmatprep.subr.bf16.mxu0 %v4456
        %4788 = vmatpush1.bf16.msra.mxu0 %v4455
        %4789 = vmatprep.subr.bf16.mxu0 %v4458
        %4790 = vmatpush1.bf16.msra.mxu0 %v4457
        %4791 = vmatprep.subr.bf16.mxu0 %v4460
        %4792 = vmatpush1.bf16.msra.mxu0 %v4459
        %4793 = vmatprep.subr.bf16.mxu0 %v4462
        %4794 = vmatpush1.bf16.msra.mxu0 %v4461
        %4795 = vmatprep.subr.bf16.mxu0 %v4464
        %4796 = vmatpush1.bf16.msra.mxu0 %v4463
        %4797 = vmatprep.subr.bf16.mxu0 %v4466
        %4798 = vmatpush1.bf16.msra.mxu0 %v4465
        %4799 = vmatprep.subr.bf16.mxu0 %v4468
        %4800 = vmatpush1.bf16.msra.mxu0 %v4467
        %4801 = vmatprep.subr.bf16.mxu0 %v4470
        %4802 = vmatpush1.bf16.msra.mxu0 %v4469
        %4803 = vmatprep.subr.bf16.mxu0 %v4472
        %4804 = vmatpush1.bf16.msra.mxu0 %v4471
        %4805 = vmatprep.subr.bf16.mxu0 %v4474
        %4806 = vmatpush1.bf16.msra.mxu0 %v4473
        %4807 = vmatprep.subr.bf16.mxu0 %v4476
        %4808 = vmatpush1.bf16.msra.mxu0 %v4475
        %4809 = vmatprep.subr.bf16.mxu0 %v4478
        %4810 = vmatpush1.bf16.msra.mxu0 %v4477
        %4811 = vmatprep.mubr.bf16.mxu0 %v4716
        %4812 = vmatmul.mubr.bf16.gmra.mrb[0].mxu0 %v4715
        %v4813 = vpop.f32.mrb[0].mxu0
        %v4814 = vadd.f32 %v4590, %v4813
        %v4815 = vpop.f32.mrb[0].mxu0
        %v4816 = vadd.f32 %v4590, %v4815
        %v4817 = vpop.f32.mrb[0].mxu0
        %v4818 = vadd.f32 %v4595, %v4817
        %v4819 = vpop.f32.mrb[0].mxu0
        %v4820 = vadd.f32 %v4595, %v4819
        %4821 = vmatprep.mubr.bf16.mxu0 %v4723
        %4822 = vmatmul.mubr.bf16.gmra.mrb[0].mxu0 %v4722
        %v4823 = vpop.f32.mrb[0].mxu0
        %v4824 = vadd.f32 %v4600, %v4823
        %v4825 = vpop.f32.mrb[0].mxu0
        %v4826 = vadd.f32 %v4600, %v4825
        %v4827 = vpop.f32.mrb[0].mxu0
        %v4828 = vadd.f32 %v4605, %v4827
        %v4829 = vpop.f32.mrb[0].mxu0
        %v4830 = vadd.f32 %v4605, %v4829
        %4831 = vmatprep.mubr.bf16.mxu0 %v4730
        %4832 = vmatmul.mubr.bf16.gmra.mrb[0].mxu0 %v4729
        %v4833 = vpop.f32.mrb[0].mxu0
        %v4834 = vadd.f32 %v4610, %v4833
        %v4835 = vpop.f32.mrb[0].mxu0
        %v4836 = vadd.f32 %v4610, %v4835
        %v4837 = vpop.f32.mrb[0].mxu0
        %v4838 = vadd.f32 %v4615, %v4837
        %v4839 = vpop.f32.mrb[0].mxu0
        %v4840 = vadd.f32 %v4615, %v4839
        %4841 = vmatprep.mubr.bf16.mxu0 %v4737
        %4842 = vmatmul.mubr.bf16.gmra.mrb[0].mxu0 %v4736
        %v4843 = vpop.f32.mrb[0].mxu0
        %v4844 = vadd.f32 %v4620, %v4843
        %v4845 = vpop.f32.mrb[0].mxu0
        %v4846 = vadd.f32 %v4620, %v4845
        %v4847 = vpop.f32.mrb[0].mxu0
        %v4848 = vadd.f32 %v4625, %v4847
        %v4849 = vpop.f32.mrb[0].mxu0
        %v4850 = vadd.f32 %v4625, %v4849
        %4851 = vdwg.mxu0
        %4852 = vmatprep.subr.bf16.mxu0 %v4480
        %4853 = vmatpush1.bf16.msra.mxu0 %v4479
        %4854 = vmatprep.subr.bf16.mxu0 %v4482
        %4855 = vmatpush1.bf16.msra.mxu0 %v4481
        %4856 = vmatprep.subr.bf16.mxu0 %v4484
        %4857 = vmatpush1.bf16.msra.mxu0 %v4483
        %4858 = vmatprep.subr.bf16.mxu0 %v4486
        %4859 = vmatpush1.bf16.msra.mxu0 %v4485
        %4860 = vmatprep.subr.bf16.mxu0 %v4488
        %4861 = vmatpush1.bf16.msra.mxu0 %v4487
        %4862 = vmatprep.subr.bf16.mxu0 %v4490
        %4863 = vmatpush1.bf16.msra.mxu0 %v4489
        %4864 = vmatprep.subr.bf16.mxu0 %v4492
        %4865 = vmatpush1.bf16.msra.mxu0 %v4491
        %4866 = vmatprep.subr.bf16.mxu0 %v4494
        %4867 = vmatpush1.bf16.msra.mxu0 %v4493
        %4868 = vmatprep.subr.bf16.mxu0 %v4496
        %4869 = vmatpush1.bf16.msra.mxu0 %v4495
        %4870 = vmatprep.subr.bf16.mxu0 %v4498
        %4871 = vmatpush1.bf16.msra.mxu0 %v4497
        %4872 = vmatprep.subr.bf16.mxu0 %v4500
        %4873 = vmatpush1.bf16.msra.mxu0 %v4499
        %4874 = vmatprep.subr.bf16.mxu0 %v4502
        %4875 = vmatpush1.bf16.msra.mxu0 %v4501
        %4876 = vmatprep.subr.bf16.mxu0 %v4504
        %4877 = vmatpush1.bf16.msra.mxu0 %v4503
        %4878 = vmatprep.subr.bf16.mxu0 %v4506
        %4879 = vmatpush1.bf16.msra.mxu0 %v4505
        %4880 = vmatprep.subr.bf16.mxu0 %v4508
        %4881 = vmatpush1.bf16.msra.mxu0 %v4507
        %4882 = vmatprep.subr.bf16.mxu0 %v4510
        %4883 = vmatpush1.bf16.msra.mxu0 %v4509
        %4884 = vmatprep.mubr.bf16.mxu0 %v4718
        %4885 = vmatmul.mubr.bf16.gmra.mrb[0].mxu0 %v4717
        %v4886 = vpop.f32.mrb[0].mxu0
        %v4887 = vadd.f32 %v4814, %v4886
        %v4888 = vpop.f32.mrb[0].mxu0
        %v4889 = vadd.f32 %v4816, %v4888
        %v4890 = vpop.f32.mrb[0].mxu0
        %v4891 = vadd.f32 %v4818, %v4890
        %v4892 = vpop.f32.mrb[0].mxu0
        %v4893 = vadd.f32 %v4820, %v4892
        %4894 = vmatprep.mubr.bf16.mxu0 %v4725
        %4895 = vmatmul.mubr.bf16.gmra.mrb[0].mxu0 %v4724
        %v4896 = vpop.f32.mrb[0].mxu0
        %v4897 = vadd.f32 %v4824, %v4896
        %v4898 = vpop.f32.mrb[0].mxu0
        %v4899 = vadd.f32 %v4826, %v4898
        %v4900 = vpop.f32.mrb[0].mxu0
        %v4901 = vadd.f32 %v4828, %v4900
        %v4902 = vpop.f32.mrb[0].mxu0
        %v4903 = vadd.f32 %v4830, %v4902
        %4904 = vmatprep.mubr.bf16.mxu0 %v4732
        %4905 = vmatmul.mubr.bf16.gmra.mrb[0].mxu0 %v4731
        %v4906 = vpop.f32.mrb[0].mxu0
        %v4907 = vadd.f32 %v4834, %v4906
        %v4908 = vpop.f32.mrb[0].mxu0
        %v4909 = vadd.f32 %v4836, %v4908
        %v4910 = vpop.f32.mrb[0].mxu0
        %v4911 = vadd.f32 %v4838, %v4910
        %v4912 = vpop.f32.mrb[0].mxu0
        %v4913 = vadd.f32 %v4840, %v4912
        %4914 = vmatprep.mubr.bf16.mxu0 %v4739
        %4915 = vmatmul.mubr.bf16.gmra.mrb[0].mxu0 %v4738
        %v4916 = vpop.f32.mrb[0].mxu0
        %v4917 = vadd.f32 %v4844, %v4916
        %v4918 = vpop.f32.mrb[0].mxu0
        %v4919 = vadd.f32 %v4846, %v4918
        %v4920 = vpop.f32.mrb[0].mxu0
        %v4921 = vadd.f32 %v4848, %v4920
        %v4922 = vpop.f32.mrb[0].mxu0
        %v4923 = vadd.f32 %v4850, %v4922
        %4924 = vdwg.mxu0
        %4925 = vmatprep.subr.bf16.mxu0 %v4512
        %4926 = vmatpush1.bf16.msra.mxu0 %v4511
        %4927 = vmatprep.subr.bf16.mxu0 %v4514
        %4928 = vmatpush1.bf16.msra.mxu0 %v4513
        %4929 = vmatprep.subr.bf16.mxu0 %v4516
        %4930 = vmatpush1.bf16.msra.mxu0 %v4515
        %4931 = vmatprep.subr.bf16.mxu0 %v4518
        %4932 = vmatpush1.bf16.msra.mxu0 %v4517
        %4933 = vmatprep.subr.bf16.mxu0 %v4520
        %4934 = vmatpush1.bf16.msra.mxu0 %v4519
        %4935 = vmatprep.subr.bf16.mxu0 %v4522
        %4936 = vmatpush1.bf16.msra.mxu0 %v4521
        %4937 = vmatprep.subr.bf16.mxu0 %v4524
        %4938 = vmatpush1.bf16.msra.mxu0 %v4523
        %4939 = vmatprep.subr.bf16.mxu0 %v4526
        %4940 = vmatpush1.bf16.msra.mxu0 %v4525
        %4941 = vmatprep.subr.bf16.mxu0 %v4528
        %4942 = vmatpush1.bf16.msra.mxu0 %v4527
        %4943 = vmatprep.subr.bf16.mxu0 %v4530
        %4944 = vmatpush1.bf16.msra.mxu0 %v4529
        %4945 = vmatprep.subr.bf16.mxu0 %v4532
        %4946 = vmatpush1.bf16.msra.mxu0 %v4531
        %4947 = vmatprep.subr.bf16.mxu0 %v4534
        %4948 = vmatpush1.bf16.msra.mxu0 %v4533
        %4949 = vmatprep.subr.bf16.mxu0 %v4536
        %4950 = vmatpush1.bf16.msra.mxu0 %v4535
        %4951 = vmatprep.subr.bf16.mxu0 %v4538
        %4952 = vmatpush1.bf16.msra.mxu0 %v4537
        %4953 = vmatprep.subr.bf16.mxu0 %v4540
        %4954 = vmatpush1.bf16.msra.mxu0 %v4539
        %4955 = vmatprep.subr.bf16.mxu0 %v4542
        %4956 = vmatpush1.bf16.msra.mxu0 %v4541
        %4957 = vmatprep.mubr.bf16.mxu0 %v4720
        %4958 = vmatmul.mubr.bf16.gmra.mrb[0].mxu0 %v4719
        %v4959 = vpop.f32.mrb[0].mxu0
        %v4960 = vadd.f32 %v4887, %v4959
        %v4961 = vpop.f32.mrb[0].mxu0
        %v4962 = vadd.f32 %v4889, %v4961
        %v4963 = vpop.f32.mrb[0].mxu0
        %v4964 = vadd.f32 %v4891, %v4963
        %v4965 = vpop.f32.mrb[0].mxu0
        %v4966 = vadd.f32 %v4893, %v4965
        %4967 = vmatprep.mubr.bf16.mxu0 %v4727
        %4968 = vmatmul.mubr.bf16.gmra.mrb[0].mxu0 %v4726
        %v4969 = vpop.f32.mrb[0].mxu0
        %v4970 = vadd.f32 %v4897, %v4969
        %v4971 = vpop.f32.mrb[0].mxu0
        %v4972 = vadd.f32 %v4899, %v4971
        %v4973 = vpop.f32.mrb[0].mxu0
        %v4974 = vadd.f32 %v4901, %v4973
        %v4975 = vpop.f32.mrb[0].mxu0
        %v4976 = vadd.f32 %v4903, %v4975
        %4977 = vmatprep.mubr.bf16.mxu0 %v4734
        %4978 = vmatmul.mubr.bf16.gmra.mrb[0].mxu0 %v4733
        %v4979 = vpop.f32.mrb[0].mxu0
        %v4980 = vadd.f32 %v4907, %v4979
        %v4981 = vpop.f32.mrb[0].mxu0
        %v4982 = vadd.f32 %v4909, %v4981
        %v4983 = vpop.f32.mrb[0].mxu0
        %v4984 = vadd.f32 %v4911, %v4983
        %v4985 = vpop.f32.mrb[0].mxu0
        %v4986 = vadd.f32 %v4913, %v4985
        %4987 = vmatprep.mubr.bf16.mxu0 %v4741
        %4988 = vmatmul.mubr.bf16.gmra.mrb[0].mxu0 %v4740
        %v4989 = vpop.f32.mrb[0].mxu0
        %v4990 = vadd.f32 %v4917, %v4989
        %v4991 = vpop.f32.mrb[0].mxu0
        %v4992 = vadd.f32 %v4919, %v4991
        %v4993 = vpop.f32.mrb[0].mxu0
        %v4994 = vadd.f32 %v4921, %v4993
        %v4995 = vpop.f32.mrb[0].mxu0
        %v4996 = vadd.f32 %v4923, %v4995
        %4997 = vdwg.mxu0
        %4998 = vmatprep.subr.bf16.mxu0 %v4544
        %4999 = vmatpush1.bf16.msra.mxu0 %v4543
        %5000 = vmatprep.subr.bf16.mxu0 %v4546
        %5001 = vmatpush1.bf16.msra.mxu0 %v4545
        %5002 = vmatprep.subr.bf16.mxu0 0
        %5003 = vmatpush1.bf16.msra.mxu0 0
        %5004 = vmatprep.subr.bf16.mxu0 0
        %5005 = vmatpush1.bf16.msra.mxu0 0
        %5006 = vmatprep.subr.bf16.mxu0 0
        %5007 = vmatpush1.bf16.msra.mxu0 0
        %5008 = vmatprep.subr.bf16.mxu0 0
        %5009 = vmatpush1.bf16.msra.mxu0 0
        %5010 = vmatprep.subr.bf16.mxu0 0
        %5011 = vmatpush1.bf16.msra.mxu0 0
        %5012 = vmatprep.subr.bf16.mxu0 0
        %5013 = vmatpush1.bf16.msra.mxu0 0
        %5014 = vmatprep.subr.bf16.mxu0 0
        %5015 = vmatpush1.bf16.msra.mxu0 0
        %5016 = vmatprep.subr.bf16.mxu0 0
        %5017 = vmatpush1.bf16.msra.mxu0 0
        %5018 = vmatprep.subr.bf16.mxu0 0
        %5019 = vmatpush1.bf16.msra.mxu0 0
        %5020 = vmatprep.subr.bf16.mxu0 0
        %5021 = vmatpush1.bf16.msra.mxu0 0
        %5022 = vmatprep.subr.bf16.mxu0 0
        %5023 = vmatpush1.bf16.msra.mxu0 0
        %5024 = vmatprep.subr.bf16.mxu0 0
        %5025 = vmatpush1.bf16.msra.mxu0 0
        %5026 = vmatprep.subr.bf16.mxu0 0
        %5027 = vmatpush1.bf16.msra.mxu0 0
        %5028 = vmatprep.subr.bf16.mxu0 0
        %5029 = vmatpush1.bf16.msra.mxu0 0
        %5030 = vmatprep.mubr.bf16.mxu0 0
        %5031 = vmatmul.mubr.bf16.gmra.mrb[0].mxu0 %v4768
        %v5032 = vpop.f32.mrb[0].mxu0
        %v5033 = vadd.f32 %v4960, %v5032
        %v5034 = vpop.f32.mrb[0].mxu0
        %v5035 = vadd.f32 %v4962, %v5034
        %v5036 = vpop.f32.mrb[0].mxu0
        %v5037 = vadd.f32 %v4964, %v5036
        %v5038 = vpop.f32.mrb[0].mxu0
        %v5039 = vadd.f32 %v4966, %v5038
        %5040 = vmatprep.mubr.bf16.mxu0 0
        %5041 = vmatmul.mubr.bf16.gmra.mrb[0].mxu0 %v4771
        %v5042 = vpop.f32.mrb[0].mxu0
        %v5043 = vadd.f32 %v4970, %v5042
        %v5044 = vpop.f32.mrb[0].mxu0
        %v5045 = vadd.f32 %v4972, %v5044
        %v5046 = vpop.f32.mrb[0].mxu0
        %v5047 = vadd.f32 %v4974, %v5046
        %v5048 = vpop.f32.mrb[0].mxu0
        %v5049 = vadd.f32 %v4976, %v5048
        %5050 = vmatprep.mubr.bf16.mxu0 0
        %5051 = vmatmul.mubr.bf16.gmra.mrb[0].mxu0 %v4774
        %v5052 = vpop.f32.mrb[0].mxu0
        %v5053 = vadd.f32 %v4980, %v5052
        %v5054 = vpop.f32.mrb[0].mxu0
        %v5055 = vadd.f32 %v4982, %v5054
        %v5056 = vpop.f32.mrb[0].mxu0
        %v5057 = vadd.f32 %v4984, %v5056
        %v5058 = vpop.f32.mrb[0].mxu0
        %v5059 = vadd.f32 %v4986, %v5058
        %5060 = vmatprep.mubr.bf16.mxu0 0
        %5061 = vmatmul.mubr.bf16.gmra.mrb[0].mxu0 %v4777
        %v5062 = vpop.f32.mrb[0].mxu0
        %v5063 = vadd.f32 %v4990, %v5062
        %v5064 = vpop.f32.mrb[0].mxu0
        %v5065 = vadd.f32 %v4992, %v5064
        %v5066 = vpop.f32.mrb[0].mxu0
        %v5067 = vadd.f32 %v4994, %v5066
        %v5068 = vpop.f32.mrb[0].mxu0
        %v5069 = vadd.f32 %v4996, %v5068
        %5070 = vdwg.mxu0
        %v5071 = vmax.f32 %v5033, 0.0
        %v5072 = vmax.f32 %v5035, 0.0
        %v5073 = vmax.f32 %v5037, 0.0
        %v5074 = vmax.f32 %v5039, 0.0
        %v5075 = vmax.f32 %v5043, 0.0
        %v5076 = vmax.f32 %v5045, 0.0
        %v5077 = vmax.f32 %v5047, 0.0
        %v5078 = vmax.f32 %v5049, 0.0
        %v5079 = vmax.f32 %v5053, 0.0
        %v5080 = vmax.f32 %v5055, 0.0
        %v5081 = vmax.f32 %v5057, 0.0
        %v5082 = vmax.f32 %v5059, 0.0
        %v5083 = vmax.f32 %v5063, 0.0
        %v5084 = vmax.f32 %v5065, 0.0
        %v5085 = vmax.f32 %v5067, 0.0
        %v5086 = vmax.f32 %v5069, 0.0
        %5087 = vrot.lane.b32.xlu0 %v5071, 127
        %v5088 = vpop.permute.xlu0 %5087
        %5089 = vrot.lane.b32.xlu0 %v5073, 127
        %v5090 = vpop.permute.xlu0 %5089
        %5091 = vrot.lane.b32.xlu0 %v5075, 127
        %v5092 = vpop.permute.xlu0 %5091
        %5093 = vrot.lane.b32.xlu0 %v5077, 127
        %v5094 = vpop.permute.xlu0 %5093
        %5095 = vrot.lane.b32.xlu0 %v5079, 127
        %v5096 = vpop.permute.xlu0 %5095
        %5097 = vrot.lane.b32.xlu0 %v5081, 127
        %v5098 = vpop.permute.xlu0 %5097
        %5099 = vrot.lane.b32.xlu0 %v5083, 127
        %v5100 = vpop.permute.xlu0 %5099
        %5101 = vrot.lane.b32.xlu0 %v5085, 127
        %v5102 = vpop.permute.xlu0 %5101
        %5103 = vrot.lane.b32.xlu0 %v5072, 127
        %v5104 = vpop.permute.xlu0 %5103
        %5105 = vrot.lane.b32.xlu0 %v5074, 127
        %v5106 = vpop.permute.xlu0 %5105
        %5107 = vrot.lane.b32.xlu0 %v5076, 127
        %v5108 = vpop.permute.xlu0 %5107
        %5109 = vrot.lane.b32.xlu0 %v5078, 127
        %v5110 = vpop.permute.xlu0 %5109
        %5111 = vrot.lane.b32.xlu0 %v5080, 127
        %v5112 = vpop.permute.xlu0 %5111
        %5113 = vrot.lane.b32.xlu0 %v5082, 127
        %v5114 = vpop.permute.xlu0 %5113
        %5115 = vrot.lane.b32.xlu0 %v5084, 127
        %v5116 = vpop.permute.xlu0 %5115
        %5117 = vrot.lane.b32.xlu0 %v5086, 127
        %v5118 = vpop.permute.xlu0 %5117
        %v5119 = vsel %vm1606, %v5088, %v5104
        %v5120 = vsel %vm1606, %v5090, %v5106
        %v5121 = vsel %vm1606, %v5092, %v5108
        %v5122 = vsel %vm1606, %v5094, %v5110
        %v5123 = vsel %vm1606, %v5096, %v5112
        %v5124 = vsel %vm1606, %v5098, %v5114
        %v5125 = vsel %vm1606, %v5100, %v5116
        %v5126 = vsel %vm1606, %v5102, %v5118
        %v5127 = vsel %vm1606, %v5104, %v5088
        %v5128 = vsel %vm1606, %v5106, %v5090
        %v5129 = vsel %vm1606, %v5108, %v5092
        %v5130 = vsel %vm1606, %v5110, %v5094
        %v5131 = vsel %vm1606, %v5112, %v5096
        %v5132 = vsel %vm1606, %v5114, %v5098
        %v5133 = vsel %vm1606, %v5116, %v5100
        %v5134 = vsel %vm1606, %v5118, %v5102
        %v5135 = vmax.f32 %v5071, %v5119
        %v5136 = vmax.f32 %v5072, %v5127
        %v5137 = vmax.f32 %v5073, %v5120
        %v5138 = vmax.f32 %v5074, %v5128
        %v5139 = vmax.f32 %v5075, %v5121
        %v5140 = vmax.f32 %v5076, %v5129
        %v5141 = vmax.f32 %v5077, %v5122
        %v5142 = vmax.f32 %v5078, %v5130
        %v5143 = vmax.f32 %v5079, %v5123
        %v5144 = vmax.f32 %v5080, %v5131
        %v5145 = vmax.f32 %v5081, %v5124
        %v5146 = vmax.f32 %v5082, %v5132
        %v5147 = vmax.f32 %v5083, %v5125
        %v5148 = vmax.f32 %v5084, %v5133
        %v5149 = vmax.f32 %v5085, %v5126
        %v5150 = vmax.f32 %v5086, %v5134
        %5151 = vrot.lane.b32.xlu0 %v5071, 110
        %v5152 = vpop.permute.xlu0 %5151
        %5153 = vrot.lane.b32.xlu0 %v5073, 110
        %v5154 = vpop.permute.xlu0 %5153
        %5155 = vrot.lane.b32.xlu0 %v5075, 110
        %v5156 = vpop.permute.xlu0 %5155
        %5157 = vrot.lane.b32.xlu0 %v5077, 110
        %v5158 = vpop.permute.xlu0 %5157
        %5159 = vrot.lane.b32.xlu0 %v5079, 110
        %v5160 = vpop.permute.xlu0 %5159
        %5161 = vrot.lane.b32.xlu0 %v5081, 110
        %v5162 = vpop.permute.xlu0 %5161
        %5163 = vrot.lane.b32.xlu0 %v5083, 110
        %v5164 = vpop.permute.xlu0 %5163
        %5165 = vrot.lane.b32.xlu0 %v5085, 110
        %v5166 = vpop.permute.xlu0 %5165
        %5167 = vrot.lane.b32.xlu0 %v5072, 110
        %v5168 = vpop.permute.xlu0 %5167
        %5169 = vrot.lane.b32.xlu0 %v5074, 110
        %v5170 = vpop.permute.xlu0 %5169
        %5171 = vrot.lane.b32.xlu0 %v5076, 110
        %v5172 = vpop.permute.xlu0 %5171
        %5173 = vrot.lane.b32.xlu0 %v5078, 110
        %v5174 = vpop.permute.xlu0 %5173
        %5175 = vrot.lane.b32.xlu0 %v5080, 110
        %v5176 = vpop.permute.xlu0 %5175
        %5177 = vrot.lane.b32.xlu0 %v5082, 110
        %v5178 = vpop.permute.xlu0 %5177
        %5179 = vrot.lane.b32.xlu0 %v5084, 110
        %v5180 = vpop.permute.xlu0 %5179
        %5181 = vrot.lane.b32.xlu0 %v5086, 110
        %v5182 = vpop.permute.xlu0 %5181
        %vm5183 = vcmp.lt.s32.totalorder %v1605, 110
        %v5184 = vsel %vm5183, %v5152, %v5168
        %v5185 = vsel %vm5183, %v5154, %v5170
        %v5186 = vsel %vm5183, %v5156, %v5172
        %v5187 = vsel %vm5183, %v5158, %v5174
        %v5188 = vsel %vm5183, %v5160, %v5176
        %v5189 = vsel %vm5183, %v5162, %v5178
        %v5190 = vsel %vm5183, %v5164, %v5180
        %v5191 = vsel %vm5183, %v5166, %v5182
        %v5192 = vsel %vm5183, %v5168, %v5152
        %v5193 = vsel %vm5183, %v5170, %v5154
        %v5194 = vsel %vm5183, %v5172, %v5156
        %v5195 = vsel %vm5183, %v5174, %v5158
        %v5196 = vsel %vm5183, %v5176, %v5160
        %v5197 = vsel %vm5183, %v5178, %v5162
        %v5198 = vsel %vm5183, %v5180, %v5164
        %v5199 = vsel %vm5183, %v5182, %v5166
        %5200 = vrot.lane.b32.xlu0 %v5071, 109
        %v5201 = vpop.permute.xlu0 %5200
        %5202 = vrot.lane.b32.xlu0 %v5073, 109
        %v5203 = vpop.permute.xlu0 %5202
        %5204 = vrot.lane.b32.xlu0 %v5075, 109
        %v5205 = vpop.permute.xlu0 %5204
        %5206 = vrot.lane.b32.xlu0 %v5077, 109
        %v5207 = vpop.permute.xlu0 %5206
        %5208 = vrot.lane.b32.xlu0 %v5079, 109
        %v5209 = vpop.permute.xlu0 %5208
        %5210 = vrot.lane.b32.xlu0 %v5081, 109
        %v5211 = vpop.permute.xlu0 %5210
        %5212 = vrot.lane.b32.xlu0 %v5083, 109
        %v5213 = vpop.permute.xlu0 %5212
        %5214 = vrot.lane.b32.xlu0 %v5085, 109
        %v5215 = vpop.permute.xlu0 %5214
        %5216 = vrot.lane.b32.xlu0 %v5072, 109
        %v5217 = vpop.permute.xlu0 %5216
        %5218 = vrot.lane.b32.xlu0 %v5074, 109
        %v5219 = vpop.permute.xlu0 %5218
        %5220 = vrot.lane.b32.xlu0 %v5076, 109
        %v5221 = vpop.permute.xlu0 %5220
        %5222 = vrot.lane.b32.xlu0 %v5078, 109
        %v5223 = vpop.permute.xlu0 %5222
        %5224 = vrot.lane.b32.xlu0 %v5080, 109
        %v5225 = vpop.permute.xlu0 %5224
        %5226 = vrot.lane.b32.xlu0 %v5082, 109
        %v5227 = vpop.permute.xlu0 %5226
        %5228 = vrot.lane.b32.xlu0 %v5084, 109
        %v5229 = vpop.permute.xlu0 %5228
        %5230 = vrot.lane.b32.xlu0 %v5086, 109
        %v5231 = vpop.permute.xlu0 %5230
        %vm5232 = vcmp.lt.s32.totalorder %v1605, 109
        %v5233 = vsel %vm5232, %v5201, %v5217
        %v5234 = vsel %vm5232, %v5203, %v5219
        %v5235 = vsel %vm5232, %v5205, %v5221
        %v5236 = vsel %vm5232, %v5207, %v5223
        %v5237 = vsel %vm5232, %v5209, %v5225
        %v5238 = vsel %vm5232, %v5211, %v5227
        %v5239 = vsel %vm5232, %v5213, %v5229
        %v5240 = vsel %vm5232, %v5215, %v5231
        %v5241 = vsel %vm5232, %v5217, %v5201
        %v5242 = vsel %vm5232, %v5219, %v5203
        %v5243 = vsel %vm5232, %v5221, %v5205
        %v5244 = vsel %vm5232, %v5223, %v5207
        %v5245 = vsel %vm5232, %v5225, %v5209
        %v5246 = vsel %vm5232, %v5227, %v5211
        %v5247 = vsel %vm5232, %v5229, %v5213
        %v5248 = vsel %vm5232, %v5231, %v5215
        %v5249 = vmax.f32 %v5184, %v5233
        %v5250 = vmax.f32 %v5192, %v5241
        %v5251 = vmax.f32 %v5185, %v5234
        %v5252 = vmax.f32 %v5193, %v5242
        %v5253 = vmax.f32 %v5186, %v5235
        %v5254 = vmax.f32 %v5194, %v5243
        %v5255 = vmax.f32 %v5187, %v5236
        %v5256 = vmax.f32 %v5195, %v5244
        %v5257 = vmax.f32 %v5188, %v5237
        %v5258 = vmax.f32 %v5196, %v5245
        %v5259 = vmax.f32 %v5189, %v5238
        %v5260 = vmax.f32 %v5197, %v5246
        %v5261 = vmax.f32 %v5190, %v5239
        %v5262 = vmax.f32 %v5198, %v5247
        %v5263 = vmax.f32 %v5191, %v5240
        %v5264 = vmax.f32 %v5199, %v5248
        %v5265 = vmax.f32 %v5135, %v5249
        %v5266 = vmax.f32 %v5136, %v5250
        %v5267 = vmax.f32 %v5137, %v5251
        %v5268 = vmax.f32 %v5138, %v5252
        %v5269 = vmax.f32 %v5139, %v5253
        %v5270 = vmax.f32 %v5140, %v5254
        %v5271 = vmax.f32 %v5141, %v5255
        %v5272 = vmax.f32 %v5142, %v5256
        %v5273 = vmax.f32 %v5143, %v5257
        %v5274 = vmax.f32 %v5144, %v5258
        %v5275 = vmax.f32 %v5145, %v5259
        %v5276 = vmax.f32 %v5146, %v5260
        %v5277 = vmax.f32 %v5147, %v5261
        %v5278 = vmax.f32 %v5148, %v5262
        %v5279 = vmax.f32 %v5149, %v5263
        %v5280 = vmax.f32 %v5150, %v5264
        %v5281 = vpack.c.bf16 %v5265, %v5265
        %v5282 = vpack.c.bf16 %v5266, %v5266
        %v5283 = vpack.c.bf16 %v5267, %v5267
        %v5284 = vpack.c.bf16 %v5268, %v5268
        %v5285 = vpack.c.bf16 %v5269, %v5269
        %v5286 = vpack.c.bf16 %v5270, %v5270
        %v5287 = vpack.c.bf16 %v5271, %v5271
        %v5288 = vpack.c.bf16 %v5272, %v5272
        %v5289 = vpack.c.bf16 %v5273, %v5273
        %v5290 = vpack.c.bf16 %v5274, %v5274
        %v5291 = vpack.c.bf16 %v5275, %v5275
        %v5292 = vpack.c.bf16 %v5276, %v5276
        %v5293 = vpack.c.bf16 %v5277, %v5277
        %v5294 = vpack.c.bf16 %v5278, %v5278
        %v5295 = vpack.c.bf16 %v5279, %v5279
        %v5296 = vpack.c.bf16 %v5280, %v5280
        %v5297 = vld [vmem:[%s6] sm:$0xf]
        %v5298 = vld [vmem:[%s6 + $0x4] sm:$0xf]
        %v5299 = vld [vmem:[%s6 + $0x8] sm:$0xf]
        %v5300 = vld [vmem:[%s6 + $0xc] sm:$0xf]
        %v5301 = vld [vmem:[%s6 + $0x10] sm:$0xf]
        %v5302 = vld [vmem:[%s6 + $0x14] sm:$0xf]
        %v5303 = vld [vmem:[%s6 + $0x18] sm:$0xf]
        %v5304 = vld [vmem:[%s6 + $0x1c] sm:$0xf]
        %v5305 = vld [vmem:[%s6 + $0x20] sm:$0xf]
        %v5306 = vld [vmem:[%s6 + $0x24] sm:$0xf]
        %v5307 = vld [vmem:[%s6 + $0x28] sm:$0xf]
        %v5308 = vld [vmem:[%s6 + $0x2c] sm:$0xf]
        %v5309 = vld [vmem:[%s6 + $0x30] sm:$0xf]
        %v5310 = vld [vmem:[%s6 + $0x34] sm:$0xf]
        %v5311 = vld [vmem:[%s6 + $0x38] sm:$0xf]
        %v5312 = vld [vmem:[%s6 + $0x3c] sm:$0xf]
        %v5313 = vld [vmem:[%s6 + $0x40] sm:$0xf]
        %v5314 = vld [vmem:[%s6 + $0x44] sm:$0xf]
        %v5315 = vld [vmem:[%s6 + $0x48] sm:$0xf]
        %v5316 = vld [vmem:[%s6 + $0x4c] sm:$0xf]
        %v5317 = vld [vmem:[%s6 + $0x50] sm:$0xf]
        %v5318 = vld [vmem:[%s6 + $0x54] sm:$0xf]
        %v5319 = vld [vmem:[%s6 + $0x58] sm:$0xf]
        %v5320 = vld [vmem:[%s6 + $0x5c] sm:$0xf]
        %v5321 = vld [vmem:[%s6 + $0x60] sm:$0xf]
        %v5322 = vld [vmem:[%s6 + $0x64] sm:$0xf]
        %v5323 = vld [vmem:[%s6 + $0x68] sm:$0xf]
        %v5324 = vld [vmem:[%s6 + $0x6c] sm:$0xf]
        %v5325 = vld [vmem:[%s6 + $0x70] sm:$0xf]
        %v5326 = vld [vmem:[%s6 + $0x74] sm:$0xf]
        %v5327 = vld [vmem:[%s6 + $0x78] sm:$0xf]
        %v5328 = vld [vmem:[%s6 + $0x7c] sm:$0xf]
        %v5329 = vld [vmem:[%s6 + $0x80] sm:$0xf]
        %v5330 = vld [vmem:[%s6 + $0x84] sm:$0xf]
        %v5331 = vld [vmem:[%s6 + $0x88] sm:$0xf]
        %v5332 = vld [vmem:[%s6 + $0x8c] sm:$0xf]
        %v5333 = vld [vmem:[%s6 + $0x90] sm:$0xf]
        %v5334 = vld [vmem:[%s6 + $0x94] sm:$0xf]
        %v5335 = vld [vmem:[%s6 + $0x98] sm:$0xf]
        %v5336 = vld [vmem:[%s6 + $0x9c] sm:$0xf]
        %v5337 = vld [vmem:[%s6 + $0xa0] sm:$0xf]
        %v5338 = vld [vmem:[%s6 + $0xa4] sm:$0xf]
        %v5339 = vld [vmem:[%s6 + $0xa8] sm:$0xf]
        %v5340 = vld [vmem:[%s6 + $0xac] sm:$0xf]
        %v5341 = vld [vmem:[%s6 + $0xb0] sm:$0xf]
        %v5342 = vld [vmem:[%s6 + $0xb4] sm:$0xf]
        %v5343 = vld [vmem:[%s6 + $0xb8] sm:$0xf]
        %v5344 = vld [vmem:[%s6 + $0xbc] sm:$0xf]
        %v5345 = vld [vmem:[%s6 + $0xc0] sm:$0xf]
        %v5346 = vld [vmem:[%s6 + $0xc4] sm:$0xf]
        %v5347 = vld [vmem:[%s6 + $0xc8] sm:$0xf]
        %v5348 = vld [vmem:[%s6 + $0xcc] sm:$0xf]
        %v5349 = vld [vmem:[%s6 + $0xd0] sm:$0xf]
        %v5350 = vld [vmem:[%s6 + $0xd4] sm:$0xf]
        %v5351 = vld [vmem:[%s6 + $0xd8] sm:$0xf]
        %v5352 = vld [vmem:[%s6 + $0xdc] sm:$0xf]
        %v5353 = vld [vmem:[%s6 + $0xe0] sm:$0xf]
        %v5354 = vld [vmem:[%s6 + $0xe4] sm:$0xf]
        %v5355 = vld [vmem:[%s6 + $0xe8] sm:$0xf]
        %v5356 = vld [vmem:[%s6 + $0xec] sm:$0xf]
        %v5357 = vld [vmem:[%s6 + $0xf0] sm:$0xf]
        %v5358 = vld [vmem:[%s6 + $0xf4] sm:$0xf]
        %v5359 = vld [vmem:[%s6 + $0xf8] sm:$0xf]
        %v5360 = vld [vmem:[%s6 + $0xfc] sm:$0xf]
        %v5361 = vld [vmem:[%s6 + $0x100] sm:$0xf]
        %v5362 = vld [vmem:[%s6 + $0x104] sm:$0xf]
        %v5363 = vld [vmem:[%s6 + $0x108] sm:$0xf]
        %v5364 = vld [vmem:[%s6 + $0x10c] sm:$0xf]
        %v5365 = vld [vmem:[%s6 + $0x110] sm:$0xf]
        %v5366 = vld [vmem:[%s6 + $0x114] sm:$0xf]
        %v5367 = vld [vmem:[%s6 + $0x118] sm:$0xf]
        %v5368 = vld [vmem:[%s6 + $0x11c] sm:$0xf]
        %v5369 = vld [vmem:[%s6 + $0x120] sm:$0xf]
        %v5370 = vld [vmem:[%s6 + $0x124] sm:$0xf]
        %v5371 = vld [vmem:[%s6 + $0x128] sm:$0xf]
        %v5372 = vld [vmem:[%s6 + $0x12c] sm:$0xf]
        %v5373 = vld [vmem:[%s6 + $0x130] sm:$0xf]
        %v5374 = vld [vmem:[%s6 + $0x134] sm:$0xf]
        %v5375 = vld [vmem:[%s6 + $0x138] sm:$0xf]
        %v5376 = vld [vmem:[%s6 + $0x13c] sm:$0xf]
        %v5377 = vld [vmem:[%s6 + $0x140] sm:$0xf]
        %v5378 = vld [vmem:[%s6 + $0x144] sm:$0xf]
        %v5379 = vld [vmem:[%s6 + $0x148] sm:$0xf]
        %v5380 = vld [vmem:[%s6 + $0x14c] sm:$0xf]
        %v5381 = vld [vmem:[%s6 + $0x150] sm:$0xf]
        %v5382 = vld [vmem:[%s6 + $0x154] sm:$0xf]
        %v5383 = vld [vmem:[%s6 + $0x158] sm:$0xf]
        %v5384 = vld [vmem:[%s6 + $0x15c] sm:$0xf]
        %v5385 = vld [vmem:[%s6 + $0x160] sm:$0xf]
        %v5386 = vld [vmem:[%s6 + $0x164] sm:$0xf]
        %v5387 = vld [vmem:[%s6 + $0x168] sm:$0xf]
        %v5388 = vld [vmem:[%s6 + $0x16c] sm:$0xf]
        %v5389 = vld [vmem:[%s6 + $0x170] sm:$0xf]
        %v5390 = vld [vmem:[%s6 + $0x174] sm:$0xf]
        %v5391 = vld [vmem:[%s6 + $0x178] sm:$0xf]
        %v5392 = vld [vmem:[%s6 + $0x17c] sm:$0xf]
        %v5393 = vld [vmem:[%s6 + $0x180] sm:$0xf]
        %v5394 = vld [vmem:[%s6 + $0x184] sm:$0xf]
        %v5395 = vld [vmem:[%s6 + $0x188] sm:$0xf]
        %v5396 = vld [vmem:[%s6 + $0x18c] sm:$0xf]
        %v5397 = vld [vmem:[%s6 + $0x190] sm:$0xf]
        %v5398 = vld [vmem:[%s6 + $0x194] sm:$0xf]
        %v5399 = vld [vmem:[%s6 + $0x198] sm:$0xf]
        %v5400 = vld [vmem:[%s6 + $0x19c] sm:$0xf]
        %v5401 = vld [vmem:[%s6 + $0x1a0] sm:$0xf]
        %v5402 = vld [vmem:[%s6 + $0x1a4] sm:$0xf]
        %v5403 = vld [vmem:[%s6 + $0x1a8] sm:$0xf]
        %v5404 = vld [vmem:[%s6 + $0x1ac] sm:$0xf]
        %v5405 = vld [vmem:[%s6 + $0x1b0] sm:$0xf]
        %v5406 = vld [vmem:[%s6 + $0x1b4] sm:$0xf]
        %v5407 = vld [vmem:[%s6 + $0x1b8] sm:$0xf]
        %v5408 = vld [vmem:[%s6 + $0x1bc] sm:$0xf]
        %v5409 = vld [vmem:[%s6 + $0x1c0] sm:$0xf]
        %v5410 = vld [vmem:[%s6 + $0x1c4] sm:$0xf]
        %v5411 = vld [vmem:[%s6 + $0x1c8] sm:$0xf]
        %v5412 = vld [vmem:[%s6 + $0x1cc] sm:$0xf]
        %v5413 = vld [vmem:[%s6 + $0x1d0] sm:$0xf]
        %v5414 = vld [vmem:[%s6 + $0x1d4] sm:$0xf]
        %v5415 = vld [vmem:[%s6 + $0x1d8] sm:$0xf]
        %v5416 = vld [vmem:[%s6 + $0x1dc] sm:$0xf]
        %v5417 = vld [vmem:[%s6 + $0x1e0] sm:$0xf]
        %v5418 = vld [vmem:[%s6 + $0x1e4] sm:$0xf]
        %v5419 = vld [vmem:[%s6 + $0x1e8] sm:$0xf]
        %v5420 = vld [vmem:[%s6 + $0x1ec] sm:$0xf]
        %v5421 = vld [vmem:[%s6 + $0x1f0] sm:$0xf]
        %v5422 = vld [vmem:[%s6 + $0x1f4] sm:$0xf]
        %v5423 = vld [vmem:[%s6 + $0x1f8] sm:$0xf]
        %v5424 = vld [vmem:[%s6 + $0x1fc] sm:$0xf]
        %v5425 = vld [vmem:[%s6 + $0x200] sm:$0xf]
        %v5426 = vld [vmem:[%s6 + $0x204] sm:$0xf]
        %v5427 = vld [vmem:[%s6 + $0x208] sm:$0xf]
        %v5428 = vld [vmem:[%s6 + $0x20c] sm:$0xf]
        %v5429 = vld [vmem:[%s6 + $0x210] sm:$0xf]
        %v5430 = vld [vmem:[%s6 + $0x214] sm:$0xf]
        %v5431 = vld [vmem:[%s6 + $0x218] sm:$0xf]
        %v5432 = vld [vmem:[%s6 + $0x21c] sm:$0xf]
        %v5433 = vld [vmem:[%s6 + $0x220] sm:$0xf]
        %v5434 = vld [vmem:[%s6 + $0x224] sm:$0xf]
        %v5435 = vld [vmem:[%s6 + $0x228] sm:$0xf]
        %v5436 = vld [vmem:[%s6 + $0x22c] sm:$0xf]
        %v5437 = vld [vmem:[%s6 + $0x230] sm:$0xf]
        %v5438 = vld [vmem:[%s6 + $0x234] sm:$0xf]
        %v5439 = vld [vmem:[%s6 + $0x238] sm:$0xf]
        %v5440 = vld [vmem:[%s6 + $0x23c] sm:$0xf]
        %v5441 = vld [vmem:[%s6 + $0x240] sm:$0xf]
        %v5442 = vld [vmem:[%s6 + $0x244] sm:$0xf]
        %v5443 = vld [vmem:[%s6 + $0x248] sm:$0xf]
        %v5444 = vld [vmem:[%s6 + $0x24c] sm:$0xf]
        %v5445 = vld [vmem:[%s6 + $0x250] sm:$0xf]
        %v5446 = vld [vmem:[%s6 + $0x254] sm:$0xf]
        %v5447 = vld [vmem:[%s6 + $0x258] sm:$0xf]
        %v5448 = vld [vmem:[%s6 + $0x25c] sm:$0xf]
        %v5449 = vld [vmem:[%s6 + $0x260] sm:$0xf]
        %v5450 = vld [vmem:[%s6 + $0x264] sm:$0xf]
        %v5451 = vld [vmem:[%s6 + $0x268] sm:$0xf]
        %v5452 = vld [vmem:[%s6 + $0x26c] sm:$0xf]
        %v5453 = vld [vmem:[%s6 + $0x270] sm:$0xf]
        %v5454 = vld [vmem:[%s6 + $0x274] sm:$0xf]
        %v5455 = vld [vmem:[%s6 + $0x278] sm:$0xf]
        %v5456 = vld [vmem:[%s6 + $0x27c] sm:$0xf]
        %v5457 = vld [vmem:[%s6 + $0x280] sm:$0xf]
        %v5458 = vld [vmem:[%s6 + $0x284] sm:$0xf]
        %v5459 = vld [vmem:[%s6 + $0x288] sm:$0xf]
        %v5460 = vld [vmem:[%s6 + $0x28c] sm:$0xf]
        %v5461 = vld [vmem:[%s6 + $0x290] sm:$0xf]
        %v5462 = vld [vmem:[%s6 + $0x294] sm:$0xf]
        %v5463 = vld [vmem:[%s6 + $0x298] sm:$0xf]
        %v5464 = vld [vmem:[%s6 + $0x29c] sm:$0xf]
        %v5465 = vld [vmem:[%s6 + $0x2a0] sm:$0xf]
        %v5466 = vld [vmem:[%s6 + $0x2a4] sm:$0xf]
        %v5467 = vld [vmem:[%s6 + $0x2a8] sm:$0xf]
        %v5468 = vld [vmem:[%s6 + $0x2ac] sm:$0xf]
        %v5469 = vld [vmem:[%s6 + $0x2b0] sm:$0xf]
        %v5470 = vld [vmem:[%s6 + $0x2b4] sm:$0xf]
        %v5471 = vld [vmem:[%s6 + $0x2b8] sm:$0xf]
        %v5472 = vld [vmem:[%s6 + $0x2bc] sm:$0xf]
        %v5473 = vld [vmem:[%s6 + $0x2c0] sm:$0xf]
        %v5474 = vld [vmem:[%s6 + $0x2c4] sm:$0xf]
        %v5475 = vld [vmem:[%s6 + $0x2c8] sm:$0xf]
        %v5476 = vld [vmem:[%s6 + $0x2cc] sm:$0xf]
        %v5477 = vld [vmem:[%s6 + $0x2d0] sm:$0xf]
        %v5478 = vld [vmem:[%s6 + $0x2d4] sm:$0xf]
        %v5479 = vld [vmem:[%s6 + $0x2d8] sm:$0xf]
        %v5480 = vld [vmem:[%s6 + $0x2dc] sm:$0xf]
        %v5481 = vld [vmem:[%s6 + $0x2e0] sm:$0xf]
        %v5482 = vld [vmem:[%s6 + $0x2e4] sm:$0xf]
        %v5483 = vld [vmem:[%s6 + $0x2e8] sm:$0xf]
        %v5484 = vld [vmem:[%s6 + $0x2ec] sm:$0xf]
        %v5485 = vld [vmem:[%s6 + $0x2f0] sm:$0xf]
        %v5486 = vld [vmem:[%s6 + $0x2f4] sm:$0xf]
        %v5487 = vld [vmem:[%s6 + $0x2f8] sm:$0xf]
        %v5488 = vld [vmem:[%s6 + $0x2fc] sm:$0xf]
        %v5489 = vld [vmem:[%s6 + $0x300] sm:$0xf]
        %v5490 = vld [vmem:[%s6 + $0x304] sm:$0xf]
        %v5491 = vld [vmem:[%s6 + $0x308] sm:$0xf]
        %v5492 = vld [vmem:[%s6 + $0x30c] sm:$0xf]
        %v5493 = vld [vmem:[%s6 + $0x310] sm:$0xf]
        %v5494 = vld [vmem:[%s6 + $0x314] sm:$0xf]
        %v5495 = vld [vmem:[%s6 + $0x318] sm:$0xf]
        %v5496 = vld [vmem:[%s6 + $0x31c] sm:$0xf]
        %v5497 = vld [vmem:[%s6 + $0x320] sm:$0xf]
        %v5498 = vld [vmem:[%s6 + $0x324] sm:$0xf]
        %v5499 = vld [vmem:[%s6 + $0x328] sm:$0xf]
        %v5500 = vld [vmem:[%s6 + $0x32c] sm:$0xf]
        %v5501 = vld [vmem:[%s6 + $0x330] sm:$0xf]
        %v5502 = vld [vmem:[%s6 + $0x334] sm:$0xf]
        %v5503 = vld [vmem:[%s6 + $0x338] sm:$0xf]
        %v5504 = vld [vmem:[%s6 + $0x33c] sm:$0xf]
        %v5505 = vld [vmem:[%s6 + $0x340] sm:$0xf]
        %v5506 = vld [vmem:[%s6 + $0x344] sm:$0xf]
        %v5507 = vld [vmem:[%s6 + $0x348] sm:$0xf]
        %v5508 = vld [vmem:[%s6 + $0x34c] sm:$0xf]
        %v5509 = vld [vmem:[%s6 + $0x350] sm:$0xf]
        %v5510 = vld [vmem:[%s6 + $0x354] sm:$0xf]
        %v5511 = vld [vmem:[%s6 + $0x358] sm:$0xf]
        %v5512 = vld [vmem:[%s6 + $0x35c] sm:$0xf]
        %v5513 = vld [vmem:[%s6 + $0x360] sm:$0xf]
        %v5514 = vld [vmem:[%s6 + $0x364] sm:$0xf]
        %v5515 = vld [vmem:[%s6 + $0x368] sm:$0xf]
        %v5516 = vld [vmem:[%s6 + $0x36c] sm:$0xf]
        %v5517 = vld [vmem:[%s6 + $0x370] sm:$0xf]
        %v5518 = vld [vmem:[%s6 + $0x374] sm:$0xf]
        %v5519 = vld [vmem:[%s6 + $0x378] sm:$0xf]
        %v5520 = vld [vmem:[%s6 + $0x37c] sm:$0xf]
        %v5521 = vld [vmem:[%s6 + $0x380] sm:$0xf]
        %v5522 = vld [vmem:[%s6 + $0x384] sm:$0xf]
        %v5523 = vld [vmem:[%s6 + $0x388] sm:$0xf]
        %v5524 = vld [vmem:[%s6 + $0x38c] sm:$0xf]
        %v5525 = vld [vmem:[%s6 + $0x390] sm:$0xf]
        %v5526 = vld [vmem:[%s6 + $0x394] sm:$0xf]
        %v5527 = vld [vmem:[%s6 + $0x398] sm:$0xf]
        %v5528 = vld [vmem:[%s6 + $0x39c] sm:$0xf]
        %v5529 = vld [vmem:[%s6 + $0x3a0] sm:$0xf]
        %v5530 = vld [vmem:[%s6 + $0x3a4] sm:$0xf]
        %v5531 = vld [vmem:[%s6 + $0x3a8] sm:$0xf]
        %v5532 = vld [vmem:[%s6 + $0x3ac] sm:$0xf]
        %v5533 = vld [vmem:[%s6 + $0x3b0] sm:$0xf]
        %v5534 = vld [vmem:[%s6 + $0x3b4] sm:$0xf]
        %v5535 = vld [vmem:[%s6 + $0x3b8] sm:$0xf]
        %v5536 = vld [vmem:[%s6 + $0x3bc] sm:$0xf]
        %v5537 = vld [vmem:[%s6 + $0x3c0] sm:$0xf]
        %v5538 = vld [vmem:[%s6 + $0x3c4] sm:$0xf]
        %v5539 = vld [vmem:[%s6 + $0x3c8] sm:$0xf]
        %v5540 = vld [vmem:[%s6 + $0x3cc] sm:$0xf]
        %v5541 = vld [vmem:[%s6 + $0x3d0] sm:$0xf]
        %v5542 = vld [vmem:[%s6 + $0x3d4] sm:$0xf]
        %v5543 = vld [vmem:[%s6 + $0x3d8] sm:$0xf]
        %v5544 = vld [vmem:[%s6 + $0x3dc] sm:$0xf]
        %v5545 = vld [vmem:[%s6 + $0x3e0] sm:$0xf]
        %v5546 = vld [vmem:[%s6 + $0x3e4] sm:$0xf]
        %v5547 = vld [vmem:[%s6 + $0x3e8] sm:$0xf]
        %v5548 = vld [vmem:[%s6 + $0x3ec] sm:$0xf]
        %v5549 = vld [vmem:[%s6 + $0x3f0] sm:$0xf]
        %v5550 = vld [vmem:[%s6 + $0x3f4] sm:$0xf]
        %v5551 = vld [vmem:[%s6 + $0x3f8] sm:$0xf]
        %v5552 = vld [vmem:[%s6 + $0x3fc] sm:$0xf]
        %v5553 = vld [vmem:[%s7] sm:$0x1]
        %v5555 = vlaneseq
        %v5556 = vshrl.u32 %v5555, 7
        %v5557 = vsub.s32 0, %v5556
        %v5558 = vrot.slane %v5553, %v5557
        %v5816 = vunpack.c.l.b16 %v5297
        %v5817 = vunpack.c.l.b16 %v5298
        %v5818 = vunpack.c.l.b16 %v5299
        %v5819 = vunpack.c.l.b16 %v5300
        %v5820 = vunpack.c.l.b16 %v5301
        %v5821 = vunpack.c.l.b16 %v5302
        %v5822 = vunpack.c.l.b16 %v5303
        %v5823 = vunpack.c.l.b16 %v5304
        %v5824 = vunpack.c.l.b16 %v5305
        %v5825 = vunpack.c.l.b16 %v5306
        %v5826 = vunpack.c.l.b16 %v5307
        %v5827 = vunpack.c.l.b16 %v5308
        %v5828 = vunpack.c.l.b16 %v5309
        %v5829 = vunpack.c.l.b16 %v5310
        %v5830 = vunpack.c.l.b16 %v5311
        %v5831 = vunpack.c.l.b16 %v5312
        %v5832 = vunpack.c.l.b16 %v5313
        %v5833 = vunpack.c.l.b16 %v5314
        %v5834 = vunpack.c.l.b16 %v5315
        %v5835 = vunpack.c.l.b16 %v5316
        %v5836 = vunpack.c.l.b16 %v5317
        %v5837 = vunpack.c.l.b16 %v5318
        %v5838 = vunpack.c.l.b16 %v5319
        %v5839 = vunpack.c.l.b16 %v5320
        %v5840 = vunpack.c.l.b16 %v5321
        %v5841 = vunpack.c.l.b16 %v5322
        %v5842 = vunpack.c.l.b16 %v5323
        %v5843 = vunpack.c.l.b16 %v5324
        %v5844 = vunpack.c.l.b16 %v5325
        %v5845 = vunpack.c.l.b16 %v5326
        %v5846 = vunpack.c.l.b16 %v5327
        %v5847 = vunpack.c.l.b16 %v5328
        %v5848 = vunpack.c.l.b16 %v5329
        %v5849 = vunpack.c.l.b16 %v5330
        %v5850 = vunpack.c.l.b16 %v5331
        %v5851 = vunpack.c.l.b16 %v5332
        %v5852 = vunpack.c.l.b16 %v5333
        %v5853 = vunpack.c.l.b16 %v5334
        %v5854 = vunpack.c.l.b16 %v5335
        %v5855 = vunpack.c.l.b16 %v5336
        %v5856 = vunpack.c.l.b16 %v5337
        %v5857 = vunpack.c.l.b16 %v5338
        %v5858 = vunpack.c.l.b16 %v5339
        %v5859 = vunpack.c.l.b16 %v5340
        %v5860 = vunpack.c.l.b16 %v5341
        %v5861 = vunpack.c.l.b16 %v5342
        %v5862 = vunpack.c.l.b16 %v5343
        %v5863 = vunpack.c.l.b16 %v5344
        %v5864 = vunpack.c.l.b16 %v5345
        %v5865 = vunpack.c.l.b16 %v5346
        %v5866 = vunpack.c.l.b16 %v5347
        %v5867 = vunpack.c.l.b16 %v5348
        %v5868 = vunpack.c.l.b16 %v5349
        %v5869 = vunpack.c.l.b16 %v5350
        %v5870 = vunpack.c.l.b16 %v5351
        %v5871 = vunpack.c.l.b16 %v5352
        %v5872 = vunpack.c.l.b16 %v5353
        %v5873 = vunpack.c.l.b16 %v5354
        %v5874 = vunpack.c.l.b16 %v5355
        %v5875 = vunpack.c.l.b16 %v5356
        %v5876 = vunpack.c.l.b16 %v5357
        %v5877 = vunpack.c.l.b16 %v5358
        %v5878 = vunpack.c.l.b16 %v5359
        %v5879 = vunpack.c.l.b16 %v5360
        %v5880 = vunpack.c.l.b16 %v5361
        %v5881 = vunpack.c.l.b16 %v5362
        %v5882 = vunpack.c.l.b16 %v5363
        %v5883 = vunpack.c.l.b16 %v5364
        %v5884 = vunpack.c.l.b16 %v5365
        %v5885 = vunpack.c.l.b16 %v5366
        %v5886 = vunpack.c.l.b16 %v5367
        %v5887 = vunpack.c.l.b16 %v5368
        %v5888 = vunpack.c.l.b16 %v5369
        %v5889 = vunpack.c.l.b16 %v5370
        %v5890 = vunpack.c.l.b16 %v5371
        %v5891 = vunpack.c.l.b16 %v5372
        %v5892 = vunpack.c.l.b16 %v5373
        %v5893 = vunpack.c.l.b16 %v5374
        %v5894 = vunpack.c.l.b16 %v5375
        %v5895 = vunpack.c.l.b16 %v5376
        %v5896 = vunpack.c.l.b16 %v5377
        %v5897 = vunpack.c.l.b16 %v5378
        %v5898 = vunpack.c.l.b16 %v5379
        %v5899 = vunpack.c.l.b16 %v5380
        %v5900 = vunpack.c.l.b16 %v5381
        %v5901 = vunpack.c.l.b16 %v5382
        %v5902 = vunpack.c.l.b16 %v5383
        %v5903 = vunpack.c.l.b16 %v5384
        %v5904 = vunpack.c.l.b16 %v5385
        %v5905 = vunpack.c.l.b16 %v5386
        %v5906 = vunpack.c.l.b16 %v5387
        %v5907 = vunpack.c.l.b16 %v5388
        %v5908 = vunpack.c.l.b16 %v5389
        %v5909 = vunpack.c.l.b16 %v5390
        %v5910 = vunpack.c.l.b16 %v5391
        %v5911 = vunpack.c.l.b16 %v5392
        %v5912 = vunpack.c.l.b16 %v5393
        %v5913 = vunpack.c.l.b16 %v5394
        %v5914 = vunpack.c.l.b16 %v5395
        %v5915 = vunpack.c.l.b16 %v5396
        %v5916 = vunpack.c.l.b16 %v5397
        %v5917 = vunpack.c.l.b16 %v5398
        %v5918 = vunpack.c.l.b16 %v5399
        %v5919 = vunpack.c.l.b16 %v5400
        %v5920 = vunpack.c.l.b16 %v5401
        %v5921 = vunpack.c.l.b16 %v5402
        %v5922 = vunpack.c.l.b16 %v5403
        %v5923 = vunpack.c.l.b16 %v5404
        %v5924 = vunpack.c.l.b16 %v5405
        %v5925 = vunpack.c.l.b16 %v5406
        %v5926 = vunpack.c.l.b16 %v5407
        %v5927 = vunpack.c.l.b16 %v5408
        %v5928 = vunpack.c.l.b16 %v5409
        %v5929 = vunpack.c.l.b16 %v5410
        %v5930 = vunpack.c.l.b16 %v5411
        %v5931 = vunpack.c.l.b16 %v5412
        %v5932 = vunpack.c.l.b16 %v5413
        %v5933 = vunpack.c.l.b16 %v5414
        %v5934 = vunpack.c.l.b16 %v5415
        %v5935 = vunpack.c.l.b16 %v5416
        %v5936 = vunpack.c.l.b16 %v5417
        %v5937 = vunpack.c.l.b16 %v5418
        %v5938 = vunpack.c.l.b16 %v5419
        %v5939 = vunpack.c.l.b16 %v5420
        %v5940 = vunpack.c.l.b16 %v5421
        %v5941 = vunpack.c.l.b16 %v5422
        %v5942 = vunpack.c.l.b16 %v5423
        %v5943 = vunpack.c.l.b16 %v5424
        %v5944 = vunpack.c.l.b16 %v5425
        %v5945 = vunpack.c.l.b16 %v5426
        %v5946 = vunpack.c.l.b16 %v5427
        %v5947 = vunpack.c.l.b16 %v5428
        %v5948 = vunpack.c.l.b16 %v5429
        %v5949 = vunpack.c.l.b16 %v5430
        %v5950 = vunpack.c.l.b16 %v5431
        %v5951 = vunpack.c.l.b16 %v5432
        %v5952 = vunpack.c.l.b16 %v5433
        %v5953 = vunpack.c.l.b16 %v5434
        %v5954 = vunpack.c.l.b16 %v5435
        %v5955 = vunpack.c.l.b16 %v5436
        %v5956 = vunpack.c.l.b16 %v5437
        %v5957 = vunpack.c.l.b16 %v5438
        %v5958 = vunpack.c.l.b16 %v5439
        %v5959 = vunpack.c.l.b16 %v5440
        %v5960 = vunpack.c.l.b16 %v5441
        %v5961 = vunpack.c.l.b16 %v5442
        %v5962 = vunpack.c.l.b16 %v5443
        %v5963 = vunpack.c.l.b16 %v5444
        %v5964 = vunpack.c.l.b16 %v5445
        %v5965 = vunpack.c.l.b16 %v5446
        %v5966 = vunpack.c.l.b16 %v5447
        %v5967 = vunpack.c.l.b16 %v5448
        %v5968 = vunpack.c.l.b16 %v5449
        %v5969 = vunpack.c.l.b16 %v5450
        %v5970 = vunpack.c.l.b16 %v5451
        %v5971 = vunpack.c.l.b16 %v5452
        %v5972 = vunpack.c.l.b16 %v5453
        %v5973 = vunpack.c.l.b16 %v5454
        %v5974 = vunpack.c.l.b16 %v5455
        %v5975 = vunpack.c.l.b16 %v5456
        %v5976 = vunpack.c.l.b16 %v5457
        %v5977 = vunpack.c.l.b16 %v5458
        %v5978 = vunpack.c.l.b16 %v5459
        %v5979 = vunpack.c.l.b16 %v5460
        %v5980 = vunpack.c.l.b16 %v5461
        %v5981 = vunpack.c.l.b16 %v5462
        %v5982 = vunpack.c.l.b16 %v5463
        %v5983 = vunpack.c.l.b16 %v5464
        %v5984 = vunpack.c.l.b16 %v5465
        %v5985 = vunpack.c.l.b16 %v5466
        %v5986 = vunpack.c.l.b16 %v5467
        %v5987 = vunpack.c.l.b16 %v5468
        %v5988 = vunpack.c.l.b16 %v5469
        %v5989 = vunpack.c.l.b16 %v5470
        %v5990 = vunpack.c.l.b16 %v5471
        %v5991 = vunpack.c.l.b16 %v5472
        %v5992 = vunpack.c.l.b16 %v5473
        %v5993 = vunpack.c.l.b16 %v5474
        %v5994 = vunpack.c.l.b16 %v5475
        %v5995 = vunpack.c.l.b16 %v5476
        %v5996 = vunpack.c.l.b16 %v5477
        %v5997 = vunpack.c.l.b16 %v5478
        %v5998 = vunpack.c.l.b16 %v5479
        %v5999 = vunpack.c.l.b16 %v5480
        %v6000 = vunpack.c.l.b16 %v5481
        %v6001 = vunpack.c.l.b16 %v5482
        %v6002 = vunpack.c.l.b16 %v5483
        %v6003 = vunpack.c.l.b16 %v5484
        %v6004 = vunpack.c.l.b16 %v5485
        %v6005 = vunpack.c.l.b16 %v5486
        %v6006 = vunpack.c.l.b16 %v5487
        %v6007 = vunpack.c.l.b16 %v5488
        %v6008 = vunpack.c.l.b16 %v5489
        %v6009 = vunpack.c.l.b16 %v5490
        %v6010 = vunpack.c.l.b16 %v5491
        %v6011 = vunpack.c.l.b16 %v5492
        %v6012 = vunpack.c.l.b16 %v5493
        %v6013 = vunpack.c.l.b16 %v5494
        %v6014 = vunpack.c.l.b16 %v5495
        %v6015 = vunpack.c.l.b16 %v5496
        %v6016 = vunpack.c.l.b16 %v5497
        %v6017 = vunpack.c.l.b16 %v5498
        %v6018 = vunpack.c.l.b16 %v5499
        %v6019 = vunpack.c.l.b16 %v5500
        %v6020 = vunpack.c.l.b16 %v5501
        %v6021 = vunpack.c.l.b16 %v5502
        %v6022 = vunpack.c.l.b16 %v5503
        %v6023 = vunpack.c.l.b16 %v5504
        %v6024 = vunpack.c.l.b16 %v5505
        %v6025 = vunpack.c.l.b16 %v5506
        %v6026 = vunpack.c.l.b16 %v5507
        %v6027 = vunpack.c.l.b16 %v5508
        %v6028 = vunpack.c.l.b16 %v5509
        %v6029 = vunpack.c.l.b16 %v5510
        %v6030 = vunpack.c.l.b16 %v5511
        %v6031 = vunpack.c.l.b16 %v5512
        %v6032 = vunpack.c.l.b16 %v5513
        %v6033 = vunpack.c.l.b16 %v5514
        %v6034 = vunpack.c.l.b16 %v5515
        %v6035 = vunpack.c.l.b16 %v5516
        %v6036 = vunpack.c.l.b16 %v5517
        %v6037 = vunpack.c.l.b16 %v5518
        %v6038 = vunpack.c.l.b16 %v5519
        %v6039 = vunpack.c.l.b16 %v5520
        %v6040 = vunpack.c.l.b16 %v5521
        %v6041 = vunpack.c.l.b16 %v5522
        %v6042 = vunpack.c.l.b16 %v5523
        %v6043 = vunpack.c.l.b16 %v5524
        %v6044 = vunpack.c.l.b16 %v5525
        %v6045 = vunpack.c.l.b16 %v5526
        %v6046 = vunpack.c.l.b16 %v5527
        %v6047 = vunpack.c.l.b16 %v5528
        %v6048 = vunpack.c.l.b16 %v5529
        %v6049 = vunpack.c.l.b16 %v5530
        %v6050 = vunpack.c.l.b16 %v5531
        %v6051 = vunpack.c.l.b16 %v5532
        %v6052 = vunpack.c.l.b16 %v5533
        %v6053 = vunpack.c.l.b16 %v5534
        %v6054 = vunpack.c.l.b16 %v5535
        %v6055 = vunpack.c.l.b16 %v5536
        %v6056 = vunpack.c.l.b16 %v5537
        %v6057 = vunpack.c.l.b16 %v5538
        %v6058 = vunpack.c.l.b16 %v5539
        %v6059 = vunpack.c.l.b16 %v5540
        %v6060 = vunpack.c.l.b16 %v5541
        %v6061 = vunpack.c.l.b16 %v5542
        %v6062 = vunpack.c.l.b16 %v5543
        %v6063 = vunpack.c.l.b16 %v5544
        %v6064 = vunpack.c.l.b16 %v5545
        %v6065 = vunpack.c.l.b16 %v5546
        %v6066 = vunpack.c.l.b16 %v5547
        %v6067 = vunpack.c.l.b16 %v5548
        %v6068 = vunpack.c.l.b16 %v5549
        %v6069 = vunpack.c.l.b16 %v5550
        %v6070 = vunpack.c.l.b16 %v5551
        %v6071 = vunpack.c.l.b16 %v5552
        %v6072 = vpack.c.b16 %v5817, %v5816
        %v6073 = vpack.c.b16 %v5819, %v5818
        %v6074 = vpack.c.b16 %v5821, %v5820
        %v6075 = vpack.c.b16 %v5823, %v5822
        %v6076 = vpack.c.b16 %v5825, %v5824
        %v6077 = vpack.c.b16 %v5827, %v5826
        %v6078 = vpack.c.b16 %v5829, %v5828
        %v6079 = vpack.c.b16 %v5831, %v5830
        %v6080 = vpack.c.b16 %v5833, %v5832
        %v6081 = vpack.c.b16 %v5835, %v5834
        %v6082 = vpack.c.b16 %v5837, %v5836
        %v6083 = vpack.c.b16 %v5839, %v5838
        %v6084 = vpack.c.b16 %v5841, %v5840
        %v6085 = vpack.c.b16 %v5843, %v5842
        %v6086 = vpack.c.b16 %v5845, %v5844
        %v6087 = vpack.c.b16 %v5847, %v5846
        %v6088 = vpack.c.b16 %v5849, %v5848
        %v6089 = vpack.c.b16 %v5851, %v5850
        %v6090 = vpack.c.b16 %v5853, %v5852
        %v6091 = vpack.c.b16 %v5855, %v5854
        %v6092 = vpack.c.b16 %v5857, %v5856
        %v6093 = vpack.c.b16 %v5859, %v5858
        %v6094 = vpack.c.b16 %v5861, %v5860
        %v6095 = vpack.c.b16 %v5863, %v5862
        %v6096 = vpack.c.b16 %v5865, %v5864
        %v6097 = vpack.c.b16 %v5867, %v5866
        %v6098 = vpack.c.b16 %v5869, %v5868
        %v6099 = vpack.c.b16 %v5871, %v5870
        %v6100 = vpack.c.b16 %v5873, %v5872
        %v6101 = vpack.c.b16 %v5875, %v5874
        %v6102 = vpack.c.b16 %v5877, %v5876
        %v6103 = vpack.c.b16 %v5879, %v5878
        %v6104 = vpack.c.b16 %v5881, %v5880
        %v6105 = vpack.c.b16 %v5883, %v5882
        %v6106 = vpack.c.b16 %v5885, %v5884
        %v6107 = vpack.c.b16 %v5887, %v5886
        %v6108 = vpack.c.b16 %v5889, %v5888
        %v6109 = vpack.c.b16 %v5891, %v5890
        %v6110 = vpack.c.b16 %v5893, %v5892
        %v6111 = vpack.c.b16 %v5895, %v5894
        %v6112 = vpack.c.b16 %v5897, %v5896
        %v6113 = vpack.c.b16 %v5899, %v5898
        %v6114 = vpack.c.b16 %v5901, %v5900
        %v6115 = vpack.c.b16 %v5903, %v5902
        %v6116 = vpack.c.b16 %v5905, %v5904
        %v6117 = vpack.c.b16 %v5907, %v5906
        %v6118 = vpack.c.b16 %v5909, %v5908
        %v6119 = vpack.c.b16 %v5911, %v5910
        %v6120 = vpack.c.b16 %v5913, %v5912
        %v6121 = vpack.c.b16 %v5915, %v5914
        %v6122 = vpack.c.b16 %v5917, %v5916
        %v6123 = vpack.c.b16 %v5919, %v5918
        %v6124 = vpack.c.b16 %v5921, %v5920
        %v6125 = vpack.c.b16 %v5923, %v5922
        %v6126 = vpack.c.b16 %v5925, %v5924
        %v6127 = vpack.c.b16 %v5927, %v5926
        %v6128 = vpack.c.b16 %v5929, %v5928
        %v6129 = vpack.c.b16 %v5931, %v5930
        %v6130 = vpack.c.b16 %v5933, %v5932
        %v6131 = vpack.c.b16 %v5935, %v5934
        %v6132 = vpack.c.b16 %v5937, %v5936
        %v6133 = vpack.c.b16 %v5939, %v5938
        %v6134 = vpack.c.b16 %v5941, %v5940
        %v6135 = vpack.c.b16 %v5943, %v5942
        %v6136 = vpack.c.b16 %v5945, %v5944
        %v6137 = vpack.c.b16 %v5947, %v5946
        %v6138 = vpack.c.b16 %v5949, %v5948
        %v6139 = vpack.c.b16 %v5951, %v5950
        %v6140 = vpack.c.b16 %v5953, %v5952
        %v6141 = vpack.c.b16 %v5955, %v5954
        %v6142 = vpack.c.b16 %v5957, %v5956
        %v6143 = vpack.c.b16 %v5959, %v5958
        %v6144 = vpack.c.b16 %v5961, %v5960
        %v6145 = vpack.c.b16 %v5963, %v5962
        %v6146 = vpack.c.b16 %v5965, %v5964
        %v6147 = vpack.c.b16 %v5967, %v5966
        %v6148 = vpack.c.b16 %v5969, %v5968
        %v6149 = vpack.c.b16 %v5971, %v5970
        %v6150 = vpack.c.b16 %v5973, %v5972
        %v6151 = vpack.c.b16 %v5975, %v5974
        %v6152 = vpack.c.b16 %v5977, %v5976
        %v6153 = vpack.c.b16 %v5979, %v5978
        %v6154 = vpack.c.b16 %v5981, %v5980
        %v6155 = vpack.c.b16 %v5983, %v5982
        %v6156 = vpack.c.b16 %v5985, %v5984
        %v6157 = vpack.c.b16 %v5987, %v5986
        %v6158 = vpack.c.b16 %v5989, %v5988
        %v6159 = vpack.c.b16 %v5991, %v5990
        %v6160 = vpack.c.b16 %v5993, %v5992
        %v6161 = vpack.c.b16 %v5995, %v5994
        %v6162 = vpack.c.b16 %v5997, %v5996
        %v6163 = vpack.c.b16 %v5999, %v5998
        %v6164 = vpack.c.b16 %v6001, %v6000
        %v6165 = vpack.c.b16 %v6003, %v6002
        %v6166 = vpack.c.b16 %v6005, %v6004
        %v6167 = vpack.c.b16 %v6007, %v6006
        %v6168 = vpack.c.b16 %v6009, %v6008
        %v6169 = vpack.c.b16 %v6011, %v6010
        %v6170 = vpack.c.b16 %v6013, %v6012
        %v6171 = vpack.c.b16 %v6015, %v6014
        %v6172 = vpack.c.b16 %v6017, %v6016
        %v6173 = vpack.c.b16 %v6019, %v6018
        %v6174 = vpack.c.b16 %v6021, %v6020
        %v6175 = vpack.c.b16 %v6023, %v6022
        %v6176 = vpack.c.b16 %v6025, %v6024
        %v6177 = vpack.c.b16 %v6027, %v6026
        %v6178 = vpack.c.b16 %v6029, %v6028
        %v6179 = vpack.c.b16 %v6031, %v6030
        %v6180 = vpack.c.b16 %v6033, %v6032
        %v6181 = vpack.c.b16 %v6035, %v6034
        %v6182 = vpack.c.b16 %v6037, %v6036
        %v6183 = vpack.c.b16 %v6039, %v6038
        %v6184 = vpack.c.b16 %v6041, %v6040
        %v6185 = vpack.c.b16 %v6043, %v6042
        %v6186 = vpack.c.b16 %v6045, %v6044
        %v6187 = vpack.c.b16 %v6047, %v6046
        %v6188 = vpack.c.b16 %v6049, %v6048
        %v6189 = vpack.c.b16 %v6051, %v6050
        %v6190 = vpack.c.b16 %v6053, %v6052
        %v6191 = vpack.c.b16 %v6055, %v6054
        %v6192 = vpack.c.b16 %v6057, %v6056
        %v6193 = vpack.c.b16 %v6059, %v6058
        %v6194 = vpack.c.b16 %v6061, %v6060
        %v6195 = vpack.c.b16 %v6063, %v6062
        %v6196 = vpack.c.b16 %v6065, %v6064
        %v6197 = vpack.c.b16 %v6067, %v6066
        %v6198 = vpack.c.b16 %v6069, %v6068
        %v6199 = vpack.c.b16 %v6071, %v6070
        %6328 = vmatprep.subr.bf16.mxu0 0
        %6329 = vmatpush1.bf16.msra.mxu0 %v6072
        %6330 = vmatprep.subr.bf16.mxu0 0
        %6331 = vmatpush1.bf16.msra.mxu0 %v6073
        %6332 = vmatprep.subr.bf16.mxu0 0
        %6333 = vmatpush1.bf16.msra.mxu0 %v6074
        %6334 = vmatprep.subr.bf16.mxu0 0
        %6335 = vmatpush1.bf16.msra.mxu0 %v6075
        %6336 = vmatprep.subr.bf16.mxu0 0
        %6337 = vmatpush1.bf16.msra.mxu0 %v6076
        %6338 = vmatprep.subr.bf16.mxu0 0
        %6339 = vmatpush1.bf16.msra.mxu0 %v6077
        %6340 = vmatprep.subr.bf16.mxu0 0
        %6341 = vmatpush1.bf16.msra.mxu0 %v6078
        %6342 = vmatprep.subr.bf16.mxu0 0
        %6343 = vmatpush1.bf16.msra.mxu0 %v6079
        %6344 = vmatprep.subr.bf16.mxu0 0
        %6345 = vmatpush1.bf16.msra.mxu0 %v6080
        %6346 = vmatprep.subr.bf16.mxu0 0
        %6347 = vmatpush1.bf16.msra.mxu0 %v6081
        %6348 = vmatprep.subr.bf16.mxu0 0
        %6349 = vmatpush1.bf16.msra.mxu0 %v6082
        %6350 = vmatprep.subr.bf16.mxu0 0
        %6351 = vmatpush1.bf16.msra.mxu0 %v6083
        %6352 = vmatprep.subr.bf16.mxu0 0
        %6353 = vmatpush1.bf16.msra.mxu0 %v6084
        %6354 = vmatprep.subr.bf16.mxu0 0
        %6355 = vmatpush1.bf16.msra.mxu0 %v6085
        %6356 = vmatprep.subr.bf16.mxu0 0
        %6357 = vmatpush1.bf16.msra.mxu0 %v6086
        %6358 = vmatprep.subr.bf16.mxu0 0
        %6359 = vmatpush1.bf16.msra.mxu0 %v6087
        %6360 = vmatprep.mubr.bf16.mxu0 %v5282
        %6361 = vmatmul.mubr.bf16.gmra.mrb[0].mxu0 %v5281
        %v6362 = vpop.f32.mrb[0].mxu0
        %v6363 = vadd.f32 %v5558, %v6362
        %v6364 = vpop.f32.mrb[0].mxu0
        %v6365 = vpop.f32.mrb[0].mxu0
        %v6366 = vpop.f32.mrb[0].mxu0
        %6367 = vdwg.mxu0
        %6368 = vmatprep.subr.bf16.mxu0 0
        %6369 = vmatpush1.bf16.msra.mxu0 %v6088
        %6370 = vmatprep.subr.bf16.mxu0 0
        %6371 = vmatpush1.bf16.msra.mxu0 %v6089
        %6372 = vmatprep.subr.bf16.mxu0 0
        %6373 = vmatpush1.bf16.msra.mxu0 %v6090
        %6374 = vmatprep.subr.bf16.mxu0 0
        %6375 = vmatpush1.bf16.msra.mxu0 %v6091
        %6376 = vmatprep.subr.bf16.mxu0 0
        %6377 = vmatpush1.bf16.msra.mxu0 %v6092
        %6378 = vmatprep.subr.bf16.mxu0 0
        %6379 = vmatpush1.bf16.msra.mxu0 %v6093
        %6380 = vmatprep.subr.bf16.mxu0 0
        %6381 = vmatpush1.bf16.msra.mxu0 %v6094
        %6382 = vmatprep.subr.bf16.mxu0 0
        %6383 = vmatpush1.bf16.msra.mxu0 %v6095
        %6384 = vmatprep.subr.bf16.mxu0 0
        %6385 = vmatpush1.bf16.msra.mxu0 %v6096
        %6386 = vmatprep.subr.bf16.mxu0 0
        %6387 = vmatpush1.bf16.msra.mxu0 %v6097
        %6388 = vmatprep.subr.bf16.mxu0 0
        %6389 = vmatpush1.bf16.msra.mxu0 %v6098
        %6390 = vmatprep.subr.bf16.mxu0 0
        %6391 = vmatpush1.bf16.msra.mxu0 %v6099
        %6392 = vmatprep.subr.bf16.mxu0 0
        %6393 = vmatpush1.bf16.msra.mxu0 %v6100
        %6394 = vmatprep.subr.bf16.mxu0 0
        %6395 = vmatpush1.bf16.msra.mxu0 %v6101
        %6396 = vmatprep.subr.bf16.mxu0 0
        %6397 = vmatpush1.bf16.msra.mxu0 %v6102
        %6398 = vmatprep.subr.bf16.mxu0 0
        %6399 = vmatpush1.bf16.msra.mxu0 %v6103
        %6400 = vmatprep.mubr.bf16.mxu0 %v5284
        %6401 = vmatmul.mubr.bf16.gmra.mrb[0].mxu0 %v5283
        %v6402 = vpop.f32.mrb[0].mxu0
        %v6403 = vadd.f32 %v6363, %v6402
        %v6404 = vpop.f32.mrb[0].mxu0
        %v6405 = vpop.f32.mrb[0].mxu0
        %v6406 = vpop.f32.mrb[0].mxu0
        %6407 = vdwg.mxu0
        %6408 = vmatprep.subr.bf16.mxu0 0
        %6409 = vmatpush1.bf16.msra.mxu0 %v6104
        %6410 = vmatprep.subr.bf16.mxu0 0
        %6411 = vmatpush1.bf16.msra.mxu0 %v6105
        %6412 = vmatprep.subr.bf16.mxu0 0
        %6413 = vmatpush1.bf16.msra.mxu0 %v6106
        %6414 = vmatprep.subr.bf16.mxu0 0
        %6415 = vmatpush1.bf16.msra.mxu0 %v6107
        %6416 = vmatprep.subr.bf16.mxu0 0
        %6417 = vmatpush1.bf16.msra.mxu0 %v6108
        %6418 = vmatprep.subr.bf16.mxu0 0
        %6419 = vmatpush1.bf16.msra.mxu0 %v6109
        %6420 = vmatprep.subr.bf16.mxu0 0
        %6421 = vmatpush1.bf16.msra.mxu0 %v6110
        %6422 = vmatprep.subr.bf16.mxu0 0
        %6423 = vmatpush1.bf16.msra.mxu0 %v6111
        %6424 = vmatprep.subr.bf16.mxu0 0
        %6425 = vmatpush1.bf16.msra.mxu0 %v6112
        %6426 = vmatprep.subr.bf16.mxu0 0
        %6427 = vmatpush1.bf16.msra.mxu0 %v6113
        %6428 = vmatprep.subr.bf16.mxu0 0
        %6429 = vmatpush1.bf16.msra.mxu0 %v6114
        %6430 = vmatprep.subr.bf16.mxu0 0
        %6431 = vmatpush1.bf16.msra.mxu0 %v6115
        %6432 = vmatprep.subr.bf16.mxu0 0
        %6433 = vmatpush1.bf16.msra.mxu0 %v6116
        %6434 = vmatprep.subr.bf16.mxu0 0
        %6435 = vmatpush1.bf16.msra.mxu0 %v6117
        %6436 = vmatprep.subr.bf16.mxu0 0
        %6437 = vmatpush1.bf16.msra.mxu0 %v6118
        %6438 = vmatprep.subr.bf16.mxu0 0
        %6439 = vmatpush1.bf16.msra.mxu0 %v6119
        %6440 = vmatprep.mubr.bf16.mxu0 %v5286
        %6441 = vmatmul.mubr.bf16.gmra.mrb[0].mxu0 %v5285
        %v6442 = vpop.f32.mrb[0].mxu0
        %v6443 = vadd.f32 %v6403, %v6442
        %v6444 = vpop.f32.mrb[0].mxu0
        %v6445 = vpop.f32.mrb[0].mxu0
        %v6446 = vpop.f32.mrb[0].mxu0
        %6447 = vdwg.mxu0
        %6448 = vmatprep.subr.bf16.mxu0 0
        %6449 = vmatpush1.bf16.msra.mxu0 %v6120
        %6450 = vmatprep.subr.bf16.mxu0 0
        %6451 = vmatpush1.bf16.msra.mxu0 %v6121
        %6452 = vmatprep.subr.bf16.mxu0 0
        %6453 = vmatpush1.bf16.msra.mxu0 %v6122
        %6454 = vmatprep.subr.bf16.mxu0 0
        %6455 = vmatpush1.bf16.msra.mxu0 %v6123
        %6456 = vmatprep.subr.bf16.mxu0 0
        %6457 = vmatpush1.bf16.msra.mxu0 %v6124
        %6458 = vmatprep.subr.bf16.mxu0 0
        %6459 = vmatpush1.bf16.msra.mxu0 %v6125
        %6460 = vmatprep.subr.bf16.mxu0 0
        %6461 = vmatpush1.bf16.msra.mxu0 %v6126
        %6462 = vmatprep.subr.bf16.mxu0 0
        %6463 = vmatpush1.bf16.msra.mxu0 %v6127
        %6464 = vmatprep.subr.bf16.mxu0 0
        %6465 = vmatpush1.bf16.msra.mxu0 %v6128
        %6466 = vmatprep.subr.bf16.mxu0 0
        %6467 = vmatpush1.bf16.msra.mxu0 %v6129
        %6468 = vmatprep.subr.bf16.mxu0 0
        %6469 = vmatpush1.bf16.msra.mxu0 %v6130
        %6470 = vmatprep.subr.bf16.mxu0 0
        %6471 = vmatpush1.bf16.msra.mxu0 %v6131
        %6472 = vmatprep.subr.bf16.mxu0 0
        %6473 = vmatpush1.bf16.msra.mxu0 %v6132
        %6474 = vmatprep.subr.bf16.mxu0 0
        %6475 = vmatpush1.bf16.msra.mxu0 %v6133
        %6476 = vmatprep.subr.bf16.mxu0 0
        %6477 = vmatpush1.bf16.msra.mxu0 %v6134
        %6478 = vmatprep.subr.bf16.mxu0 0
        %6479 = vmatpush1.bf16.msra.mxu0 %v6135
        %6480 = vmatprep.mubr.bf16.mxu0 %v5288
        %6481 = vmatmul.mubr.bf16.gmra.mrb[0].mxu0 %v5287
        %v6482 = vpop.f32.mrb[0].mxu0
        %v6483 = vadd.f32 %v6443, %v6482
        %v6484 = vpop.f32.mrb[0].mxu0
        %v6485 = vpop.f32.mrb[0].mxu0
        %v6486 = vpop.f32.mrb[0].mxu0
        %6487 = vdwg.mxu0
        %6488 = vmatprep.subr.bf16.mxu0 0
        %6489 = vmatpush1.bf16.msra.mxu0 %v6136
        %6490 = vmatprep.subr.bf16.mxu0 0
        %6491 = vmatpush1.bf16.msra.mxu0 %v6137
        %6492 = vmatprep.subr.bf16.mxu0 0
        %6493 = vmatpush1.bf16.msra.mxu0 %v6138
        %6494 = vmatprep.subr.bf16.mxu0 0
        %6495 = vmatpush1.bf16.msra.mxu0 %v6139
        %6496 = vmatprep.subr.bf16.mxu0 0
        %6497 = vmatpush1.bf16.msra.mxu0 %v6140
        %6498 = vmatprep.subr.bf16.mxu0 0
        %6499 = vmatpush1.bf16.msra.mxu0 %v6141
        %6500 = vmatprep.subr.bf16.mxu0 0
        %6501 = vmatpush1.bf16.msra.mxu0 %v6142
        %6502 = vmatprep.subr.bf16.mxu0 0
        %6503 = vmatpush1.bf16.msra.mxu0 %v6143
        %6504 = vmatprep.subr.bf16.mxu0 0
        %6505 = vmatpush1.bf16.msra.mxu0 %v6144
        %6506 = vmatprep.subr.bf16.mxu0 0
        %6507 = vmatpush1.bf16.msra.mxu0 %v6145
        %6508 = vmatprep.subr.bf16.mxu0 0
        %6509 = vmatpush1.bf16.msra.mxu0 %v6146
        %6510 = vmatprep.subr.bf16.mxu0 0
        %6511 = vmatpush1.bf16.msra.mxu0 %v6147
        %6512 = vmatprep.subr.bf16.mxu0 0
        %6513 = vmatpush1.bf16.msra.mxu0 %v6148
        %6514 = vmatprep.subr.bf16.mxu0 0
        %6515 = vmatpush1.bf16.msra.mxu0 %v6149
        %6516 = vmatprep.subr.bf16.mxu0 0
        %6517 = vmatpush1.bf16.msra.mxu0 %v6150
        %6518 = vmatprep.subr.bf16.mxu0 0
        %6519 = vmatpush1.bf16.msra.mxu0 %v6151
        %6520 = vmatprep.mubr.bf16.mxu0 %v5290
        %6521 = vmatmul.mubr.bf16.gmra.mrb[0].mxu0 %v5289
        %v6522 = vpop.f32.mrb[0].mxu0
        %v6523 = vadd.f32 %v6483, %v6522
        %v6524 = vpop.f32.mrb[0].mxu0
        %v6525 = vpop.f32.mrb[0].mxu0
        %v6526 = vpop.f32.mrb[0].mxu0
        %6527 = vdwg.mxu0
        %6528 = vmatprep.subr.bf16.mxu0 0
        %6529 = vmatpush1.bf16.msra.mxu0 %v6152
        %6530 = vmatprep.subr.bf16.mxu0 0
        %6531 = vmatpush1.bf16.msra.mxu0 %v6153
        %6532 = vmatprep.subr.bf16.mxu0 0
        %6533 = vmatpush1.bf16.msra.mxu0 %v6154
        %6534 = vmatprep.subr.bf16.mxu0 0
        %6535 = vmatpush1.bf16.msra.mxu0 %v6155
        %6536 = vmatprep.subr.bf16.mxu0 0
        %6537 = vmatpush1.bf16.msra.mxu0 %v6156
        %6538 = vmatprep.subr.bf16.mxu0 0
        %6539 = vmatpush1.bf16.msra.mxu0 %v6157
        %6540 = vmatprep.subr.bf16.mxu0 0
        %6541 = vmatpush1.bf16.msra.mxu0 %v6158
        %6542 = vmatprep.subr.bf16.mxu0 0
        %6543 = vmatpush1.bf16.msra.mxu0 %v6159
        %6544 = vmatprep.subr.bf16.mxu0 0
        %6545 = vmatpush1.bf16.msra.mxu0 %v6160
        %6546 = vmatprep.subr.bf16.mxu0 0
        %6547 = vmatpush1.bf16.msra.mxu0 %v6161
        %6548 = vmatprep.subr.bf16.mxu0 0
        %6549 = vmatpush1.bf16.msra.mxu0 %v6162
        %6550 = vmatprep.subr.bf16.mxu0 0
        %6551 = vmatpush1.bf16.msra.mxu0 %v6163
        %6552 = vmatprep.subr.bf16.mxu0 0
        %6553 = vmatpush1.bf16.msra.mxu0 %v6164
        %6554 = vmatprep.subr.bf16.mxu0 0
        %6555 = vmatpush1.bf16.msra.mxu0 %v6165
        %6556 = vmatprep.subr.bf16.mxu0 0
        %6557 = vmatpush1.bf16.msra.mxu0 %v6166
        %6558 = vmatprep.subr.bf16.mxu0 0
        %6559 = vmatpush1.bf16.msra.mxu0 %v6167
        %6560 = vmatprep.mubr.bf16.mxu0 %v5292
        %6561 = vmatmul.mubr.bf16.gmra.mrb[0].mxu0 %v5291
        %v6562 = vpop.f32.mrb[0].mxu0
        %v6563 = vadd.f32 %v6523, %v6562
        %v6564 = vpop.f32.mrb[0].mxu0
        %v6565 = vpop.f32.mrb[0].mxu0
        %v6566 = vpop.f32.mrb[0].mxu0
        %6567 = vdwg.mxu0
        %6568 = vmatprep.subr.bf16.mxu0 0
        %6569 = vmatpush1.bf16.msra.mxu0 %v6168
        %6570 = vmatprep.subr.bf16.mxu0 0
        %6571 = vmatpush1.bf16.msra.mxu0 %v6169
        %6572 = vmatprep.subr.bf16.mxu0 0
        %6573 = vmatpush1.bf16.msra.mxu0 %v6170
        %6574 = vmatprep.subr.bf16.mxu0 0
        %6575 = vmatpush1.bf16.msra.mxu0 %v6171
        %6576 = vmatprep.subr.bf16.mxu0 0
        %6577 = vmatpush1.bf16.msra.mxu0 %v6172
        %6578 = vmatprep.subr.bf16.mxu0 0
        %6579 = vmatpush1.bf16.msra.mxu0 %v6173
        %6580 = vmatprep.subr.bf16.mxu0 0
        %6581 = vmatpush1.bf16.msra.mxu0 %v6174
        %6582 = vmatprep.subr.bf16.mxu0 0
        %6583 = vmatpush1.bf16.msra.mxu0 %v6175
        %6584 = vmatprep.subr.bf16.mxu0 0
        %6585 = vmatpush1.bf16.msra.mxu0 %v6176
        %6586 = vmatprep.subr.bf16.mxu0 0
        %6587 = vmatpush1.bf16.msra.mxu0 %v6177
        %6588 = vmatprep.subr.bf16.mxu0 0
        %6589 = vmatpush1.bf16.msra.mxu0 %v6178
        %6590 = vmatprep.subr.bf16.mxu0 0
        %6591 = vmatpush1.bf16.msra.mxu0 %v6179
        %6592 = vmatprep.subr.bf16.mxu0 0
        %6593 = vmatpush1.bf16.msra.mxu0 %v6180
        %6594 = vmatprep.subr.bf16.mxu0 0
        %6595 = vmatpush1.bf16.msra.mxu0 %v6181
        %6596 = vmatprep.subr.bf16.mxu0 0
        %6597 = vmatpush1.bf16.msra.mxu0 %v6182
        %6598 = vmatprep.subr.bf16.mxu0 0
        %6599 = vmatpush1.bf16.msra.mxu0 %v6183
        %6600 = vmatprep.mubr.bf16.mxu0 %v5294
        %6601 = vmatmul.mubr.bf16.gmra.mrb[0].mxu0 %v5293
        %v6602 = vpop.f32.mrb[0].mxu0
        %v6603 = vadd.f32 %v6563, %v6602
        %v6604 = vpop.f32.mrb[0].mxu0
        %v6605 = vpop.f32.mrb[0].mxu0
        %v6606 = vpop.f32.mrb[0].mxu0
        %6607 = vdwg.mxu0
        %6608 = vmatprep.subr.bf16.mxu0 0
        %6609 = vmatpush1.bf16.msra.mxu0 %v6184
        %6610 = vmatprep.subr.bf16.mxu0 0
        %6611 = vmatpush1.bf16.msra.mxu0 %v6185
        %6612 = vmatprep.subr.bf16.mxu0 0
        %6613 = vmatpush1.bf16.msra.mxu0 %v6186
        %6614 = vmatprep.subr.bf16.mxu0 0
        %6615 = vmatpush1.bf16.msra.mxu0 %v6187
        %6616 = vmatprep.subr.bf16.mxu0 0
        %6617 = vmatpush1.bf16.msra.mxu0 %v6188
        %6618 = vmatprep.subr.bf16.mxu0 0
        %6619 = vmatpush1.bf16.msra.mxu0 %v6189
        %6620 = vmatprep.subr.bf16.mxu0 0
        %6621 = vmatpush1.bf16.msra.mxu0 %v6190
        %6622 = vmatprep.subr.bf16.mxu0 0
        %6623 = vmatpush1.bf16.msra.mxu0 %v6191
        %6624 = vmatprep.subr.bf16.mxu0 0
        %6625 = vmatpush1.bf16.msra.mxu0 %v6192
        %6626 = vmatprep.subr.bf16.mxu0 0
        %6627 = vmatpush1.bf16.msra.mxu0 %v6193
        %6628 = vmatprep.subr.bf16.mxu0 0
        %6629 = vmatpush1.bf16.msra.mxu0 %v6194
        %6630 = vmatprep.subr.bf16.mxu0 0
        %6631 = vmatpush1.bf16.msra.mxu0 %v6195
        %6632 = vmatprep.subr.bf16.mxu0 0
        %6633 = vmatpush1.bf16.msra.mxu0 %v6196
        %6634 = vmatprep.subr.bf16.mxu0 0
        %6635 = vmatpush1.bf16.msra.mxu0 %v6197
        %6636 = vmatprep.subr.bf16.mxu0 0
        %6637 = vmatpush1.bf16.msra.mxu0 %v6198
        %6638 = vmatprep.subr.bf16.mxu0 0
        %6639 = vmatpush1.bf16.msra.mxu0 %v6199
        %6640 = vmatprep.mubr.bf16.mxu0 %v5296
        %6641 = vmatmul.mubr.bf16.gmra.mrb[0].mxu0 %v5295
        %v6642 = vpop.f32.mrb[0].mxu0
        %v6643 = vadd.f32 %v6603, %v6642
        %v6644 = vpop.f32.mrb[0].mxu0
        %v6645 = vpop.f32.mrb[0].mxu0
        %v6646 = vpop.f32.mrb[0].mxu0
        %6647 = vdwg.mxu0
        %v6648 = vmax.f32 %v6643, 0.0
        %v6649 = vpack.c.bf16 %v6648, %v6648
        %v6650 = vld [vmem:[%s8] sm:$0xf]
        %v6651 = vld [vmem:[%s8 + $0x4] sm:$0xf]
        %v6652 = vld [vmem:[%s8 + $0x8] sm:$0xf]
        %v6653 = vld [vmem:[%s8 + $0xc] sm:$0xf]
        %v6654 = vld [vmem:[%s8 + $0x10] sm:$0xf]
        %v6655 = vld [vmem:[%s8 + $0x14] sm:$0xf]
        %v6656 = vld [vmem:[%s8 + $0x18] sm:$0xf]
        %v6657 = vld [vmem:[%s8 + $0x1c] sm:$0xf]
        %v6658 = vld [vmem:[%s8 + $0x20] sm:$0xf]
        %v6659 = vld [vmem:[%s8 + $0x24] sm:$0xf]
        %v6660 = vld [vmem:[%s8 + $0x28] sm:$0xf]
        %v6661 = vld [vmem:[%s8 + $0x2c] sm:$0xf]
        %v6662 = vld [vmem:[%s8 + $0x30] sm:$0xf]
        %v6663 = vld [vmem:[%s8 + $0x34] sm:$0xf]
        %v6664 = vld [vmem:[%s8 + $0x38] sm:$0xf]
        %v6665 = vld [vmem:[%s8 + $0x3c] sm:$0xf]
        %v6666 = vld [vmem:[%s9] sm:$0x1]
        %v6668 = vlaneseq
        %v6669 = vshrl.u32 %v6668, 7
        %v6670 = vsub.s32 0, %v6669
        %v6671 = vrot.slane %v6666, %v6670
        %v6689 = vunpack.c.l.b16 %v6650
        %v6690 = vunpack.c.l.b16 %v6651
        %v6691 = vunpack.c.l.b16 %v6652
        %v6692 = vunpack.c.l.b16 %v6653
        %v6693 = vunpack.c.l.b16 %v6654
        %v6694 = vunpack.c.l.b16 %v6655
        %v6695 = vunpack.c.l.b16 %v6656
        %v6696 = vunpack.c.l.b16 %v6657
        %v6697 = vunpack.c.l.b16 %v6658
        %v6698 = vunpack.c.l.b16 %v6659
        %v6699 = vunpack.c.l.b16 %v6660
        %v6700 = vunpack.c.l.b16 %v6661
        %v6701 = vunpack.c.l.b16 %v6662
        %v6702 = vunpack.c.l.b16 %v6663
        %v6703 = vunpack.c.l.b16 %v6664
        %v6704 = vunpack.c.l.b16 %v6665
        %v6705 = vpack.c.b16 %v6690, %v6689
        %v6706 = vpack.c.b16 %v6692, %v6691
        %v6707 = vpack.c.b16 %v6694, %v6693
        %v6708 = vpack.c.b16 %v6696, %v6695
        %v6709 = vpack.c.b16 %v6698, %v6697
        %v6710 = vpack.c.b16 %v6700, %v6699
        %v6711 = vpack.c.b16 %v6702, %v6701
        %v6712 = vpack.c.b16 %v6704, %v6703
        %6721 = vmatprep.subr.bf16.mxu0 0
        %6722 = vmatpush1.bf16.msra.mxu0 %v6705
        %6723 = vmatprep.subr.bf16.mxu0 0
        %6724 = vmatpush1.bf16.msra.mxu0 %v6706
        %6725 = vmatprep.subr.bf16.mxu0 0
        %6726 = vmatpush1.bf16.msra.mxu0 %v6707
        %6727 = vmatprep.subr.bf16.mxu0 0
        %6728 = vmatpush1.bf16.msra.mxu0 %v6708
        %6729 = vmatprep.subr.bf16.mxu0 0
        %6730 = vmatpush1.bf16.msra.mxu0 %v6709
        %6731 = vmatprep.subr.bf16.mxu0 0
        %6732 = vmatpush1.bf16.msra.mxu0 %v6710
        %6733 = vmatprep.subr.bf16.mxu0 0
        %6734 = vmatpush1.bf16.msra.mxu0 %v6711
        %6735 = vmatprep.subr.bf16.mxu0 0
        %6736 = vmatpush1.bf16.msra.mxu0 %v6712
        %6737 = vmatprep.subr.bf16.mxu0 0
        %6738 = vmatpush1.bf16.msra.mxu0 0
        %6739 = vmatprep.subr.bf16.mxu0 0
        %6740 = vmatpush1.bf16.msra.mxu0 0
        %6741 = vmatprep.subr.bf16.mxu0 0
        %6742 = vmatpush1.bf16.msra.mxu0 0
        %6743 = vmatprep.subr.bf16.mxu0 0
        %6744 = vmatpush1.bf16.msra.mxu0 0
        %6745 = vmatprep.subr.bf16.mxu0 0
        %6746 = vmatpush1.bf16.msra.mxu0 0
        %6747 = vmatprep.subr.bf16.mxu0 0
        %6748 = vmatpush1.bf16.msra.mxu0 0
        %6749 = vmatprep.subr.bf16.mxu0 0
        %6750 = vmatpush1.bf16.msra.mxu0 0
        %6751 = vmatprep.subr.bf16.mxu0 0
        %6752 = vmatpush1.bf16.msra.mxu0 0
        %6753 = vmatprep.mubr.bf16.mxu0 0
        %6754 = vmatmul.mubr.bf16.gmra.mrb[0].mxu0 %v6649
        %v6755 = vpop.f32.mrb[0].mxu0
        %v6756 = vadd.f32 %v6671, %v6755
        %v6757 = vpop.f32.mrb[0].mxu0
        %v6758 = vpop.f32.mrb[0].mxu0
        %v6759 = vpop.f32.mrb[0].mxu0
        %6760 = vdwg.mxu0
        %6761 = vst [vmem:[%s352] sm:$0xff] %v6756
        %s6762 = sand.u32 %s247, 1
        %s6763 = scalar_lea.sflag [#allocation3], %s6762
        %s6764 = sand.u32 %s247, 1
        %s6765 = smul.addr %s6764, 8
        %s6766 = scalar_lea.vmem [#allocation2], %s6765
        // Predicated region
        $region61: #{forward.1} parent=59 // pred_check
          %p6767 = pneg %p257
        $region62: #{forward.1} parent=59 // pred_check_branch
          %6769 = sbr.rel (%p6767) target = $region64
        $region63: #{forward.1} parent=59 // pred_region
          %s6771 = ssub.s32 128, 128
          %6772 = vsyncadd %s6763, %s6771
          %s6773 = smul.addr %s24, 128
          %s6774 = scalar_lea.hbm %s10, %s6773
          %s6776 = sshll.u32 %s6766, 4
          %s6777 = int_to_ptr.vmem [resolvable:$true] %s6776
          %6779 = dma.vmem_to_hbm [thread:$0]  %s6777, 128, %s6774, %s6763
        $region64: #{forward.1} parent=59 // pred_fallthru
          _
      $region60: #{forward.1} parent=5 // pred_fallthru
        _
      %p6780 = scmp.le.s32.totalorder 2, %s19
      // Predicated region
      $region65: #{forward.1} parent=5 // pred_check
        %p6781 = pneg %p6780
      $region66: #{forward.1} parent=5 // pred_check_branch
        %6783 = sbr.rel (%p6781) target = $region68
      $region67: #{forward.1} parent=5 // pred_region
        %s6784 = ssub.s32 %s19, 2
        // Predicated region
        $region69: #{forward.1} parent=67 // pred_check
          %p6785 = pneg %p263
        $region70: #{forward.1} parent=67 // pred_check_branch
          %6787 = sbr.rel (%p6785) target = $region72
        $region71: #{forward.1} parent=67 // pred_region
          %s6788 = sand.u32 %s248, 1
          %s6789 = scalar_lea.sflag [#allocation3], %s6788
          %s6790 = sand.u32 %s248, 1
          %s6791 = smul.addr %s6790, 8
          %s6792 = scalar_lea.vmem [#allocation2], %s6791
          %6793 = dma.done %s6789, 128
        $region72: #{forward.1} parent=67 // pred_fallthru
          _
      $region68: #{forward.1} parent=5 // pred_fallthru
        _
    $region6: #{forward.1} parent=1 // loop_footer
      %s23 = sadd.s32 1, %s19
    $region7: #{forward.1} parent=1 // loop_footer_branch
      %18 = sbr.rel target = $region3
    $region8: #{forward.1} parent=1 // loop_exit
      _
    %6794 = vsyncpa [#allocation3], 1
    %s6795 = scalar_lea.sflag [#allocation3], 1
    %6796 = vsyncpa %s6795, 1

</llo_original>
